<compile_context>
chip_gen: v7x
topology: tpu7x:2x2x1
jax: 0.10.0
libtpu: 0.0.40
codegen_flags: <defaults>
</compile_context>

<pallas_src>
import functools

import jax
import jax.numpy as jnp
from jax.experimental import pallas as pl
from jax.experimental.pallas import tpu as pltpu


# ---------------------------------------------------------------------------
# Fused kernel: one grid step == one batch tile (Bt sequences), time-major.
#   inputs : ids (1, T*Bt, 1) i32, tgt (1, T*Bt, 1) i32  (row r = t*Bt + b)
#            emb (V, ninp) bf16, wdec (H, V) bf16, bdec (1, V) f32,
#            per layer: wih (Din,4H) bf16, whh (H,4H) bf16, bias (1,4H) f32
#   output : per-tile NLL sum, (1, 1) f32
# ---------------------------------------------------------------------------
def _fused_rnn_lm_kernel(nlayers, nhid, seq_len, ids_ref, tgt_ref, emb_ref,
                         wdec_ref, bdec_ref, *rest):
    lstm_refs = rest[:3 * nlayers]
    loss_ref = rest[3 * nlayers]

    R = ids_ref.shape[1]          # R = T * Bt rows, time-major (row = t*Bt + b)
    T = seq_len
    Bt = R // T
    V = emb_ref.shape[0]
    H = nhid

    # ---- encoder: one-hot matmul gather (table resident in VMEM) ----------
    ids = ids_ref[0]                                            # (R, 1) int32
    viota = jax.lax.broadcasted_iota(jnp.int32, (R, V), 1)      # (R, V)
    onehot = (viota == ids).astype(emb_ref.dtype)               # (R, V) bf16
    x = jnp.dot(onehot, emb_ref[...],
                preferred_element_type=jnp.float32)             # (R, ninp) f32
    # dropout: eval-mode identity

    # ---- nlayers LSTM (PyTorch gate order i, f, g, o), batch tile on M ----
    for l in range(nlayers):
        wih = lstm_refs[3 * l][...]                             # (Din, 4H) bf16
        whh = lstm_refs[3 * l + 1][...]                         # (H, 4H)  bf16
        bias = lstm_refs[3 * l + 2][...]                        # (1, 4H)  f32

        # Hoisted time-invariant input projection + bias: one (T*Bt, 4H) matmul.
        gx = jnp.dot(x.astype(wih.dtype), wih,
                     preferred_element_type=jnp.float32) + bias  # (R, 4H) f32

        h = jnp.zeros((Bt, H), jnp.float32)
        c = jnp.zeros((Bt, H), jnp.float32)
        hs = []                           # hidden states kept in registers
        for t in range(T):                # statically unrolled short time loop
            g = gx[t * Bt:(t + 1) * Bt, :] + jnp.dot(
                h.astype(whh.dtype), whh, preferred_element_type=jnp.float32)
            i_g = jax.nn.sigmoid(g[:, 0 * H:1 * H])
            f_g = jax.nn.sigmoid(g[:, 1 * H:2 * H])
            g_g = jnp.tanh(g[:, 2 * H:3 * H])
            o_g = jax.nn.sigmoid(g[:, 3 * H:4 * H])
            c = f_g * c + i_g * g_g
            h = o_g * jnp.tanh(c)
            hs.append(h)
        x = jnp.concatenate(hs, axis=0)                         # (R, H) f32
        # inter-layer dropout: eval-mode identity

    # ---- criterion: decoder matmul + cross-entropy (sum; mean in wrapper) --
    logits = jnp.dot(x.astype(wdec_ref.dtype), wdec_ref[...],
                     preferred_element_type=jnp.float32) + bdec_ref[...]  # (R, V)
    m = jnp.max(logits, axis=-1, keepdims=True)
    lse = m + jnp.log(jnp.sum(jnp.exp(logits - m), axis=-1, keepdims=True))
    tgt = tgt_ref[0]                                            # (R, 1) int32
    tgt_logit = jnp.sum(jnp.where(viota == tgt, logits, 0.0),
                        axis=-1, keepdims=True)                 # (R, 1)
    nll = lse - tgt_logit                                       # (R, 1)
    loss_ref[...] = jnp.sum(nll, axis=0, keepdims=True)         # (1, 1)


# ---------------------------------------------------------------------------
# Wrapper: layout plumbing (time-major batch tiles), spec construction,
# tiny final mean. batch_tiles=1 for v5e/v6e (1 TC); use 2 on v7x.
# ---------------------------------------------------------------------------
@functools.partial(jax.jit, static_argnames=("batch_tiles",))
def rnn_model_forward(params, input_ids, target_ids, batch_tiles=1):
    B, T = input_ids.shape
    nhid = params["lstm"][0]["whh_t"].shape[0]
    nlayers = len(params["lstm"])
    assert B % batch_tiles == 0
    Bt = B // batch_tiles
    R = T * Bt

    def to_time_major(a):
        # (B, T) -> (tiles, T*Bt, 1) with row r = t*Bt + b_local (time-major).
        return (a.astype(jnp.int32)
                 .reshape(batch_tiles, Bt, T)
                 .transpose(0, 2, 1)
                 .reshape(batch_tiles, R, 1))

    ids3 = to_time_major(input_ids)
    tgt3 = to_time_major(target_ids)

    # bf16 MXU operands, f32 biases (gate math / softmax stay f32 in-kernel).
    weight_args = [
        params["emb"].astype(jnp.bfloat16),
        params["wdec_t"].astype(jnp.bfloat16),
        params["bdec"],
    ]
    for lyr in params["lstm"]:
        weight_args += [
            lyr["wih_t"].astype(jnp.bfloat16),
            lyr["whh_t"].astype(jnp.bfloat16),
            lyr["bias"],
        ]

    seq_spec = pl.BlockSpec((1, R, 1), lambda k: (k, 0, 0),
                            memory_space=pltpu.MemorySpace.VMEM)

    def full_spec(arr):
        nd = arr.ndim
        return pl.BlockSpec(arr.shape, lambda k, _nd=nd: (0,) * _nd,
                            memory_space=pltpu.MemorySpace.VMEM)

    in_specs = [seq_spec, seq_spec] + [full_spec(a) for a in weight_args]

    loss_sums = pl.pallas_call(
        functools.partial(_fused_rnn_lm_kernel, nlayers, nhid, T),
        out_shape=jax.ShapeDtypeStruct((batch_tiles, 1), jnp.float32),
        grid=(batch_tiles,),
        in_specs=in_specs,
        out_specs=pl.BlockSpec((1, 1), lambda k: (k, 0),
                               memory_space=pltpu.MemorySpace.VMEM),
        compiler_params=pltpu.CompilerParams(
            dimension_semantics=("parallel",),
            vmem_limit_bytes=32 * 1024 * 1024),
    )(ids3, tgt3, *weight_args)

    return jnp.sum(loss_sums) / (B * T)  # mean CE over all B*T tokens


# ---------------------------------------------------------------------------
# Parameter init (f32, PyTorch-style gate layout; weights pre-transposed).
# ---------------------------------------------------------------------------
def init_params(key, ntoken, ninp, nhid, nlayers):
    keys = jax.random.split(key, 2 + 4 * nlayers)
    bound = 1.0 / jnp.sqrt(jnp.float32(nhid))
    params = {
        "emb": jax.random.normal(keys[0], (ntoken, ninp), jnp.float32) * 0.1,
        "lstm": [],
        "wdec_t": jax.random.uniform(
            keys[1], (nhid, ntoken), jnp.float32, -bound, bound),
        "bdec": jnp.zeros((1, ntoken), jnp.float32),
    }
    for l in range(nlayers):
        din = ninp if l == 0 else nhid
        k = keys[2 + 4 * l: 2 + 4 * (l + 1)]
        wih_t = jax.random.uniform(k[0], (din, 4 * nhid), jnp.float32, -bound, bound)
        whh_t = jax.random.uniform(k[1], (nhid, 4 * nhid), jnp.float32, -bound, bound)
        b_ih = jax.random.uniform(k[2], (1, 4 * nhid), jnp.float32, -bound, bound)
        b_hh = jax.random.uniform(k[3], (1, 4 * nhid), jnp.float32, -bound, bound)
        params["lstm"].append({"wih_t": wih_t, "whh_t": whh_t, "bias": b_ih + b_hh})
    return params


# ---------------------------------------------------------------------------
# Pure-JAX f32 reference for validation.
# ---------------------------------------------------------------------------
def ref_forward(params, input_ids, target_ids):
    batch, seq = input_ids.shape
    emb = params["emb"][input_ids.reshape(-1)].reshape(batch, seq, -1)
    x = emb
    for layer in params["lstm"]:
        hid = layer["whh_t"].shape[0]

        def step(carry, x_t, layer=layer, hid=hid):
            h, c = carry
            gates = x_t @ layer["wih_t"] + h @ layer["whh_t"] + layer["bias"]
            i = jax.nn.sigmoid(gates[:, :hid])
            f = jax.nn.sigmoid(gates[:, hid:2 * hid])
            g = jnp.tanh(gates[:, 2 * hid:3 * hid])
            o = jax.nn.sigmoid(gates[:, 3 * hid:4 * hid])
            c = f * c + i * g
            h = o * jnp.tanh(c)
            return (h, c), h

        init = (jnp.zeros((batch, hid), jnp.float32),
                jnp.zeros((batch, hid), jnp.float32))
        _, ys = jax.lax.scan(step, init, x.transpose(1, 0, 2))
        x = ys.transpose(1, 0, 2)
    logits = x.reshape(batch * seq, -1) @ params["wdec_t"] + params["bdec"]
    logp = jax.nn.log_softmax(logits, axis=-1)
    tgt = target_ids.reshape(-1)
    return jnp.mean(-logp[jnp.arange(tgt.shape[0]), tgt])


if __name__ == "__main__":
    ntoken, ninp, nhid, nlayers = 256, 128, 128, 2
    batch, seq = 2, 8

    key = jax.random.PRNGKey(0)
    k_par, k_in, k_tgt = jax.random.split(key, 3)
    params = init_params(k_par, ntoken, ninp, nhid, nlayers)
    input_ids = jax.random.randint(k_in, (batch, seq), 0, ntoken, jnp.int32)
    target_ids = jax.random.randint(k_tgt, (batch, seq), 0, ntoken, jnp.int32)

    loss = rnn_model_forward(params, input_ids, target_ids)
    loss = jax.block_until_ready(loss)

    loss_ref = jax.block_until_ready(ref_forward(params, input_ids, target_ids))
    assert jnp.isfinite(loss), "non-finite loss"
    # bf16 MXU operands vs f32 reference -> loose tolerance.
    assert jnp.allclose(loss, loss_ref, atol=5e-2, rtol=5e-2), (loss, loss_ref)

    print("KERNEL_OK")
</pallas_src>

<mosaic_0001>
module attributes {stable_mosaic.version = 11 : i64} {
  func.func @_fused_rnn_lm_kernel(%arg0: i32, %arg1: memref<1x16x1xi32, #tpu.memory_space<vmem>>, %arg2: memref<1x16x1xi32, #tpu.memory_space<vmem>>, %arg3: memref<256x128xbf16, #tpu.memory_space<vmem>>, %arg4: memref<128x256xbf16, #tpu.memory_space<vmem>>, %arg5: memref<1x256xf32, #tpu.memory_space<vmem>>, %arg6: memref<128x512xbf16, #tpu.memory_space<vmem>>, %arg7: memref<128x512xbf16, #tpu.memory_space<vmem>>, %arg8: memref<1x512xf32, #tpu.memory_space<vmem>>, %arg9: memref<128x512xbf16, #tpu.memory_space<vmem>>, %arg10: memref<128x512xbf16, #tpu.memory_space<vmem>>, %arg11: memref<1x512xf32, #tpu.memory_space<vmem>>, %arg12: memref<1x1xf32, #tpu.memory_space<vmem>>) attributes {dimension_semantics = [#tpu.dimension_semantics<parallel>], iteration_bounds = array<i64: 1>, scalar_prefetch = 0 : i64, scratch_operands = 0 : i64, tpu.core_type = #tpu.core_type<tc>, window_params = [{transform_indices = @transform_0, window_bounds = array<i64: 1, 16, 1>}, {transform_indices = @transform_1, window_bounds = array<i64: 1, 16, 1>}, {pipeline_mode = #tpu.pipeline_mode<synchronous>, transform_indices = @transform_2, window_bounds = array<i64: 256, 128>}, {pipeline_mode = #tpu.pipeline_mode<synchronous>, transform_indices = @transform_3, window_bounds = array<i64: 128, 256>}, {pipeline_mode = #tpu.pipeline_mode<synchronous>, transform_indices = @transform_4, window_bounds = array<i64: 1, 256>}, {pipeline_mode = #tpu.pipeline_mode<synchronous>, transform_indices = @transform_5, window_bounds = array<i64: 128, 512>}, {pipeline_mode = #tpu.pipeline_mode<synchronous>, transform_indices = @transform_6, window_bounds = array<i64: 128, 512>}, {pipeline_mode = #tpu.pipeline_mode<synchronous>, transform_indices = @transform_7, window_bounds = array<i64: 1, 512>}, {pipeline_mode = #tpu.pipeline_mode<synchronous>, transform_indices = @transform_8, window_bounds = array<i64: 128, 512>}, {pipeline_mode = #tpu.pipeline_mode<synchronous>, transform_indices = @transform_9, window_bounds = array<i64: 128, 512>}, {pipeline_mode = #tpu.pipeline_mode<synchronous>, transform_indices = @transform_10, window_bounds = array<i64: 1, 512>}, {transform_indices = @transform_11, window_bounds = array<i64: 1, 1>}]} {
    %c0 = arith.constant 0 : index
    %c0_0 = arith.constant 0 : index
    %c0_1 = arith.constant 0 : index
    %0 = vector.load %arg1[%c0, %c0_0, %c0_1] : memref<1x16x1xi32, #tpu.memory_space<vmem>>, vector<1x16x1xi32>
    %1 = vector.shape_cast %0 : vector<1x16x1xi32> to vector<16x1xi32>
    %2 = tpu.iota {dimensions = array<i32: 1>} : vector<16x256xi32>
    %3 = vector.broadcast %1 : vector<16x1xi32> to vector<16x256xi32>
    %4 = arith.cmpi eq, %2, %3 : vector<16x256xi32>
    %5 = arith.extui %4 : vector<16x256xi1> to vector<16x256xi32>
    %6 = arith.sitofp %5 : vector<16x256xi32> to vector<16x256xf32>
    %7 = arith.truncf %6 : vector<16x256xf32> to vector<16x256xbf16>
    %c0_2 = arith.constant 0 : index
    %c0_3 = arith.constant 0 : index
    %8 = vector.load %arg3[%c0_2, %c0_3] : memref<256x128xbf16, #tpu.memory_space<vmem>>, vector<256x128xbf16>
    %cst = arith.constant dense<0.000000e+00> : vector<16x128xf32>
    %9 = tpu.matmul %7, %8, %cst {dimension_numbers = #tpu.dot_dimension_numbers<[1], [0], [0], [1], [0, 0, 1, 1], [], []>} : vector<16x256xbf16>, vector<256x128xbf16>, vector<16x128xf32> -> vector<16x128xf32>
    %c0_4 = arith.constant 0 : index
    %c0_5 = arith.constant 0 : index
    %10 = vector.load %arg6[%c0_4, %c0_5] : memref<128x512xbf16, #tpu.memory_space<vmem>>, vector<128x512xbf16>
    %c0_6 = arith.constant 0 : index
    %c0_7 = arith.constant 0 : index
    %11 = vector.load %arg7[%c0_6, %c0_7] : memref<128x512xbf16, #tpu.memory_space<vmem>>, vector<128x512xbf16>
    %c0_8 = arith.constant 0 : index
    %c0_9 = arith.constant 0 : index
    %12 = vector.load %arg8[%c0_8, %c0_9] : memref<1x512xf32, #tpu.memory_space<vmem>>, vector<1x512xf32>
    %13 = arith.truncf %9 : vector<16x128xf32> to vector<16x128xbf16>
    %cst_10 = arith.constant dense<0.000000e+00> : vector<16x512xf32>
    %14 = tpu.matmul %13, %10, %cst_10 {dimension_numbers = #tpu.dot_dimension_numbers<[1], [0], [0], [1], [0, 0, 1, 1], [], []>} : vector<16x128xbf16>, vector<128x512xbf16>, vector<16x512xf32> -> vector<16x512xf32>
    %15 = vector.broadcast %12 : vector<1x512xf32> to vector<16x512xf32>
    %16 = arith.addf %14, %15 : vector<16x512xf32>
    %cst_11 = arith.constant 0.000000e+00 : f32
    %17 = vector.broadcast %cst_11 : f32 to vector<2x128xf32>
    %cst_12 = arith.constant 0.000000e+00 : f32
    %18 = vector.broadcast %cst_12 : f32 to vector<2x128xf32>
    %19 = vector.extract_strided_slice %16 {offsets = [0, 0], sizes = [2, 512], strides = [1, 1]} : vector<16x512xf32> to vector<2x512xf32>
    %20 = arith.truncf %17 : vector<2x128xf32> to vector<2x128xbf16>
    %cst_13 = arith.constant dense<0.000000e+00> : vector<2x512xf32>
    %21 = tpu.matmul %20, %11, %cst_13 {dimension_numbers = #tpu.dot_dimension_numbers<[1], [0], [0], [1], [0, 0, 1, 1], [], []>} : vector<2x128xbf16>, vector<128x512xbf16>, vector<2x512xf32> -> vector<2x512xf32>
    %22 = arith.addf %19, %21 : vector<2x512xf32>
    %23 = vector.extract_strided_slice %22 {offsets = [0, 0], sizes = [2, 128], strides = [1, 1]} : vector<2x512xf32> to vector<2x128xf32>
    %24 = arith.negf %23 : vector<2x128xf32>
    %25 = math.exp %24 : vector<2x128xf32>
    %cst_14 = arith.constant 1.000000e+00 : f32
    %26 = vector.broadcast %cst_14 : f32 to vector<2x128xf32>
    %27 = arith.addf %26, %25 : vector<2x128xf32>
    %28 = arith.divf %26, %27 : vector<2x128xf32>
    %29 = vector.extract_strided_slice %22 {offsets = [0, 128], sizes = [2, 128], strides = [1, 1]} : vector<2x512xf32> to vector<2x128xf32>
    %30 = arith.negf %29 : vector<2x128xf32>
    %31 = math.exp %30 : vector<2x128xf32>
    %cst_15 = arith.constant 1.000000e+00 : f32
    %32 = vector.broadcast %cst_15 : f32 to vector<2x128xf32>
    %33 = arith.addf %32, %31 : vector<2x128xf32>
    %34 = arith.divf %32, %33 : vector<2x128xf32>
    %35 = vector.extract_strided_slice %22 {offsets = [0, 256], sizes = [2, 128], strides = [1, 1]} : vector<2x512xf32> to vector<2x128xf32>
    %36 = math.tanh %35 : vector<2x128xf32>
    %37 = vector.extract_strided_slice %22 {offsets = [0, 384], sizes = [2, 128], strides = [1, 1]} : vector<2x512xf32> to vector<2x128xf32>
    %38 = arith.negf %37 : vector<2x128xf32>
    %39 = math.exp %38 : vector<2x128xf32>
    %cst_16 = arith.constant 1.000000e+00 : f32
    %40 = vector.broadcast %cst_16 : f32 to vector<2x128xf32>
    %41 = arith.addf %40, %39 : vector<2x128xf32>
    %42 = arith.divf %40, %41 : vector<2x128xf32>
    %43 = arith.mulf %34, %18 : vector<2x128xf32>
    %44 = arith.mulf %28, %36 : vector<2x128xf32>
    %45 = arith.addf %43, %44 : vector<2x128xf32>
    %46 = math.tanh %45 : vector<2x128xf32>
    %47 = arith.mulf %42, %46 : vector<2x128xf32>
    %48 = vector.extract_strided_slice %16 {offsets = [2, 0], sizes = [2, 512], strides = [1, 1]} : vector<16x512xf32> to vector<2x512xf32>
    %49 = arith.truncf %47 : vector<2x128xf32> to vector<2x128xbf16>
    %cst_17 = arith.constant dense<0.000000e+00> : vector<2x512xf32>
    %50 = tpu.matmul %49, %11, %cst_17 {dimension_numbers = #tpu.dot_dimension_numbers<[1], [0], [0], [1], [0, 0, 1, 1], [], []>} : vector<2x128xbf16>, vector<128x512xbf16>, vector<2x512xf32> -> vector<2x512xf32>
    %51 = arith.addf %48, %50 : vector<2x512xf32>
    %52 = vector.extract_strided_slice %51 {offsets = [0, 0], sizes = [2, 128], strides = [1, 1]} : vector<2x512xf32> to vector<2x128xf32>
    %53 = arith.negf %52 : vector<2x128xf32>
    %54 = math.exp %53 : vector<2x128xf32>
    %cst_18 = arith.constant 1.000000e+00 : f32
    %55 = vector.broadcast %cst_18 : f32 to vector<2x128xf32>
    %56 = arith.addf %55, %54 : vector<2x128xf32>
    %57 = arith.divf %55, %56 : vector<2x128xf32>
    %58 = vector.extract_strided_slice %51 {offsets = [0, 128], sizes = [2, 128], strides = [1, 1]} : vector<2x512xf32> to vector<2x128xf32>
    %59 = arith.negf %58 : vector<2x128xf32>
    %60 = math.exp %59 : vector<2x128xf32>
    %cst_19 = arith.constant 1.000000e+00 : f32
    %61 = vector.broadcast %cst_19 : f32 to vector<2x128xf32>
    %62 = arith.addf %61, %60 : vector<2x128xf32>
    %63 = arith.divf %61, %62 : vector<2x128xf32>
    %64 = vector.extract_strided_slice %51 {offsets = [0, 256], sizes = [2, 128], strides = [1, 1]} : vector<2x512xf32> to vector<2x128xf32>
    %65 = math.tanh %64 : vector<2x128xf32>
    %66 = vector.extract_strided_slice %51 {offsets = [0, 384], sizes = [2, 128], strides = [1, 1]} : vector<2x512xf32> to vector<2x128xf32>
    %67 = arith.negf %66 : vector<2x128xf32>
    %68 = math.exp %67 : vector<2x128xf32>
    %cst_20 = arith.constant 1.000000e+00 : f32
    %69 = vector.broadcast %cst_20 : f32 to vector<2x128xf32>
    %70 = arith.addf %69, %68 : vector<2x128xf32>
    %71 = arith.divf %69, %70 : vector<2x128xf32>
    %72 = arith.mulf %63, %45 : vector<2x128xf32>
    %73 = arith.mulf %57, %65 : vector<2x128xf32>
    %74 = arith.addf %72, %73 : vector<2x128xf32>
    %75 = math.tanh %74 : vector<2x128xf32>
    %76 = arith.mulf %71, %75 : vector<2x128xf32>
    %77 = vector.extract_strided_slice %16 {offsets = [4, 0], sizes = [2, 512], strides = [1, 1]} : vector<16x512xf32> to vector<2x512xf32>
    %78 = arith.truncf %76 : vector<2x128xf32> to vector<2x128xbf16>
    %cst_21 = arith.constant dense<0.000000e+00> : vector<2x512xf32>
    %79 = tpu.matmul %78, %11, %cst_21 {dimension_numbers = #tpu.dot_dimension_numbers<[1], [0], [0], [1], [0, 0, 1, 1], [], []>} : vector<2x128xbf16>, vector<128x512xbf16>, vector<2x512xf32> -> vector<2x512xf32>
    %80 = arith.addf %77, %79 : vector<2x512xf32>
    %81 = vector.extract_strided_slice %80 {offsets = [0, 0], sizes = [2, 128], strides = [1, 1]} : vector<2x512xf32> to vector<2x128xf32>
    %82 = arith.negf %81 : vector<2x128xf32>
    %83 = math.exp %82 : vector<2x128xf32>
    %cst_22 = arith.constant 1.000000e+00 : f32
    %84 = vector.broadcast %cst_22 : f32 to vector<2x128xf32>
    %85 = arith.addf %84, %83 : vector<2x128xf32>
    %86 = arith.divf %84, %85 : vector<2x128xf32>
    %87 = vector.extract_strided_slice %80 {offsets = [0, 128], sizes = [2, 128], strides = [1, 1]} : vector<2x512xf32> to vector<2x128xf32>
    %88 = arith.negf %87 : vector<2x128xf32>
    %89 = math.exp %88 : vector<2x128xf32>
    %cst_23 = arith.constant 1.000000e+00 : f32
    %90 = vector.broadcast %cst_23 : f32 to vector<2x128xf32>
    %91 = arith.addf %90, %89 : vector<2x128xf32>
    %92 = arith.divf %90, %91 : vector<2x128xf32>
    %93 = vector.extract_strided_slice %80 {offsets = [0, 256], sizes = [2, 128], strides = [1, 1]} : vector<2x512xf32> to vector<2x128xf32>
    %94 = math.tanh %93 : vector<2x128xf32>
    %95 = vector.extract_strided_slice %80 {offsets = [0, 384], sizes = [2, 128], strides = [1, 1]} : vector<2x512xf32> to vector<2x128xf32>
    %96 = arith.negf %95 : vector<2x128xf32>
    %97 = math.exp %96 : vector<2x128xf32>
    %cst_24 = arith.constant 1.000000e+00 : f32
    %98 = vector.broadcast %cst_24 : f32 to vector<2x128xf32>
    %99 = arith.addf %98, %97 : vector<2x128xf32>
    %100 = arith.divf %98, %99 : vector<2x128xf32>
    %101 = arith.mulf %92, %74 : vector<2x128xf32>
    %102 = arith.mulf %86, %94 : vector<2x128xf32>
    %103 = arith.addf %101, %102 : vector<2x128xf32>
    %104 = math.tanh %103 : vector<2x128xf32>
    %105 = arith.mulf %100, %104 : vector<2x128xf32>
    %106 = vector.extract_strided_slice %16 {offsets = [6, 0], sizes = [2, 512], strides = [1, 1]} : vector<16x512xf32> to vector<2x512xf32>
    %107 = arith.truncf %105 : vector<2x128xf32> to vector<2x128xbf16>
    %cst_25 = arith.constant dense<0.000000e+00> : vector<2x512xf32>
    %108 = tpu.matmul %107, %11, %cst_25 {dimension_numbers = #tpu.dot_dimension_numbers<[1], [0], [0], [1], [0, 0, 1, 1], [], []>} : vector<2x128xbf16>, vector<128x512xbf16>, vector<2x512xf32> -> vector<2x512xf32>
    %109 = arith.addf %106, %108 : vector<2x512xf32>
    %110 = vector.extract_strided_slice %109 {offsets = [0, 0], sizes = [2, 128], strides = [1, 1]} : vector<2x512xf32> to vector<2x128xf32>
    %111 = arith.negf %110 : vector<2x128xf32>
    %112 = math.exp %111 : vector<2x128xf32>
    %cst_26 = arith.constant 1.000000e+00 : f32
    %113 = vector.broadcast %cst_26 : f32 to vector<2x128xf32>
    %114 = arith.addf %113, %112 : vector<2x128xf32>
    %115 = arith.divf %113, %114 : vector<2x128xf32>
    %116 = vector.extract_strided_slice %109 {offsets = [0, 128], sizes = [2, 128], strides = [1, 1]} : vector<2x512xf32> to vector<2x128xf32>
    %117 = arith.negf %116 : vector<2x128xf32>
    %118 = math.exp %117 : vector<2x128xf32>
    %cst_27 = arith.constant 1.000000e+00 : f32
    %119 = vector.broadcast %cst_27 : f32 to vector<2x128xf32>
    %120 = arith.addf %119, %118 : vector<2x128xf32>
    %121 = arith.divf %119, %120 : vector<2x128xf32>
    %122 = vector.extract_strided_slice %109 {offsets = [0, 256], sizes = [2, 128], strides = [1, 1]} : vector<2x512xf32> to vector<2x128xf32>
    %123 = math.tanh %122 : vector<2x128xf32>
    %124 = vector.extract_strided_slice %109 {offsets = [0, 384], sizes = [2, 128], strides = [1, 1]} : vector<2x512xf32> to vector<2x128xf32>
    %125 = arith.negf %124 : vector<2x128xf32>
    %126 = math.exp %125 : vector<2x128xf32>
    %cst_28 = arith.constant 1.000000e+00 : f32
    %127 = vector.broadcast %cst_28 : f32 to vector<2x128xf32>
    %128 = arith.addf %127, %126 : vector<2x128xf32>
    %129 = arith.divf %127, %128 : vector<2x128xf32>
    %130 = arith.mulf %121, %103 : vector<2x128xf32>
    %131 = arith.mulf %115, %123 : vector<2x128xf32>
    %132 = arith.addf %130, %131 : vector<2x128xf32>
    %133 = math.tanh %132 : vector<2x128xf32>
    %134 = arith.mulf %129, %133 : vector<2x128xf32>
    %135 = vector.extract_strided_slice %16 {offsets = [8, 0], sizes = [2, 512], strides = [1, 1]} : vector<16x512xf32> to vector<2x512xf32>
    %136 = arith.truncf %134 : vector<2x128xf32> to vector<2x128xbf16>
    %cst_29 = arith.constant dense<0.000000e+00> : vector<2x512xf32>
    %137 = tpu.matmul %136, %11, %cst_29 {dimension_numbers = #tpu.dot_dimension_numbers<[1], [0], [0], [1], [0, 0, 1, 1], [], []>} : vector<2x128xbf16>, vector<128x512xbf16>, vector<2x512xf32> -> vector<2x512xf32>
    %138 = arith.addf %135, %137 : vector<2x512xf32>
    %139 = vector.extract_strided_slice %138 {offsets = [0, 0], sizes = [2, 128], strides = [1, 1]} : vector<2x512xf32> to vector<2x128xf32>
    %140 = arith.negf %139 : vector<2x128xf32>
    %141 = math.exp %140 : vector<2x128xf32>
    %cst_30 = arith.constant 1.000000e+00 : f32
    %142 = vector.broadcast %cst_30 : f32 to vector<2x128xf32>
    %143 = arith.addf %142, %141 : vector<2x128xf32>
    %144 = arith.divf %142, %143 : vector<2x128xf32>
    %145 = vector.extract_strided_slice %138 {offsets = [0, 128], sizes = [2, 128], strides = [1, 1]} : vector<2x512xf32> to vector<2x128xf32>
    %146 = arith.negf %145 : vector<2x128xf32>
    %147 = math.exp %146 : vector<2x128xf32>
    %cst_31 = arith.constant 1.000000e+00 : f32
    %148 = vector.broadcast %cst_31 : f32 to vector<2x128xf32>
    %149 = arith.addf %148, %147 : vector<2x128xf32>
    %150 = arith.divf %148, %149 : vector<2x128xf32>
    %151 = vector.extract_strided_slice %138 {offsets = [0, 256], sizes = [2, 128], strides = [1, 1]} : vector<2x512xf32> to vector<2x128xf32>
    %152 = math.tanh %151 : vector<2x128xf32>
    %153 = vector.extract_strided_slice %138 {offsets = [0, 384], sizes = [2, 128], strides = [1, 1]} : vector<2x512xf32> to vector<2x128xf32>
    %154 = arith.negf %153 : vector<2x128xf32>
    %155 = math.exp %154 : vector<2x128xf32>
    %cst_32 = arith.constant 1.000000e+00 : f32
    %156 = vector.broadcast %cst_32 : f32 to vector<2x128xf32>
    %157 = arith.addf %156, %155 : vector<2x128xf32>
    %158 = arith.divf %156, %157 : vector<2x128xf32>
    %159 = arith.mulf %150, %132 : vector<2x128xf32>
    %160 = arith.mulf %144, %152 : vector<2x128xf32>
    %161 = arith.addf %159, %160 : vector<2x128xf32>
    %162 = math.tanh %161 : vector<2x128xf32>
    %163 = arith.mulf %158, %162 : vector<2x128xf32>
    %164 = vector.extract_strided_slice %16 {offsets = [10, 0], sizes = [2, 512], strides = [1, 1]} : vector<16x512xf32> to vector<2x512xf32>
    %165 = arith.truncf %163 : vector<2x128xf32> to vector<2x128xbf16>
    %cst_33 = arith.constant dense<0.000000e+00> : vector<2x512xf32>
    %166 = tpu.matmul %165, %11, %cst_33 {dimension_numbers = #tpu.dot_dimension_numbers<[1], [0], [0], [1], [0, 0, 1, 1], [], []>} : vector<2x128xbf16>, vector<128x512xbf16>, vector<2x512xf32> -> vector<2x512xf32>
    %167 = arith.addf %164, %166 : vector<2x512xf32>
    %168 = vector.extract_strided_slice %167 {offsets = [0, 0], sizes = [2, 128], strides = [1, 1]} : vector<2x512xf32> to vector<2x128xf32>
    %169 = arith.negf %168 : vector<2x128xf32>
    %170 = math.exp %169 : vector<2x128xf32>
    %cst_34 = arith.constant 1.000000e+00 : f32
    %171 = vector.broadcast %cst_34 : f32 to vector<2x128xf32>
    %172 = arith.addf %171, %170 : vector<2x128xf32>
    %173 = arith.divf %171, %172 : vector<2x128xf32>
    %174 = vector.extract_strided_slice %167 {offsets = [0, 128], sizes = [2, 128], strides = [1, 1]} : vector<2x512xf32> to vector<2x128xf32>
    %175 = arith.negf %174 : vector<2x128xf32>
    %176 = math.exp %175 : vector<2x128xf32>
    %cst_35 = arith.constant 1.000000e+00 : f32
    %177 = vector.broadcast %cst_35 : f32 to vector<2x128xf32>
    %178 = arith.addf %177, %176 : vector<2x128xf32>
    %179 = arith.divf %177, %178 : vector<2x128xf32>
    %180 = vector.extract_strided_slice %167 {offsets = [0, 256], sizes = [2, 128], strides = [1, 1]} : vector<2x512xf32> to vector<2x128xf32>
    %181 = math.tanh %180 : vector<2x128xf32>
    %182 = vector.extract_strided_slice %167 {offsets = [0, 384], sizes = [2, 128], strides = [1, 1]} : vector<2x512xf32> to vector<2x128xf32>
    %183 = arith.negf %182 : vector<2x128xf32>
    %184 = math.exp %183 : vector<2x128xf32>
    %cst_36 = arith.constant 1.000000e+00 : f32
    %185 = vector.broadcast %cst_36 : f32 to vector<2x128xf32>
    %186 = arith.addf %185, %184 : vector<2x128xf32>
    %187 = arith.divf %185, %186 : vector<2x128xf32>
    %188 = arith.mulf %179, %161 : vector<2x128xf32>
    %189 = arith.mulf %173, %181 : vector<2x128xf32>
    %190 = arith.addf %188, %189 : vector<2x128xf32>
    %191 = math.tanh %190 : vector<2x128xf32>
    %192 = arith.mulf %187, %191 : vector<2x128xf32>
    %193 = vector.extract_strided_slice %16 {offsets = [12, 0], sizes = [2, 512], strides = [1, 1]} : vector<16x512xf32> to vector<2x512xf32>
    %194 = arith.truncf %192 : vector<2x128xf32> to vector<2x128xbf16>
    %cst_37 = arith.constant dense<0.000000e+00> : vector<2x512xf32>
    %195 = tpu.matmul %194, %11, %cst_37 {dimension_numbers = #tpu.dot_dimension_numbers<[1], [0], [0], [1], [0, 0, 1, 1], [], []>} : vector<2x128xbf16>, vector<128x512xbf16>, vector<2x512xf32> -> vector<2x512xf32>
    %196 = arith.addf %193, %195 : vector<2x512xf32>
    %197 = vector.extract_strided_slice %196 {offsets = [0, 0], sizes = [2, 128], strides = [1, 1]} : vector<2x512xf32> to vector<2x128xf32>
    %198 = arith.negf %197 : vector<2x128xf32>
    %199 = math.exp %198 : vector<2x128xf32>
    %cst_38 = arith.constant 1.000000e+00 : f32
    %200 = vector.broadcast %cst_38 : f32 to vector<2x128xf32>
    %201 = arith.addf %200, %199 : vector<2x128xf32>
    %202 = arith.divf %200, %201 : vector<2x128xf32>
    %203 = vector.extract_strided_slice %196 {offsets = [0, 128], sizes = [2, 128], strides = [1, 1]} : vector<2x512xf32> to vector<2x128xf32>
    %204 = arith.negf %203 : vector<2x128xf32>
    %205 = math.exp %204 : vector<2x128xf32>
    %cst_39 = arith.constant 1.000000e+00 : f32
    %206 = vector.broadcast %cst_39 : f32 to vector<2x128xf32>
    %207 = arith.addf %206, %205 : vector<2x128xf32>
    %208 = arith.divf %206, %207 : vector<2x128xf32>
    %209 = vector.extract_strided_slice %196 {offsets = [0, 256], sizes = [2, 128], strides = [1, 1]} : vector<2x512xf32> to vector<2x128xf32>
    %210 = math.tanh %209 : vector<2x128xf32>
    %211 = vector.extract_strided_slice %196 {offsets = [0, 384], sizes = [2, 128], strides = [1, 1]} : vector<2x512xf32> to vector<2x128xf32>
    %212 = arith.negf %211 : vector<2x128xf32>
    %213 = math.exp %212 : vector<2x128xf32>
    %cst_40 = arith.constant 1.000000e+00 : f32
    %214 = vector.broadcast %cst_40 : f32 to vector<2x128xf32>
    %215 = arith.addf %214, %213 : vector<2x128xf32>
    %216 = arith.divf %214, %215 : vector<2x128xf32>
    %217 = arith.mulf %208, %190 : vector<2x128xf32>
    %218 = arith.mulf %202, %210 : vector<2x128xf32>
    %219 = arith.addf %217, %218 : vector<2x128xf32>
    %220 = math.tanh %219 : vector<2x128xf32>
    %221 = arith.mulf %216, %220 : vector<2x128xf32>
    %222 = vector.extract_strided_slice %16 {offsets = [14, 0], sizes = [2, 512], strides = [1, 1]} : vector<16x512xf32> to vector<2x512xf32>
    %223 = arith.truncf %221 : vector<2x128xf32> to vector<2x128xbf16>
    %cst_41 = arith.constant dense<0.000000e+00> : vector<2x512xf32>
    %224 = tpu.matmul %223, %11, %cst_41 {dimension_numbers = #tpu.dot_dimension_numbers<[1], [0], [0], [1], [0, 0, 1, 1], [], []>} : vector<2x128xbf16>, vector<128x512xbf16>, vector<2x512xf32> -> vector<2x512xf32>
    %225 = arith.addf %222, %224 : vector<2x512xf32>
    %226 = vector.extract_strided_slice %225 {offsets = [0, 0], sizes = [2, 128], strides = [1, 1]} : vector<2x512xf32> to vector<2x128xf32>
    %227 = arith.negf %226 : vector<2x128xf32>
    %228 = math.exp %227 : vector<2x128xf32>
    %cst_42 = arith.constant 1.000000e+00 : f32
    %229 = vector.broadcast %cst_42 : f32 to vector<2x128xf32>
    %230 = arith.addf %229, %228 : vector<2x128xf32>
    %231 = arith.divf %229, %230 : vector<2x128xf32>
    %232 = vector.extract_strided_slice %225 {offsets = [0, 128], sizes = [2, 128], strides = [1, 1]} : vector<2x512xf32> to vector<2x128xf32>
    %233 = arith.negf %232 : vector<2x128xf32>
    %234 = math.exp %233 : vector<2x128xf32>
    %cst_43 = arith.constant 1.000000e+00 : f32
    %235 = vector.broadcast %cst_43 : f32 to vector<2x128xf32>
    %236 = arith.addf %235, %234 : vector<2x128xf32>
    %237 = arith.divf %235, %236 : vector<2x128xf32>
    %238 = vector.extract_strided_slice %225 {offsets = [0, 256], sizes = [2, 128], strides = [1, 1]} : vector<2x512xf32> to vector<2x128xf32>
    %239 = math.tanh %238 : vector<2x128xf32>
    %240 = vector.extract_strided_slice %225 {offsets = [0, 384], sizes = [2, 128], strides = [1, 1]} : vector<2x512xf32> to vector<2x128xf32>
    %241 = arith.negf %240 : vector<2x128xf32>
    %242 = math.exp %241 : vector<2x128xf32>
    %cst_44 = arith.constant 1.000000e+00 : f32
    %243 = vector.broadcast %cst_44 : f32 to vector<2x128xf32>
    %244 = arith.addf %243, %242 : vector<2x128xf32>
    %245 = arith.divf %243, %244 : vector<2x128xf32>
    %246 = arith.mulf %237, %219 : vector<2x128xf32>
    %247 = arith.mulf %231, %239 : vector<2x128xf32>
    %248 = arith.addf %246, %247 : vector<2x128xf32>
    %249 = math.tanh %248 : vector<2x128xf32>
    %250 = arith.mulf %245, %249 : vector<2x128xf32>
    %251 = tpu.concatenate %47, %76, %105, %134, %163, %192, %221, %250 in 0 : vector<2x128xf32>, vector<2x128xf32>, vector<2x128xf32>, vector<2x128xf32>, vector<2x128xf32>, vector<2x128xf32>, vector<2x128xf32>, vector<2x128xf32> -> vector<16x128xf32>
    %c0_45 = arith.constant 0 : index
    %c0_46 = arith.constant 0 : index
    %252 = vector.load %arg9[%c0_45, %c0_46] : memref<128x512xbf16, #tpu.memory_space<vmem>>, vector<128x512xbf16>
    %c0_47 = arith.constant 0 : index
    %c0_48 = arith.constant 0 : index
    %253 = vector.load %arg10[%c0_47, %c0_48] : memref<128x512xbf16, #tpu.memory_space<vmem>>, vector<128x512xbf16>
    %c0_49 = arith.constant 0 : index
    %c0_50 = arith.constant 0 : index
    %254 = vector.load %arg11[%c0_49, %c0_50] : memref<1x512xf32, #tpu.memory_space<vmem>>, vector<1x512xf32>
    %255 = arith.truncf %251 : vector<16x128xf32> to vector<16x128xbf16>
    %cst_51 = arith.constant dense<0.000000e+00> : vector<16x512xf32>
    %256 = tpu.matmul %255, %252, %cst_51 {dimension_numbers = #tpu.dot_dimension_numbers<[1], [0], [0], [1], [0, 0, 1, 1], [], []>} : vector<16x128xbf16>, vector<128x512xbf16>, vector<16x512xf32> -> vector<16x512xf32>
    %257 = vector.broadcast %254 : vector<1x512xf32> to vector<16x512xf32>
    %258 = arith.addf %256, %257 : vector<16x512xf32>
    %cst_52 = arith.constant 0.000000e+00 : f32
    %259 = vector.broadcast %cst_52 : f32 to vector<2x128xf32>
    %cst_53 = arith.constant 0.000000e+00 : f32
    %260 = vector.broadcast %cst_53 : f32 to vector<2x128xf32>
    %261 = vector.extract_strided_slice %258 {offsets = [0, 0], sizes = [2, 512], strides = [1, 1]} : vector<16x512xf32> to vector<2x512xf32>
    %262 = arith.truncf %259 : vector<2x128xf32> to vector<2x128xbf16>
    %cst_54 = arith.constant dense<0.000000e+00> : vector<2x512xf32>
    %263 = tpu.matmul %262, %253, %cst_54 {dimension_numbers = #tpu.dot_dimension_numbers<[1], [0], [0], [1], [0, 0, 1, 1], [], []>} : vector<2x128xbf16>, vector<128x512xbf16>, vector<2x512xf32> -> vector<2x512xf32>
    %264 = arith.addf %261, %263 : vector<2x512xf32>
    %265 = vector.extract_strided_slice %264 {offsets = [0, 0], sizes = [2, 128], strides = [1, 1]} : vector<2x512xf32> to vector<2x128xf32>
    %266 = arith.negf %265 : vector<2x128xf32>
    %267 = math.exp %266 : vector<2x128xf32>
    %cst_55 = arith.constant 1.000000e+00 : f32
    %268 = vector.broadcast %cst_55 : f32 to vector<2x128xf32>
    %269 = arith.addf %268, %267 : vector<2x128xf32>
    %270 = arith.divf %268, %269 : vector<2x128xf32>
    %271 = vector.extract_strided_slice %264 {offsets = [0, 128], sizes = [2, 128], strides = [1, 1]} : vector<2x512xf32> to vector<2x128xf32>
    %272 = arith.negf %271 : vector<2x128xf32>
    %273 = math.exp %272 : vector<2x128xf32>
    %cst_56 = arith.constant 1.000000e+00 : f32
    %274 = vector.broadcast %cst_56 : f32 to vector<2x128xf32>
    %275 = arith.addf %274, %273 : vector<2x128xf32>
    %276 = arith.divf %274, %275 : vector<2x128xf32>
    %277 = vector.extract_strided_slice %264 {offsets = [0, 256], sizes = [2, 128], strides = [1, 1]} : vector<2x512xf32> to vector<2x128xf32>
    %278 = math.tanh %277 : vector<2x128xf32>
    %279 = vector.extract_strided_slice %264 {offsets = [0, 384], sizes = [2, 128], strides = [1, 1]} : vector<2x512xf32> to vector<2x128xf32>
    %280 = arith.negf %279 : vector<2x128xf32>
    %281 = math.exp %280 : vector<2x128xf32>
    %cst_57 = arith.constant 1.000000e+00 : f32
    %282 = vector.broadcast %cst_57 : f32 to vector<2x128xf32>
    %283 = arith.addf %282, %281 : vector<2x128xf32>
    %284 = arith.divf %282, %283 : vector<2x128xf32>
    %285 = arith.mulf %276, %260 : vector<2x128xf32>
    %286 = arith.mulf %270, %278 : vector<2x128xf32>
    %287 = arith.addf %285, %286 : vector<2x128xf32>
    %288 = math.tanh %287 : vector<2x128xf32>
    %289 = arith.mulf %284, %288 : vector<2x128xf32>
    %290 = vector.extract_strided_slice %258 {offsets = [2, 0], sizes = [2, 512], strides = [1, 1]} : vector<16x512xf32> to vector<2x512xf32>
    %291 = arith.truncf %289 : vector<2x128xf32> to vector<2x128xbf16>
    %cst_58 = arith.constant dense<0.000000e+00> : vector<2x512xf32>
    %292 = tpu.matmul %291, %253, %cst_58 {dimension_numbers = #tpu.dot_dimension_numbers<[1], [0], [0], [1], [0, 0, 1, 1], [], []>} : vector<2x128xbf16>, vector<128x512xbf16>, vector<2x512xf32> -> vector<2x512xf32>
    %293 = arith.addf %290, %292 : vector<2x512xf32>
    %294 = vector.extract_strided_slice %293 {offsets = [0, 0], sizes = [2, 128], strides = [1, 1]} : vector<2x512xf32> to vector<2x128xf32>
    %295 = arith.negf %294 : vector<2x128xf32>
    %296 = math.exp %295 : vector<2x128xf32>
    %cst_59 = arith.constant 1.000000e+00 : f32
    %297 = vector.broadcast %cst_59 : f32 to vector<2x128xf32>
    %298 = arith.addf %297, %296 : vector<2x128xf32>
    %299 = arith.divf %297, %298 : vector<2x128xf32>
    %300 = vector.extract_strided_slice %293 {offsets = [0, 128], sizes = [2, 128], strides = [1, 1]} : vector<2x512xf32> to vector<2x128xf32>
    %301 = arith.negf %300 : vector<2x128xf32>
    %302 = math.exp %301 : vector<2x128xf32>
    %cst_60 = arith.constant 1.000000e+00 : f32
    %303 = vector.broadcast %cst_60 : f32 to vector<2x128xf32>
    %304 = arith.addf %303, %302 : vector<2x128xf32>
    %305 = arith.divf %303, %304 : vector<2x128xf32>
    %306 = vector.extract_strided_slice %293 {offsets = [0, 256], sizes = [2, 128], strides = [1, 1]} : vector<2x512xf32> to vector<2x128xf32>
    %307 = math.tanh %306 : vector<2x128xf32>
    %308 = vector.extract_strided_slice %293 {offsets = [0, 384], sizes = [2, 128], strides = [1, 1]} : vector<2x512xf32> to vector<2x128xf32>
    %309 = arith.negf %308 : vector<2x128xf32>
    %310 = math.exp %309 : vector<2x128xf32>
    %cst_61 = arith.constant 1.000000e+00 : f32
    %311 = vector.broadcast %cst_61 : f32 to vector<2x128xf32>
    %312 = arith.addf %311, %310 : vector<2x128xf32>
    %313 = arith.divf %311, %312 : vector<2x128xf32>
    %314 = arith.mulf %305, %287 : vector<2x128xf32>
    %315 = arith.mulf %299, %307 : vector<2x128xf32>
    %316 = arith.addf %314, %315 : vector<2x128xf32>
    %317 = math.tanh %316 : vector<2x128xf32>
    %318 = arith.mulf %313, %317 : vector<2x128xf32>
    %319 = vector.extract_strided_slice %258 {offsets = [4, 0], sizes = [2, 512], strides = [1, 1]} : vector<16x512xf32> to vector<2x512xf32>
    %320 = arith.truncf %318 : vector<2x128xf32> to vector<2x128xbf16>
    %cst_62 = arith.constant dense<0.000000e+00> : vector<2x512xf32>
    %321 = tpu.matmul %320, %253, %cst_62 {dimension_numbers = #tpu.dot_dimension_numbers<[1], [0], [0], [1], [0, 0, 1, 1], [], []>} : vector<2x128xbf16>, vector<128x512xbf16>, vector<2x512xf32> -> vector<2x512xf32>
    %322 = arith.addf %319, %321 : vector<2x512xf32>
    %323 = vector.extract_strided_slice %322 {offsets = [0, 0], sizes = [2, 128], strides = [1, 1]} : vector<2x512xf32> to vector<2x128xf32>
    %324 = arith.negf %323 : vector<2x128xf32>
    %325 = math.exp %324 : vector<2x128xf32>
    %cst_63 = arith.constant 1.000000e+00 : f32
    %326 = vector.broadcast %cst_63 : f32 to vector<2x128xf32>
    %327 = arith.addf %326, %325 : vector<2x128xf32>
    %328 = arith.divf %326, %327 : vector<2x128xf32>
    %329 = vector.extract_strided_slice %322 {offsets = [0, 128], sizes = [2, 128], strides = [1, 1]} : vector<2x512xf32> to vector<2x128xf32>
    %330 = arith.negf %329 : vector<2x128xf32>
    %331 = math.exp %330 : vector<2x128xf32>
    %cst_64 = arith.constant 1.000000e+00 : f32
    %332 = vector.broadcast %cst_64 : f32 to vector<2x128xf32>
    %333 = arith.addf %332, %331 : vector<2x128xf32>
    %334 = arith.divf %332, %333 : vector<2x128xf32>
    %335 = vector.extract_strided_slice %322 {offsets = [0, 256], sizes = [2, 128], strides = [1, 1]} : vector<2x512xf32> to vector<2x128xf32>
    %336 = math.tanh %335 : vector<2x128xf32>
    %337 = vector.extract_strided_slice %322 {offsets = [0, 384], sizes = [2, 128], strides = [1, 1]} : vector<2x512xf32> to vector<2x128xf32>
    %338 = arith.negf %337 : vector<2x128xf32>
    %339 = math.exp %338 : vector<2x128xf32>
    %cst_65 = arith.constant 1.000000e+00 : f32
    %340 = vector.broadcast %cst_65 : f32 to vector<2x128xf32>
    %341 = arith.addf %340, %339 : vector<2x128xf32>
    %342 = arith.divf %340, %341 : vector<2x128xf32>
    %343 = arith.mulf %334, %316 : vector<2x128xf32>
    %344 = arith.mulf %328, %336 : vector<2x128xf32>
    %345 = arith.addf %343, %344 : vector<2x128xf32>
    %346 = math.tanh %345 : vector<2x128xf32>
    %347 = arith.mulf %342, %346 : vector<2x128xf32>
    %348 = vector.extract_strided_slice %258 {offsets = [6, 0], sizes = [2, 512], strides = [1, 1]} : vector<16x512xf32> to vector<2x512xf32>
    %349 = arith.truncf %347 : vector<2x128xf32> to vector<2x128xbf16>
    %cst_66 = arith.constant dense<0.000000e+00> : vector<2x512xf32>
    %350 = tpu.matmul %349, %253, %cst_66 {dimension_numbers = #tpu.dot_dimension_numbers<[1], [0], [0], [1], [0, 0, 1, 1], [], []>} : vector<2x128xbf16>, vector<128x512xbf16>, vector<2x512xf32> -> vector<2x512xf32>
    %351 = arith.addf %348, %350 : vector<2x512xf32>
    %352 = vector.extract_strided_slice %351 {offsets = [0, 0], sizes = [2, 128], strides = [1, 1]} : vector<2x512xf32> to vector<2x128xf32>
    %353 = arith.negf %352 : vector<2x128xf32>
    %354 = math.exp %353 : vector<2x128xf32>
    %cst_67 = arith.constant 1.000000e+00 : f32
    %355 = vector.broadcast %cst_67 : f32 to vector<2x128xf32>
    %356 = arith.addf %355, %354 : vector<2x128xf32>
    %357 = arith.divf %355, %356 : vector<2x128xf32>
    %358 = vector.extract_strided_slice %351 {offsets = [0, 128], sizes = [2, 128], strides = [1, 1]} : vector<2x512xf32> to vector<2x128xf32>
    %359 = arith.negf %358 : vector<2x128xf32>
    %360 = math.exp %359 : vector<2x128xf32>
    %cst_68 = arith.constant 1.000000e+00 : f32
    %361 = vector.broadcast %cst_68 : f32 to vector<2x128xf32>
    %362 = arith.addf %361, %360 : vector<2x128xf32>
    %363 = arith.divf %361, %362 : vector<2x128xf32>
    %364 = vector.extract_strided_slice %351 {offsets = [0, 256], sizes = [2, 128], strides = [1, 1]} : vector<2x512xf32> to vector<2x128xf32>
    %365 = math.tanh %364 : vector<2x128xf32>
    %366 = vector.extract_strided_slice %351 {offsets = [0, 384], sizes = [2, 128], strides = [1, 1]} : vector<2x512xf32> to vector<2x128xf32>
    %367 = arith.negf %366 : vector<2x128xf32>
    %368 = math.exp %367 : vector<2x128xf32>
    %cst_69 = arith.constant 1.000000e+00 : f32
    %369 = vector.broadcast %cst_69 : f32 to vector<2x128xf32>
    %370 = arith.addf %369, %368 : vector<2x128xf32>
    %371 = arith.divf %369, %370 : vector<2x128xf32>
    %372 = arith.mulf %363, %345 : vector<2x128xf32>
    %373 = arith.mulf %357, %365 : vector<2x128xf32>
    %374 = arith.addf %372, %373 : vector<2x128xf32>
    %375 = math.tanh %374 : vector<2x128xf32>
    %376 = arith.mulf %371, %375 : vector<2x128xf32>
    %377 = vector.extract_strided_slice %258 {offsets = [8, 0], sizes = [2, 512], strides = [1, 1]} : vector<16x512xf32> to vector<2x512xf32>
    %378 = arith.truncf %376 : vector<2x128xf32> to vector<2x128xbf16>
    %cst_70 = arith.constant dense<0.000000e+00> : vector<2x512xf32>
    %379 = tpu.matmul %378, %253, %cst_70 {dimension_numbers = #tpu.dot_dimension_numbers<[1], [0], [0], [1], [0, 0, 1, 1], [], []>} : vector<2x128xbf16>, vector<128x512xbf16>, vector<2x512xf32> -> vector<2x512xf32>
    %380 = arith.addf %377, %379 : vector<2x512xf32>
    %381 = vector.extract_strided_slice %380 {offsets = [0, 0], sizes = [2, 128], strides = [1, 1]} : vector<2x512xf32> to vector<2x128xf32>
    %382 = arith.negf %381 : vector<2x128xf32>
    %383 = math.exp %382 : vector<2x128xf32>
    %cst_71 = arith.constant 1.000000e+00 : f32
    %384 = vector.broadcast %cst_71 : f32 to vector<2x128xf32>
    %385 = arith.addf %384, %383 : vector<2x128xf32>
    %386 = arith.divf %384, %385 : vector<2x128xf32>
    %387 = vector.extract_strided_slice %380 {offsets = [0, 128], sizes = [2, 128], strides = [1, 1]} : vector<2x512xf32> to vector<2x128xf32>
    %388 = arith.negf %387 : vector<2x128xf32>
    %389 = math.exp %388 : vector<2x128xf32>
    %cst_72 = arith.constant 1.000000e+00 : f32
    %390 = vector.broadcast %cst_72 : f32 to vector<2x128xf32>
    %391 = arith.addf %390, %389 : vector<2x128xf32>
    %392 = arith.divf %390, %391 : vector<2x128xf32>
    %393 = vector.extract_strided_slice %380 {offsets = [0, 256], sizes = [2, 128], strides = [1, 1]} : vector<2x512xf32> to vector<2x128xf32>
    %394 = math.tanh %393 : vector<2x128xf32>
    %395 = vector.extract_strided_slice %380 {offsets = [0, 384], sizes = [2, 128], strides = [1, 1]} : vector<2x512xf32> to vector<2x128xf32>
    %396 = arith.negf %395 : vector<2x128xf32>
    %397 = math.exp %396 : vector<2x128xf32>
    %cst_73 = arith.constant 1.000000e+00 : f32
    %398 = vector.broadcast %cst_73 : f32 to vector<2x128xf32>
    %399 = arith.addf %398, %397 : vector<2x128xf32>
    %400 = arith.divf %398, %399 : vector<2x128xf32>
    %401 = arith.mulf %392, %374 : vector<2x128xf32>
    %402 = arith.mulf %386, %394 : vector<2x128xf32>
    %403 = arith.addf %401, %402 : vector<2x128xf32>
    %404 = math.tanh %403 : vector<2x128xf32>
    %405 = arith.mulf %400, %404 : vector<2x128xf32>
    %406 = vector.extract_strided_slice %258 {offsets = [10, 0], sizes = [2, 512], strides = [1, 1]} : vector<16x512xf32> to vector<2x512xf32>
    %407 = arith.truncf %405 : vector<2x128xf32> to vector<2x128xbf16>
    %cst_74 = arith.constant dense<0.000000e+00> : vector<2x512xf32>
    %408 = tpu.matmul %407, %253, %cst_74 {dimension_numbers = #tpu.dot_dimension_numbers<[1], [0], [0], [1], [0, 0, 1, 1], [], []>} : vector<2x128xbf16>, vector<128x512xbf16>, vector<2x512xf32> -> vector<2x512xf32>
    %409 = arith.addf %406, %408 : vector<2x512xf32>
    %410 = vector.extract_strided_slice %409 {offsets = [0, 0], sizes = [2, 128], strides = [1, 1]} : vector<2x512xf32> to vector<2x128xf32>
    %411 = arith.negf %410 : vector<2x128xf32>
    %412 = math.exp %411 : vector<2x128xf32>
    %cst_75 = arith.constant 1.000000e+00 : f32
    %413 = vector.broadcast %cst_75 : f32 to vector<2x128xf32>
    %414 = arith.addf %413, %412 : vector<2x128xf32>
    %415 = arith.divf %413, %414 : vector<2x128xf32>
    %416 = vector.extract_strided_slice %409 {offsets = [0, 128], sizes = [2, 128], strides = [1, 1]} : vector<2x512xf32> to vector<2x128xf32>
    %417 = arith.negf %416 : vector<2x128xf32>
    %418 = math.exp %417 : vector<2x128xf32>
    %cst_76 = arith.constant 1.000000e+00 : f32
    %419 = vector.broadcast %cst_76 : f32 to vector<2x128xf32>
    %420 = arith.addf %419, %418 : vector<2x128xf32>
    %421 = arith.divf %419, %420 : vector<2x128xf32>
    %422 = vector.extract_strided_slice %409 {offsets = [0, 256], sizes = [2, 128], strides = [1, 1]} : vector<2x512xf32> to vector<2x128xf32>
    %423 = math.tanh %422 : vector<2x128xf32>
    %424 = vector.extract_strided_slice %409 {offsets = [0, 384], sizes = [2, 128], strides = [1, 1]} : vector<2x512xf32> to vector<2x128xf32>
    %425 = arith.negf %424 : vector<2x128xf32>
    %426 = math.exp %425 : vector<2x128xf32>
    %cst_77 = arith.constant 1.000000e+00 : f32
    %427 = vector.broadcast %cst_77 : f32 to vector<2x128xf32>
    %428 = arith.addf %427, %426 : vector<2x128xf32>
    %429 = arith.divf %427, %428 : vector<2x128xf32>
    %430 = arith.mulf %421, %403 : vector<2x128xf32>
    %431 = arith.mulf %415, %423 : vector<2x128xf32>
    %432 = arith.addf %430, %431 : vector<2x128xf32>
    %433 = math.tanh %432 : vector<2x128xf32>
    %434 = arith.mulf %429, %433 : vector<2x128xf32>
    %435 = vector.extract_strided_slice %258 {offsets = [12, 0], sizes = [2, 512], strides = [1, 1]} : vector<16x512xf32> to vector<2x512xf32>
    %436 = arith.truncf %434 : vector<2x128xf32> to vector<2x128xbf16>
    %cst_78 = arith.constant dense<0.000000e+00> : vector<2x512xf32>
    %437 = tpu.matmul %436, %253, %cst_78 {dimension_numbers = #tpu.dot_dimension_numbers<[1], [0], [0], [1], [0, 0, 1, 1], [], []>} : vector<2x128xbf16>, vector<128x512xbf16>, vector<2x512xf32> -> vector<2x512xf32>
    %438 = arith.addf %435, %437 : vector<2x512xf32>
    %439 = vector.extract_strided_slice %438 {offsets = [0, 0], sizes = [2, 128], strides = [1, 1]} : vector<2x512xf32> to vector<2x128xf32>
    %440 = arith.negf %439 : vector<2x128xf32>
    %441 = math.exp %440 : vector<2x128xf32>
    %cst_79 = arith.constant 1.000000e+00 : f32
    %442 = vector.broadcast %cst_79 : f32 to vector<2x128xf32>
    %443 = arith.addf %442, %441 : vector<2x128xf32>
    %444 = arith.divf %442, %443 : vector<2x128xf32>
    %445 = vector.extract_strided_slice %438 {offsets = [0, 128], sizes = [2, 128], strides = [1, 1]} : vector<2x512xf32> to vector<2x128xf32>
    %446 = arith.negf %445 : vector<2x128xf32>
    %447 = math.exp %446 : vector<2x128xf32>
    %cst_80 = arith.constant 1.000000e+00 : f32
    %448 = vector.broadcast %cst_80 : f32 to vector<2x128xf32>
    %449 = arith.addf %448, %447 : vector<2x128xf32>
    %450 = arith.divf %448, %449 : vector<2x128xf32>
    %451 = vector.extract_strided_slice %438 {offsets = [0, 256], sizes = [2, 128], strides = [1, 1]} : vector<2x512xf32> to vector<2x128xf32>
    %452 = math.tanh %451 : vector<2x128xf32>
    %453 = vector.extract_strided_slice %438 {offsets = [0, 384], sizes = [2, 128], strides = [1, 1]} : vector<2x512xf32> to vector<2x128xf32>
    %454 = arith.negf %453 : vector<2x128xf32>
    %455 = math.exp %454 : vector<2x128xf32>
    %cst_81 = arith.constant 1.000000e+00 : f32
    %456 = vector.broadcast %cst_81 : f32 to vector<2x128xf32>
    %457 = arith.addf %456, %455 : vector<2x128xf32>
    %458 = arith.divf %456, %457 : vector<2x128xf32>
    %459 = arith.mulf %450, %432 : vector<2x128xf32>
    %460 = arith.mulf %444, %452 : vector<2x128xf32>
    %461 = arith.addf %459, %460 : vector<2x128xf32>
    %462 = math.tanh %461 : vector<2x128xf32>
    %463 = arith.mulf %458, %462 : vector<2x128xf32>
    %464 = vector.extract_strided_slice %258 {offsets = [14, 0], sizes = [2, 512], strides = [1, 1]} : vector<16x512xf32> to vector<2x512xf32>
    %465 = arith.truncf %463 : vector<2x128xf32> to vector<2x128xbf16>
    %cst_82 = arith.constant dense<0.000000e+00> : vector<2x512xf32>
    %466 = tpu.matmul %465, %253, %cst_82 {dimension_numbers = #tpu.dot_dimension_numbers<[1], [0], [0], [1], [0, 0, 1, 1], [], []>} : vector<2x128xbf16>, vector<128x512xbf16>, vector<2x512xf32> -> vector<2x512xf32>
    %467 = arith.addf %464, %466 : vector<2x512xf32>
    %468 = vector.extract_strided_slice %467 {offsets = [0, 0], sizes = [2, 128], strides = [1, 1]} : vector<2x512xf32> to vector<2x128xf32>
    %469 = arith.negf %468 : vector<2x128xf32>
    %470 = math.exp %469 : vector<2x128xf32>
    %cst_83 = arith.constant 1.000000e+00 : f32
    %471 = vector.broadcast %cst_83 : f32 to vector<2x128xf32>
    %472 = arith.addf %471, %470 : vector<2x128xf32>
    %473 = arith.divf %471, %472 : vector<2x128xf32>
    %474 = vector.extract_strided_slice %467 {offsets = [0, 128], sizes = [2, 128], strides = [1, 1]} : vector<2x512xf32> to vector<2x128xf32>
    %475 = arith.negf %474 : vector<2x128xf32>
    %476 = math.exp %475 : vector<2x128xf32>
    %cst_84 = arith.constant 1.000000e+00 : f32
    %477 = vector.broadcast %cst_84 : f32 to vector<2x128xf32>
    %478 = arith.addf %477, %476 : vector<2x128xf32>
    %479 = arith.divf %477, %478 : vector<2x128xf32>
    %480 = vector.extract_strided_slice %467 {offsets = [0, 256], sizes = [2, 128], strides = [1, 1]} : vector<2x512xf32> to vector<2x128xf32>
    %481 = math.tanh %480 : vector<2x128xf32>
    %482 = vector.extract_strided_slice %467 {offsets = [0, 384], sizes = [2, 128], strides = [1, 1]} : vector<2x512xf32> to vector<2x128xf32>
    %483 = arith.negf %482 : vector<2x128xf32>
    %484 = math.exp %483 : vector<2x128xf32>
    %cst_85 = arith.constant 1.000000e+00 : f32
    %485 = vector.broadcast %cst_85 : f32 to vector<2x128xf32>
    %486 = arith.addf %485, %484 : vector<2x128xf32>
    %487 = arith.divf %485, %486 : vector<2x128xf32>
    %488 = arith.mulf %479, %461 : vector<2x128xf32>
    %489 = arith.mulf %473, %481 : vector<2x128xf32>
    %490 = arith.addf %488, %489 : vector<2x128xf32>
    %491 = math.tanh %490 : vector<2x128xf32>
    %492 = arith.mulf %487, %491 : vector<2x128xf32>
    %493 = tpu.concatenate %289, %318, %347, %376, %405, %434, %463, %492 in 0 : vector<2x128xf32>, vector<2x128xf32>, vector<2x128xf32>, vector<2x128xf32>, vector<2x128xf32>, vector<2x128xf32>, vector<2x128xf32>, vector<2x128xf32> -> vector<16x128xf32>
    %494 = arith.truncf %493 : vector<16x128xf32> to vector<16x128xbf16>
    %c0_86 = arith.constant 0 : index
    %c0_87 = arith.constant 0 : index
    %495 = vector.load %arg4[%c0_86, %c0_87] : memref<128x256xbf16, #tpu.memory_space<vmem>>, vector<128x256xbf16>
    %cst_88 = arith.constant dense<0.000000e+00> : vector<16x256xf32>
    %496 = tpu.matmul %494, %495, %cst_88 {dimension_numbers = #tpu.dot_dimension_numbers<[1], [0], [0], [1], [0, 0, 1, 1], [], []>} : vector<16x128xbf16>, vector<128x256xbf16>, vector<16x256xf32> -> vector<16x256xf32>
    %c0_89 = arith.constant 0 : index
    %c0_90 = arith.constant 0 : index
    %497 = vector.load %arg5[%c0_89, %c0_90] : memref<1x256xf32, #tpu.memory_space<vmem>>, vector<1x256xf32>
    %498 = vector.broadcast %497 : vector<1x256xf32> to vector<16x256xf32>
    %499 = arith.addf %496, %498 : vector<16x256xf32>
    %cst_91 = arith.constant dense<0xFF800000> : vector<16xf32>
    %500 = vector.multi_reduction <maximumf>, %499, %cst_91 [1] : vector<16x256xf32> to vector<16xf32>
    %501 = vector.shape_cast %500 : vector<16xf32> to vector<16x1xf32>
    %502 = vector.broadcast %501 : vector<16x1xf32> to vector<16x256xf32>
    %503 = arith.subf %499, %502 : vector<16x256xf32>
    %504 = math.exp %503 : vector<16x256xf32>
    %cst_92 = arith.constant dense<0.000000e+00> : vector<16xf32>
    %505 = vector.multi_reduction <add>, %504, %cst_92 [1] : vector<16x256xf32> to vector<16xf32>
    %506 = vector.shape_cast %505 : vector<16xf32> to vector<16x1xf32>
    %507 = math.log %506 : vector<16x1xf32>
    %508 = arith.addf %501, %507 : vector<16x1xf32>
    %c0_93 = arith.constant 0 : index
    %c0_94 = arith.constant 0 : index
    %c0_95 = arith.constant 0 : index
    %509 = vector.load %arg2[%c0_93, %c0_94, %c0_95] : memref<1x16x1xi32, #tpu.memory_space<vmem>>, vector<1x16x1xi32>
    %510 = vector.shape_cast %509 : vector<1x16x1xi32> to vector<16x1xi32>
    %511 = vector.broadcast %510 : vector<16x1xi32> to vector<16x256xi32>
    %512 = arith.cmpi eq, %2, %511 : vector<16x256xi32>
    %cst_96 = arith.constant 0.000000e+00 : f32
    %513 = vector.broadcast %cst_96 : f32 to vector<16x256xf32>
    %514 = arith.select %512, %499, %513 : vector<16x256xi1>, vector<16x256xf32>
    %cst_97 = arith.constant dense<0.000000e+00> : vector<16xf32>
    %515 = vector.multi_reduction <add>, %514, %cst_97 [1] : vector<16x256xf32> to vector<16xf32>
    %516 = vector.shape_cast %515 : vector<16xf32> to vector<16x1xf32>
    %517 = arith.subf %508, %516 : vector<16x1xf32>
    %cst_98 = arith.constant dense<0.000000e+00> : vector<1xf32>
    %518 = vector.multi_reduction <add>, %517, %cst_98 [0] : vector<16x1xf32> to vector<1xf32>
    %519 = vector.shape_cast %518 : vector<1xf32> to vector<1x1xf32>
    %c0_99 = arith.constant 0 : index
    %c0_100 = arith.constant 0 : index
    %520 = vector.load %arg12[%c0_99, %c0_100] : memref<1x1xf32, #tpu.memory_space<vmem>>, vector<1x1xf32>
    tpu.vector_store %arg12[%c0_99, %c0_100], %519 {strides = array<i32>} : memref<1x1xf32, #tpu.memory_space<vmem>>, vector<1x1xf32>,
    return
  }
  func.func @transform_0(%arg0: i32) -> (i32, i32, i32) {
    %c0_i32 = arith.constant 0 : i32
    %c0_i32_0 = arith.constant 0 : i32
    %c0_i32_1 = arith.constant 0 : i32
    return %arg0, %c0_i32, %c0_i32_0 : i32, i32, i32
  }
  func.func @transform_1(%arg0: i32) -> (i32, i32, i32) {
    %c0_i32 = arith.constant 0 : i32
    %c0_i32_0 = arith.constant 0 : i32
    %c0_i32_1 = arith.constant 0 : i32
    return %arg0, %c0_i32, %c0_i32_0 : i32, i32, i32
  }
  func.func @transform_2(%arg0: i32) -> (i32, i32) {
    %c0_i32 = arith.constant 0 : i32
    %c0_i32_0 = arith.constant 0 : i32
    %c0_i32_1 = arith.constant 0 : i32
    return %c0_i32, %c0_i32_0 : i32, i32
  }
  func.func @transform_3(%arg0: i32) -> (i32, i32) {
    %c0_i32 = arith.constant 0 : i32
    %c0_i32_0 = arith.constant 0 : i32
    %c0_i32_1 = arith.constant 0 : i32
    return %c0_i32, %c0_i32_0 : i32, i32
  }
  func.func @transform_4(%arg0: i32) -> (i32, i32) {
    %c0_i32 = arith.constant 0 : i32
    %c0_i32_0 = arith.constant 0 : i32
    %c0_i32_1 = arith.constant 0 : i32
    return %c0_i32, %c0_i32_0 : i32, i32
  }
  func.func @transform_5(%arg0: i32) -> (i32, i32) {
    %c0_i32 = arith.constant 0 : i32
    %c0_i32_0 = arith.constant 0 : i32
    %c0_i32_1 = arith.constant 0 : i32
    return %c0_i32, %c0_i32_0 : i32, i32
  }
  func.func @transform_6(%arg0: i32) -> (i32, i32) {
    %c0_i32 = arith.constant 0 : i32
    %c0_i32_0 = arith.constant 0 : i32
    %c0_i32_1 = arith.constant 0 : i32
    return %c0_i32, %c0_i32_0 : i32, i32
  }
  func.func @transform_7(%arg0: i32) -> (i32, i32) {
    %c0_i32 = arith.constant 0 : i32
    %c0_i32_0 = arith.constant 0 : i32
    %c0_i32_1 = arith.constant 0 : i32
    return %c0_i32, %c0_i32_0 : i32, i32
  }
  func.func @transform_8(%arg0: i32) -> (i32, i32) {
    %c0_i32 = arith.constant 0 : i32
    %c0_i32_0 = arith.constant 0 : i32
    %c0_i32_1 = arith.constant 0 : i32
    return %c0_i32, %c0_i32_0 : i32, i32
  }
  func.func @transform_9(%arg0: i32) -> (i32, i32) {
    %c0_i32 = arith.constant 0 : i32
    %c0_i32_0 = arith.constant 0 : i32
    %c0_i32_1 = arith.constant 0 : i32
    return %c0_i32, %c0_i32_0 : i32, i32
  }
  func.func @transform_10(%arg0: i32) -> (i32, i32) {
    %c0_i32 = arith.constant 0 : i32
    %c0_i32_0 = arith.constant 0 : i32
    %c0_i32_1 = arith.constant 0 : i32
    return %c0_i32, %c0_i32_0 : i32, i32
  }
  func.func @transform_11(%arg0: i32) -> (i32, i32) {
    %c0_i32 = arith.constant 0 : i32
    %c0_i32_0 = arith.constant 0 : i32
    return %arg0, %c0_i32 : i32, i32
  }
}

</mosaic_0001>

<llo_original>
// kernel: rnn_model_forward.1
$region0: #{rnn_model_forward.1}
  #allocation0 [shape = 'u32[]', space=smem, size = 0x4, offset = 0x4, fixed_abs, tag = 'smem constant byte address 0x4 - core index']
  #allocation1 [shape = 'u32[144,128]{1,0:T(1,128)}', space=vmem, size = 0x12000, scoped, tag = 'internal scratch']
  %s0 = inlined_call_operand.vmem [shape: s32[1,16,1], index: 0, kind: input, shape index: {}]
  %s1 = inlined_call_operand.vmem [shape: s32[1,16,1], index: 1, kind: input, shape index: {}]
  %s2 = inlined_call_operand.vmem [shape: bf16[256,128], index: 2, kind: input, shape index: {}]
  %s3 = inlined_call_operand.vmem [shape: bf16[128,256], index: 3, kind: input, shape index: {}]
  %s4 = inlined_call_operand.vmem [shape: f32[1,256], index: 4, kind: input, shape index: {}]
  %s5 = inlined_call_operand.vmem [shape: bf16[128,512], index: 5, kind: input, shape index: {}]
  %s6 = inlined_call_operand.vmem [shape: bf16[128,512], index: 6, kind: input, shape index: {}]
  %s7 = inlined_call_operand.vmem [shape: f32[1,512], index: 7, kind: input, shape index: {}]
  %s8 = inlined_call_operand.vmem [shape: bf16[128,512], index: 8, kind: input, shape index: {}]
  %s9 = inlined_call_operand.vmem [shape: bf16[128,512], index: 9, kind: input, shape index: {}]
  %s10 = inlined_call_operand.vmem [shape: f32[1,512], index: 10, kind: input, shape index: {}]
  %s11 = inlined_call_operand.hbm [shape: f32[1,1], index: 11, kind: output, shape index: {}]
  %s12 = sld [smem:[#allocation0]]
  $region54: #{rnn_model_forward.1} parent=0
    _
  %s14 = ssub.s32 1, %s12
  %s15 = scalar_select 0, %s14, %s12
  $region1: #{rnn_model_forward.1} parent=0
    #allocation2 [shape = 'u8[512]{0}', space=vmem, size = 0x400, scoped, tag = 'output window, operand 0, single buffered']
    #allocation3 [shape = 's32[1]{0}', space=sflag, size = 0x4, scoped, tag = 'scoped memory for rnn_model_forward.1']
    %16 = vsyncpa [#allocation3], 0
    // Predicated region
    $region2: #{rnn_model_forward.1} parent=1 // pred_check
      _
    $region3: #{rnn_model_forward.1} parent=1 // pred_check_branch
      %18 = sbr.rel (0) target = $region5
    $region4: #{rnn_model_forward.1} parent=1 // pred_region
      _
    $region5: #{rnn_model_forward.1} parent=1 // pred_fallthru
      _
    // Predicated region
    $region6: #{rnn_model_forward.1} parent=1 // pred_check
      _
    $region7: #{rnn_model_forward.1} parent=1 // pred_check_branch
      %20 = sbr.rel (0) target = $region9
    $region8: #{rnn_model_forward.1} parent=1 // pred_region
      _
    $region9: #{rnn_model_forward.1} parent=1 // pred_fallthru
      _
    // Predicated region
    $region10: #{rnn_model_forward.1} parent=1 // pred_check
      _
    $region11: #{rnn_model_forward.1} parent=1 // pred_check_branch
      %22 = sbr.rel (0) target = $region13
    $region12: #{rnn_model_forward.1} parent=1 // pred_region
      _
    $region13: #{rnn_model_forward.1} parent=1 // pred_fallthru
      _
    // Predicated region
    $region14: #{rnn_model_forward.1} parent=1 // pred_check
      _
    $region15: #{rnn_model_forward.1} parent=1 // pred_check_branch
      %24 = sbr.rel (0) target = $region17
    $region16: #{rnn_model_forward.1} parent=1 // pred_region
      _
    $region17: #{rnn_model_forward.1} parent=1 // pred_fallthru
      _
    // Predicated region
    $region18: #{rnn_model_forward.1} parent=1 // pred_check
      _
    $region19: #{rnn_model_forward.1} parent=1 // pred_check_branch
      %26 = sbr.rel (0) target = $region21
    $region20: #{rnn_model_forward.1} parent=1 // pred_region
      _
    $region21: #{rnn_model_forward.1} parent=1 // pred_fallthru
      _
    // Predicated region
    $region22: #{rnn_model_forward.1} parent=1 // pred_check
      _
    $region23: #{rnn_model_forward.1} parent=1 // pred_check_branch
      %28 = sbr.rel (0) target = $region25
    $region24: #{rnn_model_forward.1} parent=1 // pred_region
      _
    $region25: #{rnn_model_forward.1} parent=1 // pred_fallthru
      _
    // Predicated region
    $region26: #{rnn_model_forward.1} parent=1 // pred_check
      _
    $region27: #{rnn_model_forward.1} parent=1 // pred_check_branch
      %30 = sbr.rel (0) target = $region29
    $region28: #{rnn_model_forward.1} parent=1 // pred_region
      _
    $region29: #{rnn_model_forward.1} parent=1 // pred_fallthru
      _
    // Predicated region
    $region30: #{rnn_model_forward.1} parent=1 // pred_check
      _
    $region31: #{rnn_model_forward.1} parent=1 // pred_check_branch
      %32 = sbr.rel (0) target = $region33
    $region32: #{rnn_model_forward.1} parent=1 // pred_region
      _
    $region33: #{rnn_model_forward.1} parent=1 // pred_fallthru
      _
    // Predicated region
    $region34: #{rnn_model_forward.1} parent=1 // pred_check
      _
    $region35: #{rnn_model_forward.1} parent=1 // pred_check_branch
      %34 = sbr.rel (0) target = $region37
    $region36: #{rnn_model_forward.1} parent=1 // pred_region
      _
    $region37: #{rnn_model_forward.1} parent=1 // pred_fallthru
      _
    // Predicated region
    $region38: #{rnn_model_forward.1} parent=1 // pred_check
      _
    $region39: #{rnn_model_forward.1} parent=1 // pred_check_branch
      %36 = sbr.rel (0) target = $region41
    $region40: #{rnn_model_forward.1} parent=1 // pred_region
      _
    $region41: #{rnn_model_forward.1} parent=1 // pred_fallthru
      _
    // Predicated region
    $region42: #{rnn_model_forward.1} parent=1 // pred_check
      _
    $region43: #{rnn_model_forward.1} parent=1 // pred_check_branch
      %38 = sbr.rel (0) target = $region45
    $region44: #{rnn_model_forward.1} parent=1 // pred_region
      _
    $region45: #{rnn_model_forward.1} parent=1 // pred_fallthru
      _
    %v40 = vld [vmem:[%s0] sm:$0xff]
    %v41 = vld [vmem:[%s0 + $0x8] sm:$0xff]
    %v42 = vlaneseq
    %v43 = vand.u32 %v42, 127
    %v44 = vadd.s32 %v43, 128
    %45 = vset.pattern.permute.xlu0 0
    %46 = vperm.xlu0 %45, %v40
    %v47 = vpop.permute.xlu0 %46
    %48 = vset.pattern.permute.xlu0 0
    %49 = vperm.xlu0 %48, %v41
    %v50 = vpop.permute.xlu0 %49
    %vm51 = vcmp.eq.s32.totalorder %v43, %v47
    %vm52 = vcmp.eq.s32.totalorder %v44, %v47
    %vm53 = vcmp.eq.s32.totalorder %v43, %v50
    %vm54 = vcmp.eq.s32.totalorder %v44, %v50
    %v55 = vsel %vm51, 1, 0
    %v56 = vsel %vm52, 1, 0
    %v57 = vsel %vm53, 1, 0
    %v58 = vsel %vm54, 1, 0
    %v59 = vcvt.s32.f32 %v55
    %v60 = vcvt.s32.f32 %v56
    %v61 = vcvt.s32.f32 %v57
    %v62 = vcvt.s32.f32 %v58
    %v63 = vpack.c.bf16 %v61, %v59
    %v64 = vpack.c.bf16 %v62, %v60
    %v65 = vld [vmem:[%s2] sm:$0xf]
    %v66 = vld [vmem:[%s2 + $0x4] sm:$0xf]
    %v67 = vld [vmem:[%s2 + $0x8] sm:$0xf]
    %v68 = vld [vmem:[%s2 + $0xc] sm:$0xf]
    %v69 = vld [vmem:[%s2 + $0x10] sm:$0xf]
    %v70 = vld [vmem:[%s2 + $0x14] sm:$0xf]
    %v71 = vld [vmem:[%s2 + $0x18] sm:$0xf]
    %v72 = vld [vmem:[%s2 + $0x1c] sm:$0xf]
    %v73 = vld [vmem:[%s2 + $0x20] sm:$0xf]
    %v74 = vld [vmem:[%s2 + $0x24] sm:$0xf]
    %v75 = vld [vmem:[%s2 + $0x28] sm:$0xf]
    %v76 = vld [vmem:[%s2 + $0x2c] sm:$0xf]
    %v77 = vld [vmem:[%s2 + $0x30] sm:$0xf]
    %v78 = vld [vmem:[%s2 + $0x34] sm:$0xf]
    %v79 = vld [vmem:[%s2 + $0x38] sm:$0xf]
    %v80 = vld [vmem:[%s2 + $0x3c] sm:$0xf]
    %v81 = vld [vmem:[%s2 + $0x40] sm:$0xf]
    %v82 = vld [vmem:[%s2 + $0x44] sm:$0xf]
    %v83 = vld [vmem:[%s2 + $0x48] sm:$0xf]
    %v84 = vld [vmem:[%s2 + $0x4c] sm:$0xf]
    %v85 = vld [vmem:[%s2 + $0x50] sm:$0xf]
    %v86 = vld [vmem:[%s2 + $0x54] sm:$0xf]
    %v87 = vld [vmem:[%s2 + $0x58] sm:$0xf]
    %v88 = vld [vmem:[%s2 + $0x5c] sm:$0xf]
    %v89 = vld [vmem:[%s2 + $0x60] sm:$0xf]
    %v90 = vld [vmem:[%s2 + $0x64] sm:$0xf]
    %v91 = vld [vmem:[%s2 + $0x68] sm:$0xf]
    %v92 = vld [vmem:[%s2 + $0x6c] sm:$0xf]
    %v93 = vld [vmem:[%s2 + $0x70] sm:$0xf]
    %v94 = vld [vmem:[%s2 + $0x74] sm:$0xf]
    %v95 = vld [vmem:[%s2 + $0x78] sm:$0xf]
    %v96 = vld [vmem:[%s2 + $0x7c] sm:$0xf]
    %v129 = vunpack.c.l.b16 %v65
    %v130 = vunpack.c.l.b16 %v66
    %v131 = vunpack.c.l.b16 %v67
    %v132 = vunpack.c.l.b16 %v68
    %v133 = vunpack.c.l.b16 %v69
    %v134 = vunpack.c.l.b16 %v70
    %v135 = vunpack.c.l.b16 %v71
    %v136 = vunpack.c.l.b16 %v72
    %v137 = vunpack.c.l.b16 %v73
    %v138 = vunpack.c.l.b16 %v74
    %v139 = vunpack.c.l.b16 %v75
    %v140 = vunpack.c.l.b16 %v76
    %v141 = vunpack.c.l.b16 %v77
    %v142 = vunpack.c.l.b16 %v78
    %v143 = vunpack.c.l.b16 %v79
    %v144 = vunpack.c.l.b16 %v80
    %v145 = vunpack.c.l.b16 %v81
    %v146 = vunpack.c.l.b16 %v82
    %v147 = vunpack.c.l.b16 %v83
    %v148 = vunpack.c.l.b16 %v84
    %v149 = vunpack.c.l.b16 %v85
    %v150 = vunpack.c.l.b16 %v86
    %v151 = vunpack.c.l.b16 %v87
    %v152 = vunpack.c.l.b16 %v88
    %v153 = vunpack.c.l.b16 %v89
    %v154 = vunpack.c.l.b16 %v90
    %v155 = vunpack.c.l.b16 %v91
    %v156 = vunpack.c.l.b16 %v92
    %v157 = vunpack.c.l.b16 %v93
    %v158 = vunpack.c.l.b16 %v94
    %v159 = vunpack.c.l.b16 %v95
    %v160 = vunpack.c.l.b16 %v96
    %v161 = vpack.c.b16 %v130, %v129
    %v162 = vpack.c.b16 %v132, %v131
    %v163 = vpack.c.b16 %v134, %v133
    %v164 = vpack.c.b16 %v136, %v135
    %v165 = vpack.c.b16 %v138, %v137
    %v166 = vpack.c.b16 %v140, %v139
    %v167 = vpack.c.b16 %v142, %v141
    %v168 = vpack.c.b16 %v144, %v143
    %v169 = vpack.c.b16 %v146, %v145
    %v170 = vpack.c.b16 %v148, %v147
    %v171 = vpack.c.b16 %v150, %v149
    %v172 = vpack.c.b16 %v152, %v151
    %v173 = vpack.c.b16 %v154, %v153
    %v174 = vpack.c.b16 %v156, %v155
    %v175 = vpack.c.b16 %v158, %v157
    %v176 = vpack.c.b16 %v160, %v159
    %193 = vmatprep.subr.bf16.mxu0 0
    %194 = vmatpush1.bf16.msra.mxu0 %v161
    %195 = vmatprep.subr.bf16.mxu0 0
    %196 = vmatpush1.bf16.msra.mxu0 %v162
    %197 = vmatprep.subr.bf16.mxu0 0
    %198 = vmatpush1.bf16.msra.mxu0 %v163
    %199 = vmatprep.subr.bf16.mxu0 0
    %200 = vmatpush1.bf16.msra.mxu0 %v164
    %201 = vmatprep.subr.bf16.mxu0 0
    %202 = vmatpush1.bf16.msra.mxu0 %v165
    %203 = vmatprep.subr.bf16.mxu0 0
    %204 = vmatpush1.bf16.msra.mxu0 %v166
    %205 = vmatprep.subr.bf16.mxu0 0
    %206 = vmatpush1.bf16.msra.mxu0 %v167
    %207 = vmatprep.subr.bf16.mxu0 0
    %208 = vmatpush1.bf16.msra.mxu0 %v168
    %209 = vmatprep.subr.bf16.mxu0 0
    %210 = vmatpush1.bf16.msra.mxu0 %v169
    %211 = vmatprep.subr.bf16.mxu0 0
    %212 = vmatpush1.bf16.msra.mxu0 %v170
    %213 = vmatprep.subr.bf16.mxu0 0
    %214 = vmatpush1.bf16.msra.mxu0 %v171
    %215 = vmatprep.subr.bf16.mxu0 0
    %216 = vmatpush1.bf16.msra.mxu0 %v172
    %217 = vmatprep.subr.bf16.mxu0 0
    %218 = vmatpush1.bf16.msra.mxu0 %v173
    %219 = vmatprep.subr.bf16.mxu0 0
    %220 = vmatpush1.bf16.msra.mxu0 %v174
    %221 = vmatprep.subr.bf16.mxu0 0
    %222 = vmatpush1.bf16.msra.mxu0 %v175
    %223 = vmatprep.subr.bf16.mxu0 0
    %224 = vmatpush1.bf16.msra.mxu0 %v176
    %225 = vmatprep.mubr.bf16.mxu0 %v64
    %226 = vmatmul.mubr.bf16.gmra.mrb[0].mxu0 %v63
    %v227 = vpop.f32.mrb[0].mxu0
    %v228 = vadd.f32 0.0, %v227
    %v229 = vpop.f32.mrb[0].mxu0
    %v230 = vpop.f32.mrb[0].mxu0
    %v231 = vadd.f32 0.0, %v230
    %v232 = vpop.f32.mrb[0].mxu0
    %233 = vdwg.mxu0
    %v234 = vld [vmem:[%s5] sm:$0xff]
    %v235 = vld [vmem:[%s5 + $0x8] sm:$0xff]
    %v236 = vld [vmem:[%s5 + $0x10] sm:$0xff]
    %v237 = vld [vmem:[%s5 + $0x18] sm:$0xff]
    %v238 = vld [vmem:[%s5 + $0x20] sm:$0xff]
    %v239 = vld [vmem:[%s5 + $0x28] sm:$0xff]
    %v240 = vld [vmem:[%s5 + $0x30] sm:$0xff]
    %v241 = vld [vmem:[%s5 + $0x38] sm:$0xff]
    %v242 = vld [vmem:[%s5 + $0x40] sm:$0xff]
    %v243 = vld [vmem:[%s5 + $0x48] sm:$0xff]
    %v244 = vld [vmem:[%s5 + $0x50] sm:$0xff]
    %v245 = vld [vmem:[%s5 + $0x58] sm:$0xff]
    %v246 = vld [vmem:[%s5 + $0x60] sm:$0xff]
    %v247 = vld [vmem:[%s5 + $0x68] sm:$0xff]
    %v248 = vld [vmem:[%s5 + $0x70] sm:$0xff]
    %v249 = vld [vmem:[%s5 + $0x78] sm:$0xff]
    %v250 = vld [vmem:[%s5 + $0x80] sm:$0xff]
    %v251 = vld [vmem:[%s5 + $0x88] sm:$0xff]
    %v252 = vld [vmem:[%s5 + $0x90] sm:$0xff]
    %v253 = vld [vmem:[%s5 + $0x98] sm:$0xff]
    %v254 = vld [vmem:[%s5 + $0xa0] sm:$0xff]
    %v255 = vld [vmem:[%s5 + $0xa8] sm:$0xff]
    %v256 = vld [vmem:[%s5 + $0xb0] sm:$0xff]
    %v257 = vld [vmem:[%s5 + $0xb8] sm:$0xff]
    %v258 = vld [vmem:[%s5 + $0xc0] sm:$0xff]
    %v259 = vld [vmem:[%s5 + $0xc8] sm:$0xff]
    %v260 = vld [vmem:[%s5 + $0xd0] sm:$0xff]
    %v261 = vld [vmem:[%s5 + $0xd8] sm:$0xff]
    %v262 = vld [vmem:[%s5 + $0xe0] sm:$0xff]
    %v263 = vld [vmem:[%s5 + $0xe8] sm:$0xff]
    %v264 = vld [vmem:[%s5 + $0xf0] sm:$0xff]
    %v265 = vld [vmem:[%s5 + $0xf8] sm:$0xff]
    %v266 = vld [vmem:[%s6] sm:$0xff]
    %v267 = vld [vmem:[%s6 + $0x8] sm:$0xff]
    %v268 = vld [vmem:[%s6 + $0x10] sm:$0xff]
    %v269 = vld [vmem:[%s6 + $0x18] sm:$0xff]
    %v270 = vld [vmem:[%s6 + $0x20] sm:$0xff]
    %v271 = vld [vmem:[%s6 + $0x28] sm:$0xff]
    %v272 = vld [vmem:[%s6 + $0x30] sm:$0xff]
    %v273 = vld [vmem:[%s6 + $0x38] sm:$0xff]
    %v274 = vld [vmem:[%s6 + $0x40] sm:$0xff]
    %v275 = vld [vmem:[%s6 + $0x48] sm:$0xff]
    %v276 = vld [vmem:[%s6 + $0x50] sm:$0xff]
    %v277 = vld [vmem:[%s6 + $0x58] sm:$0xff]
    %v278 = vld [vmem:[%s6 + $0x60] sm:$0xff]
    %v279 = vld [vmem:[%s6 + $0x68] sm:$0xff]
    %v280 = vld [vmem:[%s6 + $0x70] sm:$0xff]
    %v281 = vld [vmem:[%s6 + $0x78] sm:$0xff]
    %v282 = vld [vmem:[%s6 + $0x80] sm:$0xff]
    %v283 = vld [vmem:[%s6 + $0x88] sm:$0xff]
    %v284 = vld [vmem:[%s6 + $0x90] sm:$0xff]
    %v285 = vld [vmem:[%s6 + $0x98] sm:$0xff]
    %v286 = vld [vmem:[%s6 + $0xa0] sm:$0xff]
    %v287 = vld [vmem:[%s6 + $0xa8] sm:$0xff]
    %v288 = vld [vmem:[%s6 + $0xb0] sm:$0xff]
    %v289 = vld [vmem:[%s6 + $0xb8] sm:$0xff]
    %v290 = vld [vmem:[%s6 + $0xc0] sm:$0xff]
    %v291 = vld [vmem:[%s6 + $0xc8] sm:$0xff]
    %v292 = vld [vmem:[%s6 + $0xd0] sm:$0xff]
    %v293 = vld [vmem:[%s6 + $0xd8] sm:$0xff]
    %v294 = vld [vmem:[%s6 + $0xe0] sm:$0xff]
    %v295 = vld [vmem:[%s6 + $0xe8] sm:$0xff]
    %v296 = vld [vmem:[%s6 + $0xf0] sm:$0xff]
    %v297 = vld [vmem:[%s6 + $0xf8] sm:$0xff]
    %v298 = vld [vmem:[%s7] sm:$0xf]
    %v299 = vpack.c.bf16 %v231, %v228
    %v301 = vlaneseq
    %v302 = vshrl.u32 %v301, 7
    %v303 = vsub.s32 0, %v302
    %v304 = vrot.slane %v298, %v303
    %v305 = vlaneseq
    %v306 = vshrl.u32 %v305, 7
    %v307 = vsub.s32 1, %v306
    %v308 = vrot.slane %v298, %v307
    %v309 = vlaneseq
    %v310 = vshrl.u32 %v309, 7
    %v311 = vsub.s32 2, %v310
    %v312 = vrot.slane %v298, %v311
    %v313 = vlaneseq
    %v314 = vshrl.u32 %v313, 7
    %v315 = vsub.s32 3, %v314
    %v316 = vrot.slane %v298, %v315
    %v353 = vunpack.c.l.b16 %v234
    %v354 = vunpack.c.h.b16 %v234
    %v355 = vunpack.c.l.b16 %v235
    %v356 = vunpack.c.h.b16 %v235
    %v357 = vunpack.c.l.b16 %v236
    %v358 = vunpack.c.h.b16 %v236
    %v359 = vunpack.c.l.b16 %v237
    %v360 = vunpack.c.h.b16 %v237
    %v361 = vunpack.c.l.b16 %v238
    %v362 = vunpack.c.h.b16 %v238
    %v363 = vunpack.c.l.b16 %v239
    %v364 = vunpack.c.h.b16 %v239
    %v365 = vunpack.c.l.b16 %v240
    %v366 = vunpack.c.h.b16 %v240
    %v367 = vunpack.c.l.b16 %v241
    %v368 = vunpack.c.h.b16 %v241
    %v369 = vunpack.c.l.b16 %v242
    %v370 = vunpack.c.h.b16 %v242
    %v371 = vunpack.c.l.b16 %v243
    %v372 = vunpack.c.h.b16 %v243
    %v373 = vunpack.c.l.b16 %v244
    %v374 = vunpack.c.h.b16 %v244
    %v375 = vunpack.c.l.b16 %v245
    %v376 = vunpack.c.h.b16 %v245
    %v377 = vunpack.c.l.b16 %v246
    %v378 = vunpack.c.h.b16 %v246
    %v379 = vunpack.c.l.b16 %v247
    %v380 = vunpack.c.h.b16 %v247
    %v381 = vunpack.c.l.b16 %v248
    %v382 = vunpack.c.h.b16 %v248
    %v383 = vunpack.c.l.b16 %v249
    %v384 = vunpack.c.h.b16 %v249
    %v385 = vunpack.c.l.b16 %v250
    %v386 = vunpack.c.h.b16 %v250
    %v387 = vunpack.c.l.b16 %v251
    %v388 = vunpack.c.h.b16 %v251
    %v389 = vunpack.c.l.b16 %v252
    %v390 = vunpack.c.h.b16 %v252
    %v391 = vunpack.c.l.b16 %v253
    %v392 = vunpack.c.h.b16 %v253
    %v393 = vunpack.c.l.b16 %v254
    %v394 = vunpack.c.h.b16 %v254
    %v395 = vunpack.c.l.b16 %v255
    %v396 = vunpack.c.h.b16 %v255
    %v397 = vunpack.c.l.b16 %v256
    %v398 = vunpack.c.h.b16 %v256
    %v399 = vunpack.c.l.b16 %v257
    %v400 = vunpack.c.h.b16 %v257
    %v401 = vunpack.c.l.b16 %v258
    %v402 = vunpack.c.h.b16 %v258
    %v403 = vunpack.c.l.b16 %v259
    %v404 = vunpack.c.h.b16 %v259
    %v405 = vunpack.c.l.b16 %v260
    %v406 = vunpack.c.h.b16 %v260
    %v407 = vunpack.c.l.b16 %v261
    %v408 = vunpack.c.h.b16 %v261
    %v409 = vunpack.c.l.b16 %v262
    %v410 = vunpack.c.h.b16 %v262
    %v411 = vunpack.c.l.b16 %v263
    %v412 = vunpack.c.h.b16 %v263
    %v413 = vunpack.c.l.b16 %v264
    %v414 = vunpack.c.h.b16 %v264
    %v415 = vunpack.c.l.b16 %v265
    %v416 = vunpack.c.h.b16 %v265
    %v417 = vpack.c.b16 %v357, %v353
    %v418 = vpack.c.b16 %v358, %v354
    %v419 = vpack.c.b16 %v359, %v355
    %v420 = vpack.c.b16 %v360, %v356
    %v421 = vpack.c.b16 %v365, %v361
    %v422 = vpack.c.b16 %v366, %v362
    %v423 = vpack.c.b16 %v367, %v363
    %v424 = vpack.c.b16 %v368, %v364
    %v425 = vpack.c.b16 %v373, %v369
    %v426 = vpack.c.b16 %v374, %v370
    %v427 = vpack.c.b16 %v375, %v371
    %v428 = vpack.c.b16 %v376, %v372
    %v429 = vpack.c.b16 %v381, %v377
    %v430 = vpack.c.b16 %v382, %v378
    %v431 = vpack.c.b16 %v383, %v379
    %v432 = vpack.c.b16 %v384, %v380
    %v433 = vpack.c.b16 %v389, %v385
    %v434 = vpack.c.b16 %v390, %v386
    %v435 = vpack.c.b16 %v391, %v387
    %v436 = vpack.c.b16 %v392, %v388
    %v437 = vpack.c.b16 %v397, %v393
    %v438 = vpack.c.b16 %v398, %v394
    %v439 = vpack.c.b16 %v399, %v395
    %v440 = vpack.c.b16 %v400, %v396
    %v441 = vpack.c.b16 %v405, %v401
    %v442 = vpack.c.b16 %v406, %v402
    %v443 = vpack.c.b16 %v407, %v403
    %v444 = vpack.c.b16 %v408, %v404
    %v445 = vpack.c.b16 %v413, %v409
    %v446 = vpack.c.b16 %v414, %v410
    %v447 = vpack.c.b16 %v415, %v411
    %v448 = vpack.c.b16 %v416, %v412
    %481 = vmatprep.subr.bf16.mxu0 %v418
    %482 = vmatpush1.bf16.msra.mxu0 %v417
    %483 = vmatprep.subr.bf16.mxu0 %v422
    %484 = vmatpush1.bf16.msra.mxu0 %v421
    %485 = vmatprep.subr.bf16.mxu0 %v426
    %486 = vmatpush1.bf16.msra.mxu0 %v425
    %487 = vmatprep.subr.bf16.mxu0 %v430
    %488 = vmatpush1.bf16.msra.mxu0 %v429
    %489 = vmatprep.subr.bf16.mxu0 %v434
    %490 = vmatpush1.bf16.msra.mxu0 %v433
    %491 = vmatprep.subr.bf16.mxu0 %v438
    %492 = vmatpush1.bf16.msra.mxu0 %v437
    %493 = vmatprep.subr.bf16.mxu0 %v442
    %494 = vmatpush1.bf16.msra.mxu0 %v441
    %495 = vmatprep.subr.bf16.mxu0 %v446
    %496 = vmatpush1.bf16.msra.mxu0 %v445
    %497 = vmatprep.subr.bf16.mxu0 0
    %498 = vmatpush1.bf16.msra.mxu0 0
    %499 = vmatprep.subr.bf16.mxu0 0
    %500 = vmatpush1.bf16.msra.mxu0 0
    %501 = vmatprep.subr.bf16.mxu0 0
    %502 = vmatpush1.bf16.msra.mxu0 0
    %503 = vmatprep.subr.bf16.mxu0 0
    %504 = vmatpush1.bf16.msra.mxu0 0
    %505 = vmatprep.subr.bf16.mxu0 0
    %506 = vmatpush1.bf16.msra.mxu0 0
    %507 = vmatprep.subr.bf16.mxu0 0
    %508 = vmatpush1.bf16.msra.mxu0 0
    %509 = vmatprep.subr.bf16.mxu0 0
    %510 = vmatpush1.bf16.msra.mxu0 0
    %511 = vmatprep.subr.bf16.mxu0 0
    %512 = vmatpush1.bf16.msra.mxu0 0
    %513 = vmatprep.mubr.bf16.mxu0 0
    %514 = vmatmul.mubr.bf16.gmra.mrb[0].mxu0 %v299
    %v515 = vpop.f32.mrb[0].mxu0
    %v516 = vadd.f32 %v304, %v515
    %v517 = vpop.f32.mrb[0].mxu0
    %v518 = vadd.f32 %v308, %v517
    %v519 = vpop.f32.mrb[0].mxu0
    %v520 = vadd.f32 %v304, %v519
    %v521 = vpop.f32.mrb[0].mxu0
    %v522 = vadd.f32 %v308, %v521
    %523 = vdwg.mxu0
    %524 = vmatprep.subr.bf16.mxu0 %v420
    %525 = vmatpush1.bf16.msra.mxu0 %v419
    %526 = vmatprep.subr.bf16.mxu0 %v424
    %527 = vmatpush1.bf16.msra.mxu0 %v423
    %528 = vmatprep.subr.bf16.mxu0 %v428
    %529 = vmatpush1.bf16.msra.mxu0 %v427
    %530 = vmatprep.subr.bf16.mxu0 %v432
    %531 = vmatpush1.bf16.msra.mxu0 %v431
    %532 = vmatprep.subr.bf16.mxu0 %v436
    %533 = vmatpush1.bf16.msra.mxu0 %v435
    %534 = vmatprep.subr.bf16.mxu0 %v440
    %535 = vmatpush1.bf16.msra.mxu0 %v439
    %536 = vmatprep.subr.bf16.mxu0 %v444
    %537 = vmatpush1.bf16.msra.mxu0 %v443
    %538 = vmatprep.subr.bf16.mxu0 %v448
    %539 = vmatpush1.bf16.msra.mxu0 %v447
    %540 = vmatprep.subr.bf16.mxu0 0
    %541 = vmatpush1.bf16.msra.mxu0 0
    %542 = vmatprep.subr.bf16.mxu0 0
    %543 = vmatpush1.bf16.msra.mxu0 0
    %544 = vmatprep.subr.bf16.mxu0 0
    %545 = vmatpush1.bf16.msra.mxu0 0
    %546 = vmatprep.subr.bf16.mxu0 0
    %547 = vmatpush1.bf16.msra.mxu0 0
    %548 = vmatprep.subr.bf16.mxu0 0
    %549 = vmatpush1.bf16.msra.mxu0 0
    %550 = vmatprep.subr.bf16.mxu0 0
    %551 = vmatpush1.bf16.msra.mxu0 0
    %552 = vmatprep.subr.bf16.mxu0 0
    %553 = vmatpush1.bf16.msra.mxu0 0
    %554 = vmatprep.subr.bf16.mxu0 0
    %555 = vmatpush1.bf16.msra.mxu0 0
    %556 = vmatprep.mubr.bf16.mxu0 0
    %557 = vmatmul.mubr.bf16.gmra.mrb[0].mxu0 %v299
    %v558 = vpop.f32.mrb[0].mxu0
    %v559 = vadd.f32 %v312, %v558
    %v560 = vpop.f32.mrb[0].mxu0
    %v561 = vadd.f32 %v316, %v560
    %v562 = vpop.f32.mrb[0].mxu0
    %v563 = vadd.f32 %v312, %v562
    %v564 = vpop.f32.mrb[0].mxu0
    %v565 = vadd.f32 %v316, %v564
    %566 = vdwg.mxu0
    %v599 = vunpack.c.l.b16 %v266
    %v600 = vunpack.c.h.b16 %v266
    %v601 = vunpack.c.l.b16 %v267
    %v602 = vunpack.c.h.b16 %v267
    %v603 = vunpack.c.l.b16 %v268
    %v604 = vunpack.c.h.b16 %v268
    %v605 = vunpack.c.l.b16 %v269
    %v606 = vunpack.c.h.b16 %v269
    %v607 = vunpack.c.l.b16 %v270
    %v608 = vunpack.c.h.b16 %v270
    %v609 = vunpack.c.l.b16 %v271
    %v610 = vunpack.c.h.b16 %v271
    %v611 = vunpack.c.l.b16 %v272
    %v612 = vunpack.c.h.b16 %v272
    %v613 = vunpack.c.l.b16 %v273
    %v614 = vunpack.c.h.b16 %v273
    %v615 = vunpack.c.l.b16 %v274
    %v616 = vunpack.c.h.b16 %v274
    %v617 = vunpack.c.l.b16 %v275
    %v618 = vunpack.c.h.b16 %v275
    %v619 = vunpack.c.l.b16 %v276
    %v620 = vunpack.c.h.b16 %v276
    %v621 = vunpack.c.l.b16 %v277
    %v622 = vunpack.c.h.b16 %v277
    %v623 = vunpack.c.l.b16 %v278
    %v624 = vunpack.c.h.b16 %v278
    %v625 = vunpack.c.l.b16 %v279
    %v626 = vunpack.c.h.b16 %v279
    %v627 = vunpack.c.l.b16 %v280
    %v628 = vunpack.c.h.b16 %v280
    %v629 = vunpack.c.l.b16 %v281
    %v630 = vunpack.c.h.b16 %v281
    %v631 = vunpack.c.l.b16 %v282
    %v632 = vunpack.c.h.b16 %v282
    %v633 = vunpack.c.l.b16 %v283
    %v634 = vunpack.c.h.b16 %v283
    %v635 = vunpack.c.l.b16 %v284
    %v636 = vunpack.c.h.b16 %v284
    %v637 = vunpack.c.l.b16 %v285
    %v638 = vunpack.c.h.b16 %v285
    %v639 = vunpack.c.l.b16 %v286
    %v640 = vunpack.c.h.b16 %v286
    %v641 = vunpack.c.l.b16 %v287
    %v642 = vunpack.c.h.b16 %v287
    %v643 = vunpack.c.l.b16 %v288
    %v644 = vunpack.c.h.b16 %v288
    %v645 = vunpack.c.l.b16 %v289
    %v646 = vunpack.c.h.b16 %v289
    %v647 = vunpack.c.l.b16 %v290
    %v648 = vunpack.c.h.b16 %v290
    %v649 = vunpack.c.l.b16 %v291
    %v650 = vunpack.c.h.b16 %v291
    %v651 = vunpack.c.l.b16 %v292
    %v652 = vunpack.c.h.b16 %v292
    %v653 = vunpack.c.l.b16 %v293
    %v654 = vunpack.c.h.b16 %v293
    %v655 = vunpack.c.l.b16 %v294
    %v656 = vunpack.c.h.b16 %v294
    %v657 = vunpack.c.l.b16 %v295
    %v658 = vunpack.c.h.b16 %v295
    %v659 = vunpack.c.l.b16 %v296
    %v660 = vunpack.c.h.b16 %v296
    %v661 = vunpack.c.l.b16 %v297
    %v662 = vunpack.c.h.b16 %v297
    %v663 = vpack.c.b16 %v603, %v599
    %v664 = vpack.c.b16 %v604, %v600
    %v665 = vpack.c.b16 %v605, %v601
    %v666 = vpack.c.b16 %v606, %v602
    %v667 = vpack.c.b16 %v611, %v607
    %v668 = vpack.c.b16 %v612, %v608
    %v669 = vpack.c.b16 %v613, %v609
    %v670 = vpack.c.b16 %v614, %v610
    %v671 = vpack.c.b16 %v619, %v615
    %v672 = vpack.c.b16 %v620, %v616
    %v673 = vpack.c.b16 %v621, %v617
    %v674 = vpack.c.b16 %v622, %v618
    %v675 = vpack.c.b16 %v627, %v623
    %v676 = vpack.c.b16 %v628, %v624
    %v677 = vpack.c.b16 %v629, %v625
    %v678 = vpack.c.b16 %v630, %v626
    %v679 = vpack.c.b16 %v635, %v631
    %v680 = vpack.c.b16 %v636, %v632
    %v681 = vpack.c.b16 %v637, %v633
    %v682 = vpack.c.b16 %v638, %v634
    %v683 = vpack.c.b16 %v643, %v639
    %v684 = vpack.c.b16 %v644, %v640
    %v685 = vpack.c.b16 %v645, %v641
    %v686 = vpack.c.b16 %v646, %v642
    %v687 = vpack.c.b16 %v651, %v647
    %v688 = vpack.c.b16 %v652, %v648
    %v689 = vpack.c.b16 %v653, %v649
    %v690 = vpack.c.b16 %v654, %v650
    %v691 = vpack.c.b16 %v659, %v655
    %v692 = vpack.c.b16 %v660, %v656
    %v693 = vpack.c.b16 %v661, %v657
    %v694 = vpack.c.b16 %v662, %v658
    %727 = vmatprep.subr.bf16.mxu0 %v664
    %728 = vmatpush1.bf16.msra.mxu0 %v663
    %729 = vmatprep.subr.bf16.mxu0 %v668
    %730 = vmatpush1.bf16.msra.mxu0 %v667
    %731 = vmatprep.subr.bf16.mxu0 %v672
    %732 = vmatpush1.bf16.msra.mxu0 %v671
    %733 = vmatprep.subr.bf16.mxu0 %v676
    %734 = vmatpush1.bf16.msra.mxu0 %v675
    %735 = vmatprep.subr.bf16.mxu0 %v680
    %736 = vmatpush1.bf16.msra.mxu0 %v679
    %737 = vmatprep.subr.bf16.mxu0 %v684
    %738 = vmatpush1.bf16.msra.mxu0 %v683
    %739 = vmatprep.subr.bf16.mxu0 %v688
    %740 = vmatpush1.bf16.msra.mxu0 %v687
    %741 = vmatprep.subr.bf16.mxu0 %v692
    %742 = vmatpush1.bf16.msra.mxu0 %v691
    %743 = vmatprep.subr.bf16.mxu0 0
    %744 = vmatpush1.bf16.msra.mxu0 0
    %745 = vmatprep.subr.bf16.mxu0 0
    %746 = vmatpush1.bf16.msra.mxu0 0
    %747 = vmatprep.subr.bf16.mxu0 0
    %748 = vmatpush1.bf16.msra.mxu0 0
    %749 = vmatprep.subr.bf16.mxu0 0
    %750 = vmatpush1.bf16.msra.mxu0 0
    %751 = vmatprep.subr.bf16.mxu0 0
    %752 = vmatpush1.bf16.msra.mxu0 0
    %753 = vmatprep.subr.bf16.mxu0 0
    %754 = vmatpush1.bf16.msra.mxu0 0
    %755 = vmatprep.subr.bf16.mxu0 0
    %756 = vmatpush1.bf16.msra.mxu0 0
    %757 = vmatprep.subr.bf16.mxu0 0
    %758 = vmatpush1.bf16.msra.mxu0 0
    %759 = vmatprep.mubr.bf16.mxu0 0
    %760 = vmatmul.mubr.bf16.gmra.mrb[0].mxu0 0
    %v761 = vpop.f32.mrb[0].mxu0
    %v762 = vadd.f32 0.0, %v761
    %v763 = vpop.f32.mrb[0].mxu0
    %v764 = vadd.f32 0.0, %v763
    %v765 = vpop.f32.mrb[0].mxu0
    %v766 = vpop.f32.mrb[0].mxu0
    %767 = vdwg.mxu0
    %768 = vmatprep.subr.bf16.mxu0 %v666
    %769 = vmatpush1.bf16.msra.mxu0 %v665
    %770 = vmatprep.subr.bf16.mxu0 %v670
    %771 = vmatpush1.bf16.msra.mxu0 %v669
    %772 = vmatprep.subr.bf16.mxu0 %v674
    %773 = vmatpush1.bf16.msra.mxu0 %v673
    %774 = vmatprep.subr.bf16.mxu0 %v678
    %775 = vmatpush1.bf16.msra.mxu0 %v677
    %776 = vmatprep.subr.bf16.mxu0 %v682
    %777 = vmatpush1.bf16.msra.mxu0 %v681
    %778 = vmatprep.subr.bf16.mxu0 %v686
    %779 = vmatpush1.bf16.msra.mxu0 %v685
    %780 = vmatprep.subr.bf16.mxu0 %v690
    %781 = vmatpush1.bf16.msra.mxu0 %v689
    %782 = vmatprep.subr.bf16.mxu0 %v694
    %783 = vmatpush1.bf16.msra.mxu0 %v693
    %784 = vmatprep.subr.bf16.mxu0 0
    %785 = vmatpush1.bf16.msra.mxu0 0
    %786 = vmatprep.subr.bf16.mxu0 0
    %787 = vmatpush1.bf16.msra.mxu0 0
    %788 = vmatprep.subr.bf16.mxu0 0
    %789 = vmatpush1.bf16.msra.mxu0 0
    %790 = vmatprep.subr.bf16.mxu0 0
    %791 = vmatpush1.bf16.msra.mxu0 0
    %792 = vmatprep.subr.bf16.mxu0 0
    %793 = vmatpush1.bf16.msra.mxu0 0
    %794 = vmatprep.subr.bf16.mxu0 0
    %795 = vmatpush1.bf16.msra.mxu0 0
    %796 = vmatprep.subr.bf16.mxu0 0
    %797 = vmatpush1.bf16.msra.mxu0 0
    %798 = vmatprep.subr.bf16.mxu0 0
    %799 = vmatpush1.bf16.msra.mxu0 0
    %800 = vmatprep.mubr.bf16.mxu0 0
    %801 = vmatmul.mubr.bf16.gmra.mrb[0].mxu0 0
    %v802 = vpop.f32.mrb[0].mxu0
    %v803 = vadd.f32 0.0, %v802
    %v804 = vpop.f32.mrb[0].mxu0
    %v805 = vadd.f32 0.0, %v804
    %v806 = vpop.f32.mrb[0].mxu0
    %v807 = vpop.f32.mrb[0].mxu0
    %808 = vdwg.mxu0
    %v809 = vadd.f32 %v516, %v762
    %v810 = vadd.f32 %v518, %v764
    %v811 = vadd.f32 %v559, %v803
    %v812 = vadd.f32 %v561, %v805
    %v813 = vxor.u32 %v809, 2147483648
    %v814 = vmul.f32 %v813, 1.442695
    %v815 = vpow.pop %v814
    %v816 = vadd.f32 %v815, 1.0
    %v817 = vrcp.pop %v816
    %v818 = vmul.f32 1.0, %v817
    %v819 = vxor.u32 %v810, 2147483648
    %v820 = vmul.f32 %v819, 1.442695
    %v821 = vpow.pop %v820
    %v822 = vadd.f32 %v821, 1.0
    %v823 = vrcp.pop %v822
    %v824 = vmul.f32 1.0, %v823
    %v825 = vtanh.pop %v811
    %v826 = vxor.u32 %v812, 2147483648
    %v827 = vmul.f32 %v826, 1.442695
    %v828 = vpow.pop %v827
    %v829 = vadd.f32 %v828, 1.0
    %v830 = vrcp.pop %v829
    %v831 = vmul.f32 1.0, %v830
    %v832 = vmul.f32 %v824, 0.0
    %v833 = vmul.f32 %v818, %v825
    %v834 = vadd.f32 %v832, %v833
    %v835 = vtanh.pop %v834
    %v836 = vmul.f32 %v831, %v835
    %v837 = vpack.c.bf16 %v836, %v836
    %838 = vmatprep.subr.bf16.mxu0 %v664
    %839 = vmatpush1.bf16.msra.mxu0 %v663
    %840 = vmatprep.subr.bf16.mxu0 %v668
    %841 = vmatpush1.bf16.msra.mxu0 %v667
    %842 = vmatprep.subr.bf16.mxu0 %v672
    %843 = vmatpush1.bf16.msra.mxu0 %v671
    %844 = vmatprep.subr.bf16.mxu0 %v676
    %845 = vmatpush1.bf16.msra.mxu0 %v675
    %846 = vmatprep.subr.bf16.mxu0 %v680
    %847 = vmatpush1.bf16.msra.mxu0 %v679
    %848 = vmatprep.subr.bf16.mxu0 %v684
    %849 = vmatpush1.bf16.msra.mxu0 %v683
    %850 = vmatprep.subr.bf16.mxu0 %v688
    %851 = vmatpush1.bf16.msra.mxu0 %v687
    %852 = vmatprep.subr.bf16.mxu0 %v692
    %853 = vmatpush1.bf16.msra.mxu0 %v691
    %854 = vmatprep.subr.bf16.mxu0 0
    %855 = vmatpush1.bf16.msra.mxu0 0
    %856 = vmatprep.subr.bf16.mxu0 0
    %857 = vmatpush1.bf16.msra.mxu0 0
    %858 = vmatprep.subr.bf16.mxu0 0
    %859 = vmatpush1.bf16.msra.mxu0 0
    %860 = vmatprep.subr.bf16.mxu0 0
    %861 = vmatpush1.bf16.msra.mxu0 0
    %862 = vmatprep.subr.bf16.mxu0 0
    %863 = vmatpush1.bf16.msra.mxu0 0
    %864 = vmatprep.subr.bf16.mxu0 0
    %865 = vmatpush1.bf16.msra.mxu0 0
    %866 = vmatprep.subr.bf16.mxu0 0
    %867 = vmatpush1.bf16.msra.mxu0 0
    %868 = vmatprep.subr.bf16.mxu0 0
    %869 = vmatpush1.bf16.msra.mxu0 0
    %870 = vmatprep.mubr.bf16.mxu0 0
    %871 = vmatmul.mubr.bf16.gmra.mrb[0].mxu0 %v837
    %v872 = vpop.f32.mrb[0].mxu0
    %v873 = vadd.f32 0.0, %v872
    %v874 = vpop.f32.mrb[0].mxu0
    %v875 = vadd.f32 0.0, %v874
    %v876 = vpop.f32.mrb[0].mxu0
    %v877 = vpop.f32.mrb[0].mxu0
    %878 = vdwg.mxu0
    %879 = vmatprep.subr.bf16.mxu0 %v666
    %880 = vmatpush1.bf16.msra.mxu0 %v665
    %881 = vmatprep.subr.bf16.mxu0 %v670
    %882 = vmatpush1.bf16.msra.mxu0 %v669
    %883 = vmatprep.subr.bf16.mxu0 %v674
    %884 = vmatpush1.bf16.msra.mxu0 %v673
    %885 = vmatprep.subr.bf16.mxu0 %v678
    %886 = vmatpush1.bf16.msra.mxu0 %v677
    %887 = vmatprep.subr.bf16.mxu0 %v682
    %888 = vmatpush1.bf16.msra.mxu0 %v681
    %889 = vmatprep.subr.bf16.mxu0 %v686
    %890 = vmatpush1.bf16.msra.mxu0 %v685
    %891 = vmatprep.subr.bf16.mxu0 %v690
    %892 = vmatpush1.bf16.msra.mxu0 %v689
    %893 = vmatprep.subr.bf16.mxu0 %v694
    %894 = vmatpush1.bf16.msra.mxu0 %v693
    %895 = vmatprep.subr.bf16.mxu0 0
    %896 = vmatpush1.bf16.msra.mxu0 0
    %897 = vmatprep.subr.bf16.mxu0 0
    %898 = vmatpush1.bf16.msra.mxu0 0
    %899 = vmatprep.subr.bf16.mxu0 0
    %900 = vmatpush1.bf16.msra.mxu0 0
    %901 = vmatprep.subr.bf16.mxu0 0
    %902 = vmatpush1.bf16.msra.mxu0 0
    %903 = vmatprep.subr.bf16.mxu0 0
    %904 = vmatpush1.bf16.msra.mxu0 0
    %905 = vmatprep.subr.bf16.mxu0 0
    %906 = vmatpush1.bf16.msra.mxu0 0
    %907 = vmatprep.subr.bf16.mxu0 0
    %908 = vmatpush1.bf16.msra.mxu0 0
    %909 = vmatprep.subr.bf16.mxu0 0
    %910 = vmatpush1.bf16.msra.mxu0 0
    %911 = vmatprep.mubr.bf16.mxu0 0
    %912 = vmatmul.mubr.bf16.gmra.mrb[0].mxu0 %v837
    %v913 = vpop.f32.mrb[0].mxu0
    %v914 = vadd.f32 0.0, %v913
    %v915 = vpop.f32.mrb[0].mxu0
    %v916 = vadd.f32 0.0, %v915
    %v917 = vpop.f32.mrb[0].mxu0
    %v918 = vpop.f32.mrb[0].mxu0
    %919 = vdwg.mxu0
    %v924 = vrot.slane %v873, 6
    %v925 = vrot.slane %v875, 6
    %v926 = vrot.slane %v914, 6
    %v927 = vrot.slane %v916, 6
    %v932 = vadd.f32 %v516, %v924
    %v933 = vadd.f32 %v518, %v925
    %v934 = vadd.f32 %v559, %v926
    %v935 = vadd.f32 %v561, %v927
    %v936 = vxor.u32 %v932, 2147483648
    %v937 = vmul.f32 %v936, 1.442695
    %v938 = vpow.pop %v937
    %v939 = vadd.f32 %v938, 1.0
    %v940 = vrcp.pop %v939
    %v941 = vmul.f32 1.0, %v940
    %v942 = vxor.u32 %v933, 2147483648
    %v943 = vmul.f32 %v942, 1.442695
    %v944 = vpow.pop %v943
    %v945 = vadd.f32 %v944, 1.0
    %v946 = vrcp.pop %v945
    %v947 = vmul.f32 1.0, %v946
    %v948 = vtanh.pop %v934
    %v949 = vxor.u32 %v935, 2147483648
    %v950 = vmul.f32 %v949, 1.442695
    %v951 = vpow.pop %v950
    %v952 = vadd.f32 %v951, 1.0
    %v953 = vrcp.pop %v952
    %v954 = vmul.f32 1.0, %v953
    %v956 = vrot.slane %v834, 6
    %v958 = vmul.f32 %v947, %v956
    %v959 = vmul.f32 %v941, %v948
    %v960 = vadd.f32 %v958, %v959
    %v961 = vtanh.pop %v960
    %v962 = vmul.f32 %v954, %v961
    %v963 = vpack.c.bf16 %v962, %v962
    %v965 = vrot.slane %v963, 1
    %967 = vmatprep.subr.bf16.mxu0 %v664
    %968 = vmatpush1.bf16.msra.mxu0 %v663
    %969 = vmatprep.subr.bf16.mxu0 %v668
    %970 = vmatpush1.bf16.msra.mxu0 %v667
    %971 = vmatprep.subr.bf16.mxu0 %v672
    %972 = vmatpush1.bf16.msra.mxu0 %v671
    %973 = vmatprep.subr.bf16.mxu0 %v676
    %974 = vmatpush1.bf16.msra.mxu0 %v675
    %975 = vmatprep.subr.bf16.mxu0 %v680
    %976 = vmatpush1.bf16.msra.mxu0 %v679
    %977 = vmatprep.subr.bf16.mxu0 %v684
    %978 = vmatpush1.bf16.msra.mxu0 %v683
    %979 = vmatprep.subr.bf16.mxu0 %v688
    %980 = vmatpush1.bf16.msra.mxu0 %v687
    %981 = vmatprep.subr.bf16.mxu0 %v692
    %982 = vmatpush1.bf16.msra.mxu0 %v691
    %983 = vmatprep.subr.bf16.mxu0 0
    %984 = vmatpush1.bf16.msra.mxu0 0
    %985 = vmatprep.subr.bf16.mxu0 0
    %986 = vmatpush1.bf16.msra.mxu0 0
    %987 = vmatprep.subr.bf16.mxu0 0
    %988 = vmatpush1.bf16.msra.mxu0 0
    %989 = vmatprep.subr.bf16.mxu0 0
    %990 = vmatpush1.bf16.msra.mxu0 0
    %991 = vmatprep.subr.bf16.mxu0 0
    %992 = vmatpush1.bf16.msra.mxu0 0
    %993 = vmatprep.subr.bf16.mxu0 0
    %994 = vmatpush1.bf16.msra.mxu0 0
    %995 = vmatprep.subr.bf16.mxu0 0
    %996 = vmatpush1.bf16.msra.mxu0 0
    %997 = vmatprep.subr.bf16.mxu0 0
    %998 = vmatpush1.bf16.msra.mxu0 0
    %999 = vmatprep.mubr.bf16.mxu0 0
    %1000 = vmatmul.mubr.bf16.gmra.mrb[0].mxu0 %v965
    %v1001 = vpop.f32.mrb[0].mxu0
    %v1002 = vadd.f32 0.0, %v1001
    %v1003 = vpop.f32.mrb[0].mxu0
    %v1004 = vadd.f32 0.0, %v1003
    %v1005 = vpop.f32.mrb[0].mxu0
    %v1006 = vpop.f32.mrb[0].mxu0
    %1007 = vdwg.mxu0
    %1008 = vmatprep.subr.bf16.mxu0 %v666
    %1009 = vmatpush1.bf16.msra.mxu0 %v665
    %1010 = vmatprep.subr.bf16.mxu0 %v670
    %1011 = vmatpush1.bf16.msra.mxu0 %v669
    %1012 = vmatprep.subr.bf16.mxu0 %v674
    %1013 = vmatpush1.bf16.msra.mxu0 %v673
    %1014 = vmatprep.subr.bf16.mxu0 %v678
    %1015 = vmatpush1.bf16.msra.mxu0 %v677
    %1016 = vmatprep.subr.bf16.mxu0 %v682
    %1017 = vmatpush1.bf16.msra.mxu0 %v681
    %1018 = vmatprep.subr.bf16.mxu0 %v686
    %1019 = vmatpush1.bf16.msra.mxu0 %v685
    %1020 = vmatprep.subr.bf16.mxu0 %v690
    %1021 = vmatpush1.bf16.msra.mxu0 %v689
    %1022 = vmatprep.subr.bf16.mxu0 %v694
    %1023 = vmatpush1.bf16.msra.mxu0 %v693
    %1024 = vmatprep.subr.bf16.mxu0 0
    %1025 = vmatpush1.bf16.msra.mxu0 0
    %1026 = vmatprep.subr.bf16.mxu0 0
    %1027 = vmatpush1.bf16.msra.mxu0 0
    %1028 = vmatprep.subr.bf16.mxu0 0
    %1029 = vmatpush1.bf16.msra.mxu0 0
    %1030 = vmatprep.subr.bf16.mxu0 0
    %1031 = vmatpush1.bf16.msra.mxu0 0
    %1032 = vmatprep.subr.bf16.mxu0 0
    %1033 = vmatpush1.bf16.msra.mxu0 0
    %1034 = vmatprep.subr.bf16.mxu0 0
    %1035 = vmatpush1.bf16.msra.mxu0 0
    %1036 = vmatprep.subr.bf16.mxu0 0
    %1037 = vmatpush1.bf16.msra.mxu0 0
    %1038 = vmatprep.subr.bf16.mxu0 0
    %1039 = vmatpush1.bf16.msra.mxu0 0
    %1040 = vmatprep.mubr.bf16.mxu0 0
    %1041 = vmatmul.mubr.bf16.gmra.mrb[0].mxu0 %v965
    %v1042 = vpop.f32.mrb[0].mxu0
    %v1043 = vadd.f32 0.0, %v1042
    %v1044 = vpop.f32.mrb[0].mxu0
    %v1045 = vadd.f32 0.0, %v1044
    %v1046 = vpop.f32.mrb[0].mxu0
    %v1047 = vpop.f32.mrb[0].mxu0
    %1048 = vdwg.mxu0
    %v1053 = vrot.slane %v1002, 4
    %v1054 = vrot.slane %v1004, 4
    %v1055 = vrot.slane %v1043, 4
    %v1056 = vrot.slane %v1045, 4
    %v1061 = vadd.f32 %v516, %v1053
    %v1062 = vadd.f32 %v518, %v1054
    %v1063 = vadd.f32 %v559, %v1055
    %v1064 = vadd.f32 %v561, %v1056
    %v1065 = vxor.u32 %v1061, 2147483648
    %v1066 = vmul.f32 %v1065, 1.442695
    %v1067 = vpow.pop %v1066
    %v1068 = vadd.f32 %v1067, 1.0
    %v1069 = vrcp.pop %v1068
    %v1070 = vmul.f32 1.0, %v1069
    %v1071 = vxor.u32 %v1062, 2147483648
    %v1072 = vmul.f32 %v1071, 1.442695
    %v1073 = vpow.pop %v1072
    %v1074 = vadd.f32 %v1073, 1.0
    %v1075 = vrcp.pop %v1074
    %v1076 = vmul.f32 1.0, %v1075
    %v1077 = vtanh.pop %v1063
    %v1078 = vxor.u32 %v1064, 2147483648
    %v1079 = vmul.f32 %v1078, 1.442695
    %v1080 = vpow.pop %v1079
    %v1081 = vadd.f32 %v1080, 1.0
    %v1082 = vrcp.pop %v1081
    %v1083 = vmul.f32 1.0, %v1082
    %v1085 = vrot.slane %v960, 6
    %v1087 = vmul.f32 %v1076, %v1085
    %v1088 = vmul.f32 %v1070, %v1077
    %v1089 = vadd.f32 %v1087, %v1088
    %v1090 = vtanh.pop %v1089
    %v1091 = vmul.f32 %v1083, %v1090
    %v1092 = vpack.c.bf16 %v1091, %v1091
    %v1094 = vrot.slane %v1092, 2
    %1096 = vmatprep.subr.bf16.mxu0 %v664
    %1097 = vmatpush1.bf16.msra.mxu0 %v663
    %1098 = vmatprep.subr.bf16.mxu0 %v668
    %1099 = vmatpush1.bf16.msra.mxu0 %v667
    %1100 = vmatprep.subr.bf16.mxu0 %v672
    %1101 = vmatpush1.bf16.msra.mxu0 %v671
    %1102 = vmatprep.subr.bf16.mxu0 %v676
    %1103 = vmatpush1.bf16.msra.mxu0 %v675
    %1104 = vmatprep.subr.bf16.mxu0 %v680
    %1105 = vmatpush1.bf16.msra.mxu0 %v679
    %1106 = vmatprep.subr.bf16.mxu0 %v684
    %1107 = vmatpush1.bf16.msra.mxu0 %v683
    %1108 = vmatprep.subr.bf16.mxu0 %v688
    %1109 = vmatpush1.bf16.msra.mxu0 %v687
    %1110 = vmatprep.subr.bf16.mxu0 %v692
    %1111 = vmatpush1.bf16.msra.mxu0 %v691
    %1112 = vmatprep.subr.bf16.mxu0 0
    %1113 = vmatpush1.bf16.msra.mxu0 0
    %1114 = vmatprep.subr.bf16.mxu0 0
    %1115 = vmatpush1.bf16.msra.mxu0 0
    %1116 = vmatprep.subr.bf16.mxu0 0
    %1117 = vmatpush1.bf16.msra.mxu0 0
    %1118 = vmatprep.subr.bf16.mxu0 0
    %1119 = vmatpush1.bf16.msra.mxu0 0
    %1120 = vmatprep.subr.bf16.mxu0 0
    %1121 = vmatpush1.bf16.msra.mxu0 0
    %1122 = vmatprep.subr.bf16.mxu0 0
    %1123 = vmatpush1.bf16.msra.mxu0 0
    %1124 = vmatprep.subr.bf16.mxu0 0
    %1125 = vmatpush1.bf16.msra.mxu0 0
    %1126 = vmatprep.subr.bf16.mxu0 0
    %1127 = vmatpush1.bf16.msra.mxu0 0
    %1128 = vmatprep.mubr.bf16.mxu0 0
    %1129 = vmatmul.mubr.bf16.gmra.mrb[0].mxu0 %v1094
    %v1130 = vpop.f32.mrb[0].mxu0
    %v1131 = vadd.f32 0.0, %v1130
    %v1132 = vpop.f32.mrb[0].mxu0
    %v1133 = vadd.f32 0.0, %v1132
    %v1134 = vpop.f32.mrb[0].mxu0
    %v1135 = vpop.f32.mrb[0].mxu0
    %1136 = vdwg.mxu0
    %1137 = vmatprep.subr.bf16.mxu0 %v666
    %1138 = vmatpush1.bf16.msra.mxu0 %v665
    %1139 = vmatprep.subr.bf16.mxu0 %v670
    %1140 = vmatpush1.bf16.msra.mxu0 %v669
    %1141 = vmatprep.subr.bf16.mxu0 %v674
    %1142 = vmatpush1.bf16.msra.mxu0 %v673
    %1143 = vmatprep.subr.bf16.mxu0 %v678
    %1144 = vmatpush1.bf16.msra.mxu0 %v677
    %1145 = vmatprep.subr.bf16.mxu0 %v682
    %1146 = vmatpush1.bf16.msra.mxu0 %v681
    %1147 = vmatprep.subr.bf16.mxu0 %v686
    %1148 = vmatpush1.bf16.msra.mxu0 %v685
    %1149 = vmatprep.subr.bf16.mxu0 %v690
    %1150 = vmatpush1.bf16.msra.mxu0 %v689
    %1151 = vmatprep.subr.bf16.mxu0 %v694
    %1152 = vmatpush1.bf16.msra.mxu0 %v693
    %1153 = vmatprep.subr.bf16.mxu0 0
    %1154 = vmatpush1.bf16.msra.mxu0 0
    %1155 = vmatprep.subr.bf16.mxu0 0
    %1156 = vmatpush1.bf16.msra.mxu0 0
    %1157 = vmatprep.subr.bf16.mxu0 0
    %1158 = vmatpush1.bf16.msra.mxu0 0
    %1159 = vmatprep.subr.bf16.mxu0 0
    %1160 = vmatpush1.bf16.msra.mxu0 0
    %1161 = vmatprep.subr.bf16.mxu0 0
    %1162 = vmatpush1.bf16.msra.mxu0 0
    %1163 = vmatprep.subr.bf16.mxu0 0
    %1164 = vmatpush1.bf16.msra.mxu0 0
    %1165 = vmatprep.subr.bf16.mxu0 0
    %1166 = vmatpush1.bf16.msra.mxu0 0
    %1167 = vmatprep.subr.bf16.mxu0 0
    %1168 = vmatpush1.bf16.msra.mxu0 0
    %1169 = vmatprep.mubr.bf16.mxu0 0
    %1170 = vmatmul.mubr.bf16.gmra.mrb[0].mxu0 %v1094
    %v1171 = vpop.f32.mrb[0].mxu0
    %v1172 = vadd.f32 0.0, %v1171
    %v1173 = vpop.f32.mrb[0].mxu0
    %v1174 = vadd.f32 0.0, %v1173
    %v1175 = vpop.f32.mrb[0].mxu0
    %v1176 = vpop.f32.mrb[0].mxu0
    %1177 = vdwg.mxu0
    %v1182 = vrot.slane %v1131, 2
    %v1183 = vrot.slane %v1133, 2
    %v1184 = vrot.slane %v1172, 2
    %v1185 = vrot.slane %v1174, 2
    %v1190 = vadd.f32 %v516, %v1182
    %v1191 = vadd.f32 %v518, %v1183
    %v1192 = vadd.f32 %v559, %v1184
    %v1193 = vadd.f32 %v561, %v1185
    %v1194 = vxor.u32 %v1190, 2147483648
    %v1195 = vmul.f32 %v1194, 1.442695
    %v1196 = vpow.pop %v1195
    %v1197 = vadd.f32 %v1196, 1.0
    %v1198 = vrcp.pop %v1197
    %v1199 = vmul.f32 1.0, %v1198
    %v1200 = vxor.u32 %v1191, 2147483648
    %v1201 = vmul.f32 %v1200, 1.442695
    %v1202 = vpow.pop %v1201
    %v1203 = vadd.f32 %v1202, 1.0
    %v1204 = vrcp.pop %v1203
    %v1205 = vmul.f32 1.0, %v1204
    %v1206 = vtanh.pop %v1192
    %v1207 = vxor.u32 %v1193, 2147483648
    %v1208 = vmul.f32 %v1207, 1.442695
    %v1209 = vpow.pop %v1208
    %v1210 = vadd.f32 %v1209, 1.0
    %v1211 = vrcp.pop %v1210
    %v1212 = vmul.f32 1.0, %v1211
    %v1214 = vrot.slane %v1089, 6
    %v1216 = vmul.f32 %v1205, %v1214
    %v1217 = vmul.f32 %v1199, %v1206
    %v1218 = vadd.f32 %v1216, %v1217
    %v1219 = vtanh.pop %v1218
    %v1220 = vmul.f32 %v1212, %v1219
    %v1221 = vpack.c.bf16 %v1220, %v1220
    %v1223 = vrot.slane %v1221, 3
    %1225 = vmatprep.subr.bf16.mxu0 %v664
    %1226 = vmatpush1.bf16.msra.mxu0 %v663
    %1227 = vmatprep.subr.bf16.mxu0 %v668
    %1228 = vmatpush1.bf16.msra.mxu0 %v667
    %1229 = vmatprep.subr.bf16.mxu0 %v672
    %1230 = vmatpush1.bf16.msra.mxu0 %v671
    %1231 = vmatprep.subr.bf16.mxu0 %v676
    %1232 = vmatpush1.bf16.msra.mxu0 %v675
    %1233 = vmatprep.subr.bf16.mxu0 %v680
    %1234 = vmatpush1.bf16.msra.mxu0 %v679
    %1235 = vmatprep.subr.bf16.mxu0 %v684
    %1236 = vmatpush1.bf16.msra.mxu0 %v683
    %1237 = vmatprep.subr.bf16.mxu0 %v688
    %1238 = vmatpush1.bf16.msra.mxu0 %v687
    %1239 = vmatprep.subr.bf16.mxu0 %v692
    %1240 = vmatpush1.bf16.msra.mxu0 %v691
    %1241 = vmatprep.subr.bf16.mxu0 0
    %1242 = vmatpush1.bf16.msra.mxu0 0
    %1243 = vmatprep.subr.bf16.mxu0 0
    %1244 = vmatpush1.bf16.msra.mxu0 0
    %1245 = vmatprep.subr.bf16.mxu0 0
    %1246 = vmatpush1.bf16.msra.mxu0 0
    %1247 = vmatprep.subr.bf16.mxu0 0
    %1248 = vmatpush1.bf16.msra.mxu0 0
    %1249 = vmatprep.subr.bf16.mxu0 0
    %1250 = vmatpush1.bf16.msra.mxu0 0
    %1251 = vmatprep.subr.bf16.mxu0 0
    %1252 = vmatpush1.bf16.msra.mxu0 0
    %1253 = vmatprep.subr.bf16.mxu0 0
    %1254 = vmatpush1.bf16.msra.mxu0 0
    %1255 = vmatprep.subr.bf16.mxu0 0
    %1256 = vmatpush1.bf16.msra.mxu0 0
    %1257 = vmatprep.mubr.bf16.mxu0 0
    %1258 = vmatmul.mubr.bf16.gmra.mrb[0].mxu0 %v1223
    %v1259 = vpop.f32.mrb[0].mxu0
    %v1260 = vadd.f32 0.0, %v1259
    %v1261 = vpop.f32.mrb[0].mxu0
    %v1262 = vadd.f32 0.0, %v1261
    %v1263 = vpop.f32.mrb[0].mxu0
    %v1264 = vpop.f32.mrb[0].mxu0
    %1265 = vdwg.mxu0
    %1266 = vmatprep.subr.bf16.mxu0 %v666
    %1267 = vmatpush1.bf16.msra.mxu0 %v665
    %1268 = vmatprep.subr.bf16.mxu0 %v670
    %1269 = vmatpush1.bf16.msra.mxu0 %v669
    %1270 = vmatprep.subr.bf16.mxu0 %v674
    %1271 = vmatpush1.bf16.msra.mxu0 %v673
    %1272 = vmatprep.subr.bf16.mxu0 %v678
    %1273 = vmatpush1.bf16.msra.mxu0 %v677
    %1274 = vmatprep.subr.bf16.mxu0 %v682
    %1275 = vmatpush1.bf16.msra.mxu0 %v681
    %1276 = vmatprep.subr.bf16.mxu0 %v686
    %1277 = vmatpush1.bf16.msra.mxu0 %v685
    %1278 = vmatprep.subr.bf16.mxu0 %v690
    %1279 = vmatpush1.bf16.msra.mxu0 %v689
    %1280 = vmatprep.subr.bf16.mxu0 %v694
    %1281 = vmatpush1.bf16.msra.mxu0 %v693
    %1282 = vmatprep.subr.bf16.mxu0 0
    %1283 = vmatpush1.bf16.msra.mxu0 0
    %1284 = vmatprep.subr.bf16.mxu0 0
    %1285 = vmatpush1.bf16.msra.mxu0 0
    %1286 = vmatprep.subr.bf16.mxu0 0
    %1287 = vmatpush1.bf16.msra.mxu0 0
    %1288 = vmatprep.subr.bf16.mxu0 0
    %1289 = vmatpush1.bf16.msra.mxu0 0
    %1290 = vmatprep.subr.bf16.mxu0 0
    %1291 = vmatpush1.bf16.msra.mxu0 0
    %1292 = vmatprep.subr.bf16.mxu0 0
    %1293 = vmatpush1.bf16.msra.mxu0 0
    %1294 = vmatprep.subr.bf16.mxu0 0
    %1295 = vmatpush1.bf16.msra.mxu0 0
    %1296 = vmatprep.subr.bf16.mxu0 0
    %1297 = vmatpush1.bf16.msra.mxu0 0
    %1298 = vmatprep.mubr.bf16.mxu0 0
    %1299 = vmatmul.mubr.bf16.gmra.mrb[0].mxu0 %v1223
    %v1300 = vpop.f32.mrb[0].mxu0
    %v1301 = vadd.f32 0.0, %v1300
    %v1302 = vpop.f32.mrb[0].mxu0
    %v1303 = vadd.f32 0.0, %v1302
    %v1304 = vpop.f32.mrb[0].mxu0
    %v1305 = vpop.f32.mrb[0].mxu0
    %1306 = vdwg.mxu0
    %v1307 = vadd.f32 %v520, %v1260
    %v1308 = vadd.f32 %v522, %v1262
    %v1309 = vadd.f32 %v563, %v1301
    %v1310 = vadd.f32 %v565, %v1303
    %v1311 = vxor.u32 %v1307, 2147483648
    %v1312 = vmul.f32 %v1311, 1.442695
    %v1313 = vpow.pop %v1312
    %v1314 = vadd.f32 %v1313, 1.0
    %v1315 = vrcp.pop %v1314
    %v1316 = vmul.f32 1.0, %v1315
    %v1317 = vxor.u32 %v1308, 2147483648
    %v1318 = vmul.f32 %v1317, 1.442695
    %v1319 = vpow.pop %v1318
    %v1320 = vadd.f32 %v1319, 1.0
    %v1321 = vrcp.pop %v1320
    %v1322 = vmul.f32 1.0, %v1321
    %v1323 = vtanh.pop %v1309
    %v1324 = vxor.u32 %v1310, 2147483648
    %v1325 = vmul.f32 %v1324, 1.442695
    %v1326 = vpow.pop %v1325
    %v1327 = vadd.f32 %v1326, 1.0
    %v1328 = vrcp.pop %v1327
    %v1329 = vmul.f32 1.0, %v1328
    %v1331 = vrot.slane %v1218, 6
    %v1333 = vmul.f32 %v1322, %v1331
    %v1334 = vmul.f32 %v1316, %v1323
    %v1335 = vadd.f32 %v1333, %v1334
    %v1336 = vtanh.pop %v1335
    %v1337 = vmul.f32 %v1329, %v1336
    %v1338 = vpack.c.bf16 %v1337, %v1337
    %1339 = vmatprep.subr.bf16.mxu0 %v664
    %1340 = vmatpush1.bf16.msra.mxu0 %v663
    %1341 = vmatprep.subr.bf16.mxu0 %v668
    %1342 = vmatpush1.bf16.msra.mxu0 %v667
    %1343 = vmatprep.subr.bf16.mxu0 %v672
    %1344 = vmatpush1.bf16.msra.mxu0 %v671
    %1345 = vmatprep.subr.bf16.mxu0 %v676
    %1346 = vmatpush1.bf16.msra.mxu0 %v675
    %1347 = vmatprep.subr.bf16.mxu0 %v680
    %1348 = vmatpush1.bf16.msra.mxu0 %v679
    %1349 = vmatprep.subr.bf16.mxu0 %v684
    %1350 = vmatpush1.bf16.msra.mxu0 %v683
    %1351 = vmatprep.subr.bf16.mxu0 %v688
    %1352 = vmatpush1.bf16.msra.mxu0 %v687
    %1353 = vmatprep.subr.bf16.mxu0 %v692
    %1354 = vmatpush1.bf16.msra.mxu0 %v691
    %1355 = vmatprep.subr.bf16.mxu0 0
    %1356 = vmatpush1.bf16.msra.mxu0 0
    %1357 = vmatprep.subr.bf16.mxu0 0
    %1358 = vmatpush1.bf16.msra.mxu0 0
    %1359 = vmatprep.subr.bf16.mxu0 0
    %1360 = vmatpush1.bf16.msra.mxu0 0
    %1361 = vmatprep.subr.bf16.mxu0 0
    %1362 = vmatpush1.bf16.msra.mxu0 0
    %1363 = vmatprep.subr.bf16.mxu0 0
    %1364 = vmatpush1.bf16.msra.mxu0 0
    %1365 = vmatprep.subr.bf16.mxu0 0
    %1366 = vmatpush1.bf16.msra.mxu0 0
    %1367 = vmatprep.subr.bf16.mxu0 0
    %1368 = vmatpush1.bf16.msra.mxu0 0
    %1369 = vmatprep.subr.bf16.mxu0 0
    %1370 = vmatpush1.bf16.msra.mxu0 0
    %1371 = vmatprep.mubr.bf16.mxu0 0
    %1372 = vmatmul.mubr.bf16.gmra.mrb[0].mxu0 %v1338
    %v1373 = vpop.f32.mrb[0].mxu0
    %v1374 = vadd.f32 0.0, %v1373
    %v1375 = vpop.f32.mrb[0].mxu0
    %v1376 = vadd.f32 0.0, %v1375
    %v1377 = vpop.f32.mrb[0].mxu0
    %v1378 = vpop.f32.mrb[0].mxu0
    %1379 = vdwg.mxu0
    %1380 = vmatprep.subr.bf16.mxu0 %v666
    %1381 = vmatpush1.bf16.msra.mxu0 %v665
    %1382 = vmatprep.subr.bf16.mxu0 %v670
    %1383 = vmatpush1.bf16.msra.mxu0 %v669
    %1384 = vmatprep.subr.bf16.mxu0 %v674
    %1385 = vmatpush1.bf16.msra.mxu0 %v673
    %1386 = vmatprep.subr.bf16.mxu0 %v678
    %1387 = vmatpush1.bf16.msra.mxu0 %v677
    %1388 = vmatprep.subr.bf16.mxu0 %v682
    %1389 = vmatpush1.bf16.msra.mxu0 %v681
    %1390 = vmatprep.subr.bf16.mxu0 %v686
    %1391 = vmatpush1.bf16.msra.mxu0 %v685
    %1392 = vmatprep.subr.bf16.mxu0 %v690
    %1393 = vmatpush1.bf16.msra.mxu0 %v689
    %1394 = vmatprep.subr.bf16.mxu0 %v694
    %1395 = vmatpush1.bf16.msra.mxu0 %v693
    %1396 = vmatprep.subr.bf16.mxu0 0
    %1397 = vmatpush1.bf16.msra.mxu0 0
    %1398 = vmatprep.subr.bf16.mxu0 0
    %1399 = vmatpush1.bf16.msra.mxu0 0
    %1400 = vmatprep.subr.bf16.mxu0 0
    %1401 = vmatpush1.bf16.msra.mxu0 0
    %1402 = vmatprep.subr.bf16.mxu0 0
    %1403 = vmatpush1.bf16.msra.mxu0 0
    %1404 = vmatprep.subr.bf16.mxu0 0
    %1405 = vmatpush1.bf16.msra.mxu0 0
    %1406 = vmatprep.subr.bf16.mxu0 0
    %1407 = vmatpush1.bf16.msra.mxu0 0
    %1408 = vmatprep.subr.bf16.mxu0 0
    %1409 = vmatpush1.bf16.msra.mxu0 0
    %1410 = vmatprep.subr.bf16.mxu0 0
    %1411 = vmatpush1.bf16.msra.mxu0 0
    %1412 = vmatprep.mubr.bf16.mxu0 0
    %1413 = vmatmul.mubr.bf16.gmra.mrb[0].mxu0 %v1338
    %v1414 = vpop.f32.mrb[0].mxu0
    %v1415 = vadd.f32 0.0, %v1414
    %v1416 = vpop.f32.mrb[0].mxu0
    %v1417 = vadd.f32 0.0, %v1416
    %v1418 = vpop.f32.mrb[0].mxu0
    %v1419 = vpop.f32.mrb[0].mxu0
    %1420 = vdwg.mxu0
    %v1425 = vrot.slane %v1374, 6
    %v1426 = vrot.slane %v1376, 6
    %v1427 = vrot.slane %v1415, 6
    %v1428 = vrot.slane %v1417, 6
    %v1433 = vadd.f32 %v520, %v1425
    %v1434 = vadd.f32 %v522, %v1426
    %v1435 = vadd.f32 %v563, %v1427
    %v1436 = vadd.f32 %v565, %v1428
    %v1437 = vxor.u32 %v1433, 2147483648
    %v1438 = vmul.f32 %v1437, 1.442695
    %v1439 = vpow.pop %v1438
    %v1440 = vadd.f32 %v1439, 1.0
    %v1441 = vrcp.pop %v1440
    %v1442 = vmul.f32 1.0, %v1441
    %v1443 = vxor.u32 %v1434, 2147483648
    %v1444 = vmul.f32 %v1443, 1.442695
    %v1445 = vpow.pop %v1444
    %v1446 = vadd.f32 %v1445, 1.0
    %v1447 = vrcp.pop %v1446
    %v1448 = vmul.f32 1.0, %v1447
    %v1449 = vtanh.pop %v1435
    %v1450 = vxor.u32 %v1436, 2147483648
    %v1451 = vmul.f32 %v1450, 1.442695
    %v1452 = vpow.pop %v1451
    %v1453 = vadd.f32 %v1452, 1.0
    %v1454 = vrcp.pop %v1453
    %v1455 = vmul.f32 1.0, %v1454
    %v1457 = vrot.slane %v1335, 6
    %v1459 = vmul.f32 %v1448, %v1457
    %v1460 = vmul.f32 %v1442, %v1449
    %v1461 = vadd.f32 %v1459, %v1460
    %v1462 = vtanh.pop %v1461
    %v1463 = vmul.f32 %v1455, %v1462
    %v1464 = vpack.c.bf16 %v1463, %v1463
    %v1466 = vrot.slane %v1464, 1
    %1468 = vmatprep.subr.bf16.mxu0 %v664
    %1469 = vmatpush1.bf16.msra.mxu0 %v663
    %1470 = vmatprep.subr.bf16.mxu0 %v668
    %1471 = vmatpush1.bf16.msra.mxu0 %v667
    %1472 = vmatprep.subr.bf16.mxu0 %v672
    %1473 = vmatpush1.bf16.msra.mxu0 %v671
    %1474 = vmatprep.subr.bf16.mxu0 %v676
    %1475 = vmatpush1.bf16.msra.mxu0 %v675
    %1476 = vmatprep.subr.bf16.mxu0 %v680
    %1477 = vmatpush1.bf16.msra.mxu0 %v679
    %1478 = vmatprep.subr.bf16.mxu0 %v684
    %1479 = vmatpush1.bf16.msra.mxu0 %v683
    %1480 = vmatprep.subr.bf16.mxu0 %v688
    %1481 = vmatpush1.bf16.msra.mxu0 %v687
    %1482 = vmatprep.subr.bf16.mxu0 %v692
    %1483 = vmatpush1.bf16.msra.mxu0 %v691
    %1484 = vmatprep.subr.bf16.mxu0 0
    %1485 = vmatpush1.bf16.msra.mxu0 0
    %1486 = vmatprep.subr.bf16.mxu0 0
    %1487 = vmatpush1.bf16.msra.mxu0 0
    %1488 = vmatprep.subr.bf16.mxu0 0
    %1489 = vmatpush1.bf16.msra.mxu0 0
    %1490 = vmatprep.subr.bf16.mxu0 0
    %1491 = vmatpush1.bf16.msra.mxu0 0
    %1492 = vmatprep.subr.bf16.mxu0 0
    %1493 = vmatpush1.bf16.msra.mxu0 0
    %1494 = vmatprep.subr.bf16.mxu0 0
    %1495 = vmatpush1.bf16.msra.mxu0 0
    %1496 = vmatprep.subr.bf16.mxu0 0
    %1497 = vmatpush1.bf16.msra.mxu0 0
    %1498 = vmatprep.subr.bf16.mxu0 0
    %1499 = vmatpush1.bf16.msra.mxu0 0
    %1500 = vmatprep.mubr.bf16.mxu0 0
    %1501 = vmatmul.mubr.bf16.gmra.mrb[0].mxu0 %v1466
    %v1502 = vpop.f32.mrb[0].mxu0
    %v1503 = vadd.f32 0.0, %v1502
    %v1504 = vpop.f32.mrb[0].mxu0
    %v1505 = vadd.f32 0.0, %v1504
    %v1506 = vpop.f32.mrb[0].mxu0
    %v1507 = vpop.f32.mrb[0].mxu0
    %1508 = vdwg.mxu0
    %1509 = vmatprep.subr.bf16.mxu0 %v666
    %1510 = vmatpush1.bf16.msra.mxu0 %v665
    %1511 = vmatprep.subr.bf16.mxu0 %v670
    %1512 = vmatpush1.bf16.msra.mxu0 %v669
    %1513 = vmatprep.subr.bf16.mxu0 %v674
    %1514 = vmatpush1.bf16.msra.mxu0 %v673
    %1515 = vmatprep.subr.bf16.mxu0 %v678
    %1516 = vmatpush1.bf16.msra.mxu0 %v677
    %1517 = vmatprep.subr.bf16.mxu0 %v682
    %1518 = vmatpush1.bf16.msra.mxu0 %v681
    %1519 = vmatprep.subr.bf16.mxu0 %v686
    %1520 = vmatpush1.bf16.msra.mxu0 %v685
    %1521 = vmatprep.subr.bf16.mxu0 %v690
    %1522 = vmatpush1.bf16.msra.mxu0 %v689
    %1523 = vmatprep.subr.bf16.mxu0 %v694
    %1524 = vmatpush1.bf16.msra.mxu0 %v693
    %1525 = vmatprep.subr.bf16.mxu0 0
    %1526 = vmatpush1.bf16.msra.mxu0 0
    %1527 = vmatprep.subr.bf16.mxu0 0
    %1528 = vmatpush1.bf16.msra.mxu0 0
    %1529 = vmatprep.subr.bf16.mxu0 0
    %1530 = vmatpush1.bf16.msra.mxu0 0
    %1531 = vmatprep.subr.bf16.mxu0 0
    %1532 = vmatpush1.bf16.msra.mxu0 0
    %1533 = vmatprep.subr.bf16.mxu0 0
    %1534 = vmatpush1.bf16.msra.mxu0 0
    %1535 = vmatprep.subr.bf16.mxu0 0
    %1536 = vmatpush1.bf16.msra.mxu0 0
    %1537 = vmatprep.subr.bf16.mxu0 0
    %1538 = vmatpush1.bf16.msra.mxu0 0
    %1539 = vmatprep.subr.bf16.mxu0 0
    %1540 = vmatpush1.bf16.msra.mxu0 0
    %1541 = vmatprep.mubr.bf16.mxu0 0
    %1542 = vmatmul.mubr.bf16.gmra.mrb[0].mxu0 %v1466
    %v1543 = vpop.f32.mrb[0].mxu0
    %v1544 = vadd.f32 0.0, %v1543
    %v1545 = vpop.f32.mrb[0].mxu0
    %v1546 = vadd.f32 0.0, %v1545
    %v1547 = vpop.f32.mrb[0].mxu0
    %v1548 = vpop.f32.mrb[0].mxu0
    %1549 = vdwg.mxu0
    %v1554 = vrot.slane %v1503, 4
    %v1555 = vrot.slane %v1505, 4
    %v1556 = vrot.slane %v1544, 4
    %v1557 = vrot.slane %v1546, 4
    %v1562 = vadd.f32 %v520, %v1554
    %v1563 = vadd.f32 %v522, %v1555
    %v1564 = vadd.f32 %v563, %v1556
    %v1565 = vadd.f32 %v565, %v1557
    %v1566 = vxor.u32 %v1562, 2147483648
    %v1567 = vmul.f32 %v1566, 1.442695
    %v1568 = vpow.pop %v1567
    %v1569 = vadd.f32 %v1568, 1.0
    %v1570 = vrcp.pop %v1569
    %v1571 = vmul.f32 1.0, %v1570
    %v1572 = vxor.u32 %v1563, 2147483648
    %v1573 = vmul.f32 %v1572, 1.442695
    %v1574 = vpow.pop %v1573
    %v1575 = vadd.f32 %v1574, 1.0
    %v1576 = vrcp.pop %v1575
    %v1577 = vmul.f32 1.0, %v1576
    %v1578 = vtanh.pop %v1564
    %v1579 = vxor.u32 %v1565, 2147483648
    %v1580 = vmul.f32 %v1579, 1.442695
    %v1581 = vpow.pop %v1580
    %v1582 = vadd.f32 %v1581, 1.0
    %v1583 = vrcp.pop %v1582
    %v1584 = vmul.f32 1.0, %v1583
    %v1586 = vrot.slane %v1461, 6
    %v1588 = vmul.f32 %v1577, %v1586
    %v1589 = vmul.f32 %v1571, %v1578
    %v1590 = vadd.f32 %v1588, %v1589
    %v1591 = vtanh.pop %v1590
    %v1592 = vmul.f32 %v1584, %v1591
    %v1593 = vpack.c.bf16 %v1592, %v1592
    %v1595 = vrot.slane %v1593, 2
    %1597 = vmatprep.subr.bf16.mxu0 %v664
    %1598 = vmatpush1.bf16.msra.mxu0 %v663
    %1599 = vmatprep.subr.bf16.mxu0 %v668
    %1600 = vmatpush1.bf16.msra.mxu0 %v667
    %1601 = vmatprep.subr.bf16.mxu0 %v672
    %1602 = vmatpush1.bf16.msra.mxu0 %v671
    %1603 = vmatprep.subr.bf16.mxu0 %v676
    %1604 = vmatpush1.bf16.msra.mxu0 %v675
    %1605 = vmatprep.subr.bf16.mxu0 %v680
    %1606 = vmatpush1.bf16.msra.mxu0 %v679
    %1607 = vmatprep.subr.bf16.mxu0 %v684
    %1608 = vmatpush1.bf16.msra.mxu0 %v683
    %1609 = vmatprep.subr.bf16.mxu0 %v688
    %1610 = vmatpush1.bf16.msra.mxu0 %v687
    %1611 = vmatprep.subr.bf16.mxu0 %v692
    %1612 = vmatpush1.bf16.msra.mxu0 %v691
    %1613 = vmatprep.subr.bf16.mxu0 0
    %1614 = vmatpush1.bf16.msra.mxu0 0
    %1615 = vmatprep.subr.bf16.mxu0 0
    %1616 = vmatpush1.bf16.msra.mxu0 0
    %1617 = vmatprep.subr.bf16.mxu0 0
    %1618 = vmatpush1.bf16.msra.mxu0 0
    %1619 = vmatprep.subr.bf16.mxu0 0
    %1620 = vmatpush1.bf16.msra.mxu0 0
    %1621 = vmatprep.subr.bf16.mxu0 0
    %1622 = vmatpush1.bf16.msra.mxu0 0
    %1623 = vmatprep.subr.bf16.mxu0 0
    %1624 = vmatpush1.bf16.msra.mxu0 0
    %1625 = vmatprep.subr.bf16.mxu0 0
    %1626 = vmatpush1.bf16.msra.mxu0 0
    %1627 = vmatprep.subr.bf16.mxu0 0
    %1628 = vmatpush1.bf16.msra.mxu0 0
    %1629 = vmatprep.mubr.bf16.mxu0 0
    %1630 = vmatmul.mubr.bf16.gmra.mrb[0].mxu0 %v1595
    %v1631 = vpop.f32.mrb[0].mxu0
    %v1632 = vadd.f32 0.0, %v1631
    %v1633 = vpop.f32.mrb[0].mxu0
    %v1634 = vadd.f32 0.0, %v1633
    %v1635 = vpop.f32.mrb[0].mxu0
    %v1636 = vpop.f32.mrb[0].mxu0
    %1637 = vdwg.mxu0
    %1638 = vmatprep.subr.bf16.mxu0 %v666
    %1639 = vmatpush1.bf16.msra.mxu0 %v665
    %1640 = vmatprep.subr.bf16.mxu0 %v670
    %1641 = vmatpush1.bf16.msra.mxu0 %v669
    %1642 = vmatprep.subr.bf16.mxu0 %v674
    %1643 = vmatpush1.bf16.msra.mxu0 %v673
    %1644 = vmatprep.subr.bf16.mxu0 %v678
    %1645 = vmatpush1.bf16.msra.mxu0 %v677
    %1646 = vmatprep.subr.bf16.mxu0 %v682
    %1647 = vmatpush1.bf16.msra.mxu0 %v681
    %1648 = vmatprep.subr.bf16.mxu0 %v686
    %1649 = vmatpush1.bf16.msra.mxu0 %v685
    %1650 = vmatprep.subr.bf16.mxu0 %v690
    %1651 = vmatpush1.bf16.msra.mxu0 %v689
    %1652 = vmatprep.subr.bf16.mxu0 %v694
    %1653 = vmatpush1.bf16.msra.mxu0 %v693
    %1654 = vmatprep.subr.bf16.mxu0 0
    %1655 = vmatpush1.bf16.msra.mxu0 0
    %1656 = vmatprep.subr.bf16.mxu0 0
    %1657 = vmatpush1.bf16.msra.mxu0 0
    %1658 = vmatprep.subr.bf16.mxu0 0
    %1659 = vmatpush1.bf16.msra.mxu0 0
    %1660 = vmatprep.subr.bf16.mxu0 0
    %1661 = vmatpush1.bf16.msra.mxu0 0
    %1662 = vmatprep.subr.bf16.mxu0 0
    %1663 = vmatpush1.bf16.msra.mxu0 0
    %1664 = vmatprep.subr.bf16.mxu0 0
    %1665 = vmatpush1.bf16.msra.mxu0 0
    %1666 = vmatprep.subr.bf16.mxu0 0
    %1667 = vmatpush1.bf16.msra.mxu0 0
    %1668 = vmatprep.subr.bf16.mxu0 0
    %1669 = vmatpush1.bf16.msra.mxu0 0
    %1670 = vmatprep.mubr.bf16.mxu0 0
    %1671 = vmatmul.mubr.bf16.gmra.mrb[0].mxu0 %v1595
    %v1672 = vpop.f32.mrb[0].mxu0
    %v1673 = vadd.f32 0.0, %v1672
    %v1674 = vpop.f32.mrb[0].mxu0
    %v1675 = vadd.f32 0.0, %v1674
    %v1676 = vpop.f32.mrb[0].mxu0
    %v1677 = vpop.f32.mrb[0].mxu0
    %1678 = vdwg.mxu0
    %v1683 = vrot.slane %v1632, 2
    %v1684 = vrot.slane %v1634, 2
    %v1685 = vrot.slane %v1673, 2
    %v1686 = vrot.slane %v1675, 2
    %v1691 = vadd.f32 %v520, %v1683
    %v1692 = vadd.f32 %v522, %v1684
    %v1693 = vadd.f32 %v563, %v1685
    %v1694 = vadd.f32 %v565, %v1686
    %v1695 = vxor.u32 %v1691, 2147483648
    %v1696 = vmul.f32 %v1695, 1.442695
    %v1697 = vpow.pop %v1696
    %v1698 = vadd.f32 %v1697, 1.0
    %v1699 = vrcp.pop %v1698
    %v1700 = vmul.f32 1.0, %v1699
    %v1701 = vxor.u32 %v1692, 2147483648
    %v1702 = vmul.f32 %v1701, 1.442695
    %v1703 = vpow.pop %v1702
    %v1704 = vadd.f32 %v1703, 1.0
    %v1705 = vrcp.pop %v1704
    %v1706 = vmul.f32 1.0, %v1705
    %v1707 = vtanh.pop %v1693
    %v1708 = vxor.u32 %v1694, 2147483648
    %v1709 = vmul.f32 %v1708, 1.442695
    %v1710 = vpow.pop %v1709
    %v1711 = vadd.f32 %v1710, 1.0
    %v1712 = vrcp.pop %v1711
    %v1713 = vmul.f32 1.0, %v1712
    %v1715 = vrot.slane %v1590, 6
    %v1717 = vmul.f32 %v1706, %v1715
    %v1718 = vmul.f32 %v1700, %v1707
    %v1719 = vadd.f32 %v1717, %v1718
    %v1720 = vtanh.pop %v1719
    %v1721 = vmul.f32 %v1713, %v1720
    %vm1722 = vcmask 1041408
    %v1723 = vsel %vm1722, %v836, %v962
    %vm1724 = vcmask 1043456
    %v1725 = vsel %vm1724, %v1723, %v1091
    %vm1726 = vcmask 1045504
    %v1727 = vsel %vm1726, %v1725, %v1220
    %v1728 = vsel %vm1722, %v1337, %v1463
    %v1729 = vsel %vm1724, %v1728, %v1592
    %v1730 = vsel %vm1726, %v1729, %v1721
    %v1731 = vld [vmem:[%s8] sm:$0xff]
    %v1732 = vld [vmem:[%s8 + $0x8] sm:$0xff]
    %v1733 = vld [vmem:[%s8 + $0x10] sm:$0xff]
    %v1734 = vld [vmem:[%s8 + $0x18] sm:$0xff]
    %v1735 = vld [vmem:[%s8 + $0x20] sm:$0xff]
    %v1736 = vld [vmem:[%s8 + $0x28] sm:$0xff]
    %v1737 = vld [vmem:[%s8 + $0x30] sm:$0xff]
    %v1738 = vld [vmem:[%s8 + $0x38] sm:$0xff]
    %v1739 = vld [vmem:[%s8 + $0x40] sm:$0xff]
    %v1740 = vld [vmem:[%s8 + $0x48] sm:$0xff]
    %v1741 = vld [vmem:[%s8 + $0x50] sm:$0xff]
    %v1742 = vld [vmem:[%s8 + $0x58] sm:$0xff]
    %v1743 = vld [vmem:[%s8 + $0x60] sm:$0xff]
    %v1744 = vld [vmem:[%s8 + $0x68] sm:$0xff]
    %v1745 = vld [vmem:[%s8 + $0x70] sm:$0xff]
    %v1746 = vld [vmem:[%s8 + $0x78] sm:$0xff]
    %v1747 = vld [vmem:[%s8 + $0x80] sm:$0xff]
    %v1748 = vld [vmem:[%s8 + $0x88] sm:$0xff]
    %v1749 = vld [vmem:[%s8 + $0x90] sm:$0xff]
    %v1750 = vld [vmem:[%s8 + $0x98] sm:$0xff]
    %v1751 = vld [vmem:[%s8 + $0xa0] sm:$0xff]
    %v1752 = vld [vmem:[%s8 + $0xa8] sm:$0xff]
    %v1753 = vld [vmem:[%s8 + $0xb0] sm:$0xff]
    %v1754 = vld [vmem:[%s8 + $0xb8] sm:$0xff]
    %v1755 = vld [vmem:[%s8 + $0xc0] sm:$0xff]
    %v1756 = vld [vmem:[%s8 + $0xc8] sm:$0xff]
    %v1757 = vld [vmem:[%s8 + $0xd0] sm:$0xff]
    %v1758 = vld [vmem:[%s8 + $0xd8] sm:$0xff]
    %v1759 = vld [vmem:[%s8 + $0xe0] sm:$0xff]
    %v1760 = vld [vmem:[%s8 + $0xe8] sm:$0xff]
    %v1761 = vld [vmem:[%s8 + $0xf0] sm:$0xff]
    %v1762 = vld [vmem:[%s8 + $0xf8] sm:$0xff]
    %v1763 = vld [vmem:[%s9] sm:$0xff]
    %v1764 = vld [vmem:[%s9 + $0x8] sm:$0xff]
    %v1765 = vld [vmem:[%s9 + $0x10] sm:$0xff]
    %v1766 = vld [vmem:[%s9 + $0x18] sm:$0xff]
    %v1767 = vld [vmem:[%s9 + $0x20] sm:$0xff]
    %v1768 = vld [vmem:[%s9 + $0x28] sm:$0xff]
    %v1769 = vld [vmem:[%s9 + $0x30] sm:$0xff]
    %v1770 = vld [vmem:[%s9 + $0x38] sm:$0xff]
    %v1771 = vld [vmem:[%s9 + $0x40] sm:$0xff]
    %v1772 = vld [vmem:[%s9 + $0x48] sm:$0xff]
    %v1773 = vld [vmem:[%s9 + $0x50] sm:$0xff]
    %v1774 = vld [vmem:[%s9 + $0x58] sm:$0xff]
    %v1775 = vld [vmem:[%s9 + $0x60] sm:$0xff]
    %v1776 = vld [vmem:[%s9 + $0x68] sm:$0xff]
    %v1777 = vld [vmem:[%s9 + $0x70] sm:$0xff]
    %v1778 = vld [vmem:[%s9 + $0x78] sm:$0xff]
    %v1779 = vld [vmem:[%s9 + $0x80] sm:$0xff]
    %v1780 = vld [vmem:[%s9 + $0x88] sm:$0xff]
    %v1781 = vld [vmem:[%s9 + $0x90] sm:$0xff]
    %v1782 = vld [vmem:[%s9 + $0x98] sm:$0xff]
    %v1783 = vld [vmem:[%s9 + $0xa0] sm:$0xff]
    %v1784 = vld [vmem:[%s9 + $0xa8] sm:$0xff]
    %v1785 = vld [vmem:[%s9 + $0xb0] sm:$0xff]
    %v1786 = vld [vmem:[%s9 + $0xb8] sm:$0xff]
    %v1787 = vld [vmem:[%s9 + $0xc0] sm:$0xff]
    %v1788 = vld [vmem:[%s9 + $0xc8] sm:$0xff]
    %v1789 = vld [vmem:[%s9 + $0xd0] sm:$0xff]
    %v1790 = vld [vmem:[%s9 + $0xd8] sm:$0xff]
    %v1791 = vld [vmem:[%s9 + $0xe0] sm:$0xff]
    %v1792 = vld [vmem:[%s9 + $0xe8] sm:$0xff]
    %v1793 = vld [vmem:[%s9 + $0xf0] sm:$0xff]
    %v1794 = vld [vmem:[%s9 + $0xf8] sm:$0xff]
    %v1795 = vld [vmem:[%s10] sm:$0xf]
    %v1796 = vpack.c.bf16 %v1730, %v1727
    %v1798 = vlaneseq
    %v1799 = vshrl.u32 %v1798, 7
    %v1800 = vsub.s32 0, %v1799
    %v1801 = vrot.slane %v1795, %v1800
    %v1802 = vlaneseq
    %v1803 = vshrl.u32 %v1802, 7
    %v1804 = vsub.s32 1, %v1803
    %v1805 = vrot.slane %v1795, %v1804
    %v1806 = vlaneseq
    %v1807 = vshrl.u32 %v1806, 7
    %v1808 = vsub.s32 2, %v1807
    %v1809 = vrot.slane %v1795, %v1808
    %v1810 = vlaneseq
    %v1811 = vshrl.u32 %v1810, 7
    %v1812 = vsub.s32 3, %v1811
    %v1813 = vrot.slane %v1795, %v1812
    %v1850 = vunpack.c.l.b16 %v1731
    %v1851 = vunpack.c.h.b16 %v1731
    %v1852 = vunpack.c.l.b16 %v1732
    %v1853 = vunpack.c.h.b16 %v1732
    %v1854 = vunpack.c.l.b16 %v1733
    %v1855 = vunpack.c.h.b16 %v1733
    %v1856 = vunpack.c.l.b16 %v1734
    %v1857 = vunpack.c.h.b16 %v1734
    %v1858 = vunpack.c.l.b16 %v1735
    %v1859 = vunpack.c.h.b16 %v1735
    %v1860 = vunpack.c.l.b16 %v1736
    %v1861 = vunpack.c.h.b16 %v1736
    %v1862 = vunpack.c.l.b16 %v1737
    %v1863 = vunpack.c.h.b16 %v1737
    %v1864 = vunpack.c.l.b16 %v1738
    %v1865 = vunpack.c.h.b16 %v1738
    %v1866 = vunpack.c.l.b16 %v1739
    %v1867 = vunpack.c.h.b16 %v1739
    %v1868 = vunpack.c.l.b16 %v1740
    %v1869 = vunpack.c.h.b16 %v1740
    %v1870 = vunpack.c.l.b16 %v1741
    %v1871 = vunpack.c.h.b16 %v1741
    %v1872 = vunpack.c.l.b16 %v1742
    %v1873 = vunpack.c.h.b16 %v1742
    %v1874 = vunpack.c.l.b16 %v1743
    %v1875 = vunpack.c.h.b16 %v1743
    %v1876 = vunpack.c.l.b16 %v1744
    %v1877 = vunpack.c.h.b16 %v1744
    %v1878 = vunpack.c.l.b16 %v1745
    %v1879 = vunpack.c.h.b16 %v1745
    %v1880 = vunpack.c.l.b16 %v1746
    %v1881 = vunpack.c.h.b16 %v1746
    %v1882 = vunpack.c.l.b16 %v1747
    %v1883 = vunpack.c.h.b16 %v1747
    %v1884 = vunpack.c.l.b16 %v1748
    %v1885 = vunpack.c.h.b16 %v1748
    %v1886 = vunpack.c.l.b16 %v1749
    %v1887 = vunpack.c.h.b16 %v1749
    %v1888 = vunpack.c.l.b16 %v1750
    %v1889 = vunpack.c.h.b16 %v1750
    %v1890 = vunpack.c.l.b16 %v1751
    %v1891 = vunpack.c.h.b16 %v1751
    %v1892 = vunpack.c.l.b16 %v1752
    %v1893 = vunpack.c.h.b16 %v1752
    %v1894 = vunpack.c.l.b16 %v1753
    %v1895 = vunpack.c.h.b16 %v1753
    %v1896 = vunpack.c.l.b16 %v1754
    %v1897 = vunpack.c.h.b16 %v1754
    %v1898 = vunpack.c.l.b16 %v1755
    %v1899 = vunpack.c.h.b16 %v1755
    %v1900 = vunpack.c.l.b16 %v1756
    %v1901 = vunpack.c.h.b16 %v1756
    %v1902 = vunpack.c.l.b16 %v1757
    %v1903 = vunpack.c.h.b16 %v1757
    %v1904 = vunpack.c.l.b16 %v1758
    %v1905 = vunpack.c.h.b16 %v1758
    %v1906 = vunpack.c.l.b16 %v1759
    %v1907 = vunpack.c.h.b16 %v1759
    %v1908 = vunpack.c.l.b16 %v1760
    %v1909 = vunpack.c.h.b16 %v1760
    %v1910 = vunpack.c.l.b16 %v1761
    %v1911 = vunpack.c.h.b16 %v1761
    %v1912 = vunpack.c.l.b16 %v1762
    %v1913 = vunpack.c.h.b16 %v1762
    %v1914 = vpack.c.b16 %v1854, %v1850
    %v1915 = vpack.c.b16 %v1855, %v1851
    %v1916 = vpack.c.b16 %v1856, %v1852
    %v1917 = vpack.c.b16 %v1857, %v1853
    %v1918 = vpack.c.b16 %v1862, %v1858
    %v1919 = vpack.c.b16 %v1863, %v1859
    %v1920 = vpack.c.b16 %v1864, %v1860
    %v1921 = vpack.c.b16 %v1865, %v1861
    %v1922 = vpack.c.b16 %v1870, %v1866
    %v1923 = vpack.c.b16 %v1871, %v1867
    %v1924 = vpack.c.b16 %v1872, %v1868
    %v1925 = vpack.c.b16 %v1873, %v1869
    %v1926 = vpack.c.b16 %v1878, %v1874
    %v1927 = vpack.c.b16 %v1879, %v1875
    %v1928 = vpack.c.b16 %v1880, %v1876
    %v1929 = vpack.c.b16 %v1881, %v1877
    %v1930 = vpack.c.b16 %v1886, %v1882
    %v1931 = vpack.c.b16 %v1887, %v1883
    %v1932 = vpack.c.b16 %v1888, %v1884
    %v1933 = vpack.c.b16 %v1889, %v1885
    %v1934 = vpack.c.b16 %v1894, %v1890
    %v1935 = vpack.c.b16 %v1895, %v1891
    %v1936 = vpack.c.b16 %v1896, %v1892
    %v1937 = vpack.c.b16 %v1897, %v1893
    %v1938 = vpack.c.b16 %v1902, %v1898
    %v1939 = vpack.c.b16 %v1903, %v1899
    %v1940 = vpack.c.b16 %v1904, %v1900
    %v1941 = vpack.c.b16 %v1905, %v1901
    %v1942 = vpack.c.b16 %v1910, %v1906
    %v1943 = vpack.c.b16 %v1911, %v1907
    %v1944 = vpack.c.b16 %v1912, %v1908
    %v1945 = vpack.c.b16 %v1913, %v1909
    %1978 = vmatprep.subr.bf16.mxu0 %v1915
    %1979 = vmatpush1.bf16.msra.mxu0 %v1914
    %1980 = vmatprep.subr.bf16.mxu0 %v1919
    %1981 = vmatpush1.bf16.msra.mxu0 %v1918
    %1982 = vmatprep.subr.bf16.mxu0 %v1923
    %1983 = vmatpush1.bf16.msra.mxu0 %v1922
    %1984 = vmatprep.subr.bf16.mxu0 %v1927
    %1985 = vmatpush1.bf16.msra.mxu0 %v1926
    %1986 = vmatprep.subr.bf16.mxu0 %v1931
    %1987 = vmatpush1.bf16.msra.mxu0 %v1930
    %1988 = vmatprep.subr.bf16.mxu0 %v1935
    %1989 = vmatpush1.bf16.msra.mxu0 %v1934
    %1990 = vmatprep.subr.bf16.mxu0 %v1939
    %1991 = vmatpush1.bf16.msra.mxu0 %v1938
    %1992 = vmatprep.subr.bf16.mxu0 %v1943
    %1993 = vmatpush1.bf16.msra.mxu0 %v1942
    %1994 = vmatprep.subr.bf16.mxu0 0
    %1995 = vmatpush1.bf16.msra.mxu0 0
    %1996 = vmatprep.subr.bf16.mxu0 0
    %1997 = vmatpush1.bf16.msra.mxu0 0
    %1998 = vmatprep.subr.bf16.mxu0 0
    %1999 = vmatpush1.bf16.msra.mxu0 0
    %2000 = vmatprep.subr.bf16.mxu0 0
    %2001 = vmatpush1.bf16.msra.mxu0 0
    %2002 = vmatprep.subr.bf16.mxu0 0
    %2003 = vmatpush1.bf16.msra.mxu0 0
    %2004 = vmatprep.subr.bf16.mxu0 0
    %2005 = vmatpush1.bf16.msra.mxu0 0
    %2006 = vmatprep.subr.bf16.mxu0 0
    %2007 = vmatpush1.bf16.msra.mxu0 0
    %2008 = vmatprep.subr.bf16.mxu0 0
    %2009 = vmatpush1.bf16.msra.mxu0 0
    %2010 = vmatprep.mubr.bf16.mxu0 0
    %2011 = vmatmul.mubr.bf16.gmra.mrb[0].mxu0 %v1796
    %v2012 = vpop.f32.mrb[0].mxu0
    %v2013 = vadd.f32 %v1801, %v2012
    %v2014 = vpop.f32.mrb[0].mxu0
    %v2015 = vadd.f32 %v1805, %v2014
    %v2016 = vpop.f32.mrb[0].mxu0
    %v2017 = vadd.f32 %v1801, %v2016
    %v2018 = vpop.f32.mrb[0].mxu0
    %v2019 = vadd.f32 %v1805, %v2018
    %2020 = vdwg.mxu0
    %2021 = vmatprep.subr.bf16.mxu0 %v1917
    %2022 = vmatpush1.bf16.msra.mxu0 %v1916
    %2023 = vmatprep.subr.bf16.mxu0 %v1921
    %2024 = vmatpush1.bf16.msra.mxu0 %v1920
    %2025 = vmatprep.subr.bf16.mxu0 %v1925
    %2026 = vmatpush1.bf16.msra.mxu0 %v1924
    %2027 = vmatprep.subr.bf16.mxu0 %v1929
    %2028 = vmatpush1.bf16.msra.mxu0 %v1928
    %2029 = vmatprep.subr.bf16.mxu0 %v1933
    %2030 = vmatpush1.bf16.msra.mxu0 %v1932
    %2031 = vmatprep.subr.bf16.mxu0 %v1937
    %2032 = vmatpush1.bf16.msra.mxu0 %v1936
    %2033 = vmatprep.subr.bf16.mxu0 %v1941
    %2034 = vmatpush1.bf16.msra.mxu0 %v1940
    %2035 = vmatprep.subr.bf16.mxu0 %v1945
    %2036 = vmatpush1.bf16.msra.mxu0 %v1944
    %2037 = vmatprep.subr.bf16.mxu0 0
    %2038 = vmatpush1.bf16.msra.mxu0 0
    %2039 = vmatprep.subr.bf16.mxu0 0
    %2040 = vmatpush1.bf16.msra.mxu0 0
    %2041 = vmatprep.subr.bf16.mxu0 0
    %2042 = vmatpush1.bf16.msra.mxu0 0
    %2043 = vmatprep.subr.bf16.mxu0 0
    %2044 = vmatpush1.bf16.msra.mxu0 0
    %2045 = vmatprep.subr.bf16.mxu0 0
    %2046 = vmatpush1.bf16.msra.mxu0 0
    %2047 = vmatprep.subr.bf16.mxu0 0
    %2048 = vmatpush1.bf16.msra.mxu0 0
    %2049 = vmatprep.subr.bf16.mxu0 0
    %2050 = vmatpush1.bf16.msra.mxu0 0
    %2051 = vmatprep.subr.bf16.mxu0 0
    %2052 = vmatpush1.bf16.msra.mxu0 0
    %2053 = vmatprep.mubr.bf16.mxu0 0
    %2054 = vmatmul.mubr.bf16.gmra.mrb[0].mxu0 %v1796
    %v2055 = vpop.f32.mrb[0].mxu0
    %v2056 = vadd.f32 %v1809, %v2055
    %v2057 = vpop.f32.mrb[0].mxu0
    %v2058 = vadd.f32 %v1813, %v2057
    %v2059 = vpop.f32.mrb[0].mxu0
    %v2060 = vadd.f32 %v1809, %v2059
    %v2061 = vpop.f32.mrb[0].mxu0
    %v2062 = vadd.f32 %v1813, %v2061
    %2063 = vdwg.mxu0
    %v2096 = vunpack.c.l.b16 %v1763
    %v2097 = vunpack.c.h.b16 %v1763
    %v2098 = vunpack.c.l.b16 %v1764
    %v2099 = vunpack.c.h.b16 %v1764
    %v2100 = vunpack.c.l.b16 %v1765
    %v2101 = vunpack.c.h.b16 %v1765
    %v2102 = vunpack.c.l.b16 %v1766
    %v2103 = vunpack.c.h.b16 %v1766
    %v2104 = vunpack.c.l.b16 %v1767
    %v2105 = vunpack.c.h.b16 %v1767
    %v2106 = vunpack.c.l.b16 %v1768
    %v2107 = vunpack.c.h.b16 %v1768
    %v2108 = vunpack.c.l.b16 %v1769
    %v2109 = vunpack.c.h.b16 %v1769
    %v2110 = vunpack.c.l.b16 %v1770
    %v2111 = vunpack.c.h.b16 %v1770
    %v2112 = vunpack.c.l.b16 %v1771
    %v2113 = vunpack.c.h.b16 %v1771
    %v2114 = vunpack.c.l.b16 %v1772
    %v2115 = vunpack.c.h.b16 %v1772
    %v2116 = vunpack.c.l.b16 %v1773
    %v2117 = vunpack.c.h.b16 %v1773
    %v2118 = vunpack.c.l.b16 %v1774
    %v2119 = vunpack.c.h.b16 %v1774
    %v2120 = vunpack.c.l.b16 %v1775
    %v2121 = vunpack.c.h.b16 %v1775
    %v2122 = vunpack.c.l.b16 %v1776
    %v2123 = vunpack.c.h.b16 %v1776
    %v2124 = vunpack.c.l.b16 %v1777
    %v2125 = vunpack.c.h.b16 %v1777
    %v2126 = vunpack.c.l.b16 %v1778
    %v2127 = vunpack.c.h.b16 %v1778
    %v2128 = vunpack.c.l.b16 %v1779
    %v2129 = vunpack.c.h.b16 %v1779
    %v2130 = vunpack.c.l.b16 %v1780
    %v2131 = vunpack.c.h.b16 %v1780
    %v2132 = vunpack.c.l.b16 %v1781
    %v2133 = vunpack.c.h.b16 %v1781
    %v2134 = vunpack.c.l.b16 %v1782
    %v2135 = vunpack.c.h.b16 %v1782
    %v2136 = vunpack.c.l.b16 %v1783
    %v2137 = vunpack.c.h.b16 %v1783
    %v2138 = vunpack.c.l.b16 %v1784
    %v2139 = vunpack.c.h.b16 %v1784
    %v2140 = vunpack.c.l.b16 %v1785
    %v2141 = vunpack.c.h.b16 %v1785
    %v2142 = vunpack.c.l.b16 %v1786
    %v2143 = vunpack.c.h.b16 %v1786
    %v2144 = vunpack.c.l.b16 %v1787
    %v2145 = vunpack.c.h.b16 %v1787
    %v2146 = vunpack.c.l.b16 %v1788
    %v2147 = vunpack.c.h.b16 %v1788
    %v2148 = vunpack.c.l.b16 %v1789
    %v2149 = vunpack.c.h.b16 %v1789
    %v2150 = vunpack.c.l.b16 %v1790
    %v2151 = vunpack.c.h.b16 %v1790
    %v2152 = vunpack.c.l.b16 %v1791
    %v2153 = vunpack.c.h.b16 %v1791
    %v2154 = vunpack.c.l.b16 %v1792
    %v2155 = vunpack.c.h.b16 %v1792
    %v2156 = vunpack.c.l.b16 %v1793
    %v2157 = vunpack.c.h.b16 %v1793
    %v2158 = vunpack.c.l.b16 %v1794
    %v2159 = vunpack.c.h.b16 %v1794
    %v2160 = vpack.c.b16 %v2100, %v2096
    %v2161 = vpack.c.b16 %v2101, %v2097
    %v2162 = vpack.c.b16 %v2102, %v2098
    %v2163 = vpack.c.b16 %v2103, %v2099
    %v2164 = vpack.c.b16 %v2108, %v2104
    %v2165 = vpack.c.b16 %v2109, %v2105
    %v2166 = vpack.c.b16 %v2110, %v2106
    %v2167 = vpack.c.b16 %v2111, %v2107
    %v2168 = vpack.c.b16 %v2116, %v2112
    %v2169 = vpack.c.b16 %v2117, %v2113
    %v2170 = vpack.c.b16 %v2118, %v2114
    %v2171 = vpack.c.b16 %v2119, %v2115
    %v2172 = vpack.c.b16 %v2124, %v2120
    %v2173 = vpack.c.b16 %v2125, %v2121
    %v2174 = vpack.c.b16 %v2126, %v2122
    %v2175 = vpack.c.b16 %v2127, %v2123
    %v2176 = vpack.c.b16 %v2132, %v2128
    %v2177 = vpack.c.b16 %v2133, %v2129
    %v2178 = vpack.c.b16 %v2134, %v2130
    %v2179 = vpack.c.b16 %v2135, %v2131
    %v2180 = vpack.c.b16 %v2140, %v2136
    %v2181 = vpack.c.b16 %v2141, %v2137
    %v2182 = vpack.c.b16 %v2142, %v2138
    %v2183 = vpack.c.b16 %v2143, %v2139
    %v2184 = vpack.c.b16 %v2148, %v2144
    %v2185 = vpack.c.b16 %v2149, %v2145
    %v2186 = vpack.c.b16 %v2150, %v2146
    %v2187 = vpack.c.b16 %v2151, %v2147
    %v2188 = vpack.c.b16 %v2156, %v2152
    %v2189 = vpack.c.b16 %v2157, %v2153
    %v2190 = vpack.c.b16 %v2158, %v2154
    %v2191 = vpack.c.b16 %v2159, %v2155
    %2224 = vmatprep.subr.bf16.mxu0 %v2161
    %2225 = vmatpush1.bf16.msra.mxu0 %v2160
    %2226 = vmatprep.subr.bf16.mxu0 %v2165
    %2227 = vmatpush1.bf16.msra.mxu0 %v2164
    %2228 = vmatprep.subr.bf16.mxu0 %v2169
    %2229 = vmatpush1.bf16.msra.mxu0 %v2168
    %2230 = vmatprep.subr.bf16.mxu0 %v2173
    %2231 = vmatpush1.bf16.msra.mxu0 %v2172
    %2232 = vmatprep.subr.bf16.mxu0 %v2177
    %2233 = vmatpush1.bf16.msra.mxu0 %v2176
    %2234 = vmatprep.subr.bf16.mxu0 %v2181
    %2235 = vmatpush1.bf16.msra.mxu0 %v2180
    %2236 = vmatprep.subr.bf16.mxu0 %v2185
    %2237 = vmatpush1.bf16.msra.mxu0 %v2184
    %2238 = vmatprep.subr.bf16.mxu0 %v2189
    %2239 = vmatpush1.bf16.msra.mxu0 %v2188
    %2240 = vmatprep.subr.bf16.mxu0 0
    %2241 = vmatpush1.bf16.msra.mxu0 0
    %2242 = vmatprep.subr.bf16.mxu0 0
    %2243 = vmatpush1.bf16.msra.mxu0 0
    %2244 = vmatprep.subr.bf16.mxu0 0
    %2245 = vmatpush1.bf16.msra.mxu0 0
    %2246 = vmatprep.subr.bf16.mxu0 0
    %2247 = vmatpush1.bf16.msra.mxu0 0
    %2248 = vmatprep.subr.bf16.mxu0 0
    %2249 = vmatpush1.bf16.msra.mxu0 0
    %2250 = vmatprep.subr.bf16.mxu0 0
    %2251 = vmatpush1.bf16.msra.mxu0 0
    %2252 = vmatprep.subr.bf16.mxu0 0
    %2253 = vmatpush1.bf16.msra.mxu0 0
    %2254 = vmatprep.subr.bf16.mxu0 0
    %2255 = vmatpush1.bf16.msra.mxu0 0
    %2256 = vmatprep.mubr.bf16.mxu0 0
    %2257 = vmatmul.mubr.bf16.gmra.mrb[0].mxu0 0
    %v2258 = vpop.f32.mrb[0].mxu0
    %v2259 = vadd.f32 0.0, %v2258
    %v2260 = vpop.f32.mrb[0].mxu0
    %v2261 = vadd.f32 0.0, %v2260
    %v2262 = vpop.f32.mrb[0].mxu0
    %v2263 = vpop.f32.mrb[0].mxu0
    %2264 = vdwg.mxu0
    %2265 = vmatprep.subr.bf16.mxu0 %v2163
    %2266 = vmatpush1.bf16.msra.mxu0 %v2162
    %2267 = vmatprep.subr.bf16.mxu0 %v2167
    %2268 = vmatpush1.bf16.msra.mxu0 %v2166
    %2269 = vmatprep.subr.bf16.mxu0 %v2171
    %2270 = vmatpush1.bf16.msra.mxu0 %v2170
    %2271 = vmatprep.subr.bf16.mxu0 %v2175
    %2272 = vmatpush1.bf16.msra.mxu0 %v2174
    %2273 = vmatprep.subr.bf16.mxu0 %v2179
    %2274 = vmatpush1.bf16.msra.mxu0 %v2178
    %2275 = vmatprep.subr.bf16.mxu0 %v2183
    %2276 = vmatpush1.bf16.msra.mxu0 %v2182
    %2277 = vmatprep.subr.bf16.mxu0 %v2187
    %2278 = vmatpush1.bf16.msra.mxu0 %v2186
    %2279 = vmatprep.subr.bf16.mxu0 %v2191
    %2280 = vmatpush1.bf16.msra.mxu0 %v2190
    %2281 = vmatprep.subr.bf16.mxu0 0
    %2282 = vmatpush1.bf16.msra.mxu0 0
    %2283 = vmatprep.subr.bf16.mxu0 0
    %2284 = vmatpush1.bf16.msra.mxu0 0
    %2285 = vmatprep.subr.bf16.mxu0 0
    %2286 = vmatpush1.bf16.msra.mxu0 0
    %2287 = vmatprep.subr.bf16.mxu0 0
    %2288 = vmatpush1.bf16.msra.mxu0 0
    %2289 = vmatprep.subr.bf16.mxu0 0
    %2290 = vmatpush1.bf16.msra.mxu0 0
    %2291 = vmatprep.subr.bf16.mxu0 0
    %2292 = vmatpush1.bf16.msra.mxu0 0
    %2293 = vmatprep.subr.bf16.mxu0 0
    %2294 = vmatpush1.bf16.msra.mxu0 0
    %2295 = vmatprep.subr.bf16.mxu0 0
    %2296 = vmatpush1.bf16.msra.mxu0 0
    %2297 = vmatprep.mubr.bf16.mxu0 0
    %2298 = vmatmul.mubr.bf16.gmra.mrb[0].mxu0 0
    %v2299 = vpop.f32.mrb[0].mxu0
    %v2300 = vadd.f32 0.0, %v2299
    %v2301 = vpop.f32.mrb[0].mxu0
    %v2302 = vadd.f32 0.0, %v2301
    %v2303 = vpop.f32.mrb[0].mxu0
    %v2304 = vpop.f32.mrb[0].mxu0
    %2305 = vdwg.mxu0
    %v2306 = vadd.f32 %v2013, %v2259
    %v2307 = vadd.f32 %v2015, %v2261
    %v2308 = vadd.f32 %v2056, %v2300
    %v2309 = vadd.f32 %v2058, %v2302
    %v2310 = vxor.u32 %v2306, 2147483648
    %v2311 = vmul.f32 %v2310, 1.442695
    %v2312 = vpow.pop %v2311
    %v2313 = vadd.f32 %v2312, 1.0
    %v2314 = vrcp.pop %v2313
    %v2315 = vmul.f32 1.0, %v2314
    %v2316 = vxor.u32 %v2307, 2147483648
    %v2317 = vmul.f32 %v2316, 1.442695
    %v2318 = vpow.pop %v2317
    %v2319 = vadd.f32 %v2318, 1.0
    %v2320 = vrcp.pop %v2319
    %v2321 = vmul.f32 1.0, %v2320
    %v2322 = vtanh.pop %v2308
    %v2323 = vxor.u32 %v2309, 2147483648
    %v2324 = vmul.f32 %v2323, 1.442695
    %v2325 = vpow.pop %v2324
    %v2326 = vadd.f32 %v2325, 1.0
    %v2327 = vrcp.pop %v2326
    %v2328 = vmul.f32 1.0, %v2327
    %v2329 = vmul.f32 %v2321, 0.0
    %v2330 = vmul.f32 %v2315, %v2322
    %v2331 = vadd.f32 %v2329, %v2330
    %v2332 = vtanh.pop %v2331
    %v2333 = vmul.f32 %v2328, %v2332
    %v2334 = vpack.c.bf16 %v2333, %v2333
    %2335 = vmatprep.subr.bf16.mxu0 %v2161
    %2336 = vmatpush1.bf16.msra.mxu0 %v2160
    %2337 = vmatprep.subr.bf16.mxu0 %v2165
    %2338 = vmatpush1.bf16.msra.mxu0 %v2164
    %2339 = vmatprep.subr.bf16.mxu0 %v2169
    %2340 = vmatpush1.bf16.msra.mxu0 %v2168
    %2341 = vmatprep.subr.bf16.mxu0 %v2173
    %2342 = vmatpush1.bf16.msra.mxu0 %v2172
    %2343 = vmatprep.subr.bf16.mxu0 %v2177
    %2344 = vmatpush1.bf16.msra.mxu0 %v2176
    %2345 = vmatprep.subr.bf16.mxu0 %v2181
    %2346 = vmatpush1.bf16.msra.mxu0 %v2180
    %2347 = vmatprep.subr.bf16.mxu0 %v2185
    %2348 = vmatpush1.bf16.msra.mxu0 %v2184
    %2349 = vmatprep.subr.bf16.mxu0 %v2189
    %2350 = vmatpush1.bf16.msra.mxu0 %v2188
    %2351 = vmatprep.subr.bf16.mxu0 0
    %2352 = vmatpush1.bf16.msra.mxu0 0
    %2353 = vmatprep.subr.bf16.mxu0 0
    %2354 = vmatpush1.bf16.msra.mxu0 0
    %2355 = vmatprep.subr.bf16.mxu0 0
    %2356 = vmatpush1.bf16.msra.mxu0 0
    %2357 = vmatprep.subr.bf16.mxu0 0
    %2358 = vmatpush1.bf16.msra.mxu0 0
    %2359 = vmatprep.subr.bf16.mxu0 0
    %2360 = vmatpush1.bf16.msra.mxu0 0
    %2361 = vmatprep.subr.bf16.mxu0 0
    %2362 = vmatpush1.bf16.msra.mxu0 0
    %2363 = vmatprep.subr.bf16.mxu0 0
    %2364 = vmatpush1.bf16.msra.mxu0 0
    %2365 = vmatprep.subr.bf16.mxu0 0
    %2366 = vmatpush1.bf16.msra.mxu0 0
    %2367 = vmatprep.mubr.bf16.mxu0 0
    %2368 = vmatmul.mubr.bf16.gmra.mrb[0].mxu0 %v2334
    %v2369 = vpop.f32.mrb[0].mxu0
    %v2370 = vadd.f32 0.0, %v2369
    %v2371 = vpop.f32.mrb[0].mxu0
    %v2372 = vadd.f32 0.0, %v2371
    %v2373 = vpop.f32.mrb[0].mxu0
    %v2374 = vpop.f32.mrb[0].mxu0
    %2375 = vdwg.mxu0
    %2376 = vmatprep.subr.bf16.mxu0 %v2163
    %2377 = vmatpush1.bf16.msra.mxu0 %v2162
    %2378 = vmatprep.subr.bf16.mxu0 %v2167
    %2379 = vmatpush1.bf16.msra.mxu0 %v2166
    %2380 = vmatprep.subr.bf16.mxu0 %v2171
    %2381 = vmatpush1.bf16.msra.mxu0 %v2170
    %2382 = vmatprep.subr.bf16.mxu0 %v2175
    %2383 = vmatpush1.bf16.msra.mxu0 %v2174
    %2384 = vmatprep.subr.bf16.mxu0 %v2179
    %2385 = vmatpush1.bf16.msra.mxu0 %v2178
    %2386 = vmatprep.subr.bf16.mxu0 %v2183
    %2387 = vmatpush1.bf16.msra.mxu0 %v2182
    %2388 = vmatprep.subr.bf16.mxu0 %v2187
    %2389 = vmatpush1.bf16.msra.mxu0 %v2186
    %2390 = vmatprep.subr.bf16.mxu0 %v2191
    %2391 = vmatpush1.bf16.msra.mxu0 %v2190
    %2392 = vmatprep.subr.bf16.mxu0 0
    %2393 = vmatpush1.bf16.msra.mxu0 0
    %2394 = vmatprep.subr.bf16.mxu0 0
    %2395 = vmatpush1.bf16.msra.mxu0 0
    %2396 = vmatprep.subr.bf16.mxu0 0
    %2397 = vmatpush1.bf16.msra.mxu0 0
    %2398 = vmatprep.subr.bf16.mxu0 0
    %2399 = vmatpush1.bf16.msra.mxu0 0
    %2400 = vmatprep.subr.bf16.mxu0 0
    %2401 = vmatpush1.bf16.msra.mxu0 0
    %2402 = vmatprep.subr.bf16.mxu0 0
    %2403 = vmatpush1.bf16.msra.mxu0 0
    %2404 = vmatprep.subr.bf16.mxu0 0
    %2405 = vmatpush1.bf16.msra.mxu0 0
    %2406 = vmatprep.subr.bf16.mxu0 0
    %2407 = vmatpush1.bf16.msra.mxu0 0
    %2408 = vmatprep.mubr.bf16.mxu0 0
    %2409 = vmatmul.mubr.bf16.gmra.mrb[0].mxu0 %v2334
    %v2410 = vpop.f32.mrb[0].mxu0
    %v2411 = vadd.f32 0.0, %v2410
    %v2412 = vpop.f32.mrb[0].mxu0
    %v2413 = vadd.f32 0.0, %v2412
    %v2414 = vpop.f32.mrb[0].mxu0
    %v2415 = vpop.f32.mrb[0].mxu0
    %2416 = vdwg.mxu0
    %v2421 = vrot.slane %v2370, 6
    %v2422 = vrot.slane %v2372, 6
    %v2423 = vrot.slane %v2411, 6
    %v2424 = vrot.slane %v2413, 6
    %v2429 = vadd.f32 %v2013, %v2421
    %v2430 = vadd.f32 %v2015, %v2422
    %v2431 = vadd.f32 %v2056, %v2423
    %v2432 = vadd.f32 %v2058, %v2424
    %v2433 = vxor.u32 %v2429, 2147483648
    %v2434 = vmul.f32 %v2433, 1.442695
    %v2435 = vpow.pop %v2434
    %v2436 = vadd.f32 %v2435, 1.0
    %v2437 = vrcp.pop %v2436
    %v2438 = vmul.f32 1.0, %v2437
    %v2439 = vxor.u32 %v2430, 2147483648
    %v2440 = vmul.f32 %v2439, 1.442695
    %v2441 = vpow.pop %v2440
    %v2442 = vadd.f32 %v2441, 1.0
    %v2443 = vrcp.pop %v2442
    %v2444 = vmul.f32 1.0, %v2443
    %v2445 = vtanh.pop %v2431
    %v2446 = vxor.u32 %v2432, 2147483648
    %v2447 = vmul.f32 %v2446, 1.442695
    %v2448 = vpow.pop %v2447
    %v2449 = vadd.f32 %v2448, 1.0
    %v2450 = vrcp.pop %v2449
    %v2451 = vmul.f32 1.0, %v2450
    %v2453 = vrot.slane %v2331, 6
    %v2455 = vmul.f32 %v2444, %v2453
    %v2456 = vmul.f32 %v2438, %v2445
    %v2457 = vadd.f32 %v2455, %v2456
    %v2458 = vtanh.pop %v2457
    %v2459 = vmul.f32 %v2451, %v2458
    %v2460 = vpack.c.bf16 %v2459, %v2459
    %v2462 = vrot.slane %v2460, 1
    %2464 = vmatprep.subr.bf16.mxu0 %v2161
    %2465 = vmatpush1.bf16.msra.mxu0 %v2160
    %2466 = vmatprep.subr.bf16.mxu0 %v2165
    %2467 = vmatpush1.bf16.msra.mxu0 %v2164
    %2468 = vmatprep.subr.bf16.mxu0 %v2169
    %2469 = vmatpush1.bf16.msra.mxu0 %v2168
    %2470 = vmatprep.subr.bf16.mxu0 %v2173
    %2471 = vmatpush1.bf16.msra.mxu0 %v2172
    %2472 = vmatprep.subr.bf16.mxu0 %v2177
    %2473 = vmatpush1.bf16.msra.mxu0 %v2176
    %2474 = vmatprep.subr.bf16.mxu0 %v2181
    %2475 = vmatpush1.bf16.msra.mxu0 %v2180
    %2476 = vmatprep.subr.bf16.mxu0 %v2185
    %2477 = vmatpush1.bf16.msra.mxu0 %v2184
    %2478 = vmatprep.subr.bf16.mxu0 %v2189
    %2479 = vmatpush1.bf16.msra.mxu0 %v2188
    %2480 = vmatprep.subr.bf16.mxu0 0
    %2481 = vmatpush1.bf16.msra.mxu0 0
    %2482 = vmatprep.subr.bf16.mxu0 0
    %2483 = vmatpush1.bf16.msra.mxu0 0
    %2484 = vmatprep.subr.bf16.mxu0 0
    %2485 = vmatpush1.bf16.msra.mxu0 0
    %2486 = vmatprep.subr.bf16.mxu0 0
    %2487 = vmatpush1.bf16.msra.mxu0 0
    %2488 = vmatprep.subr.bf16.mxu0 0
    %2489 = vmatpush1.bf16.msra.mxu0 0
    %2490 = vmatprep.subr.bf16.mxu0 0
    %2491 = vmatpush1.bf16.msra.mxu0 0
    %2492 = vmatprep.subr.bf16.mxu0 0
    %2493 = vmatpush1.bf16.msra.mxu0 0
    %2494 = vmatprep.subr.bf16.mxu0 0
    %2495 = vmatpush1.bf16.msra.mxu0 0
    %2496 = vmatprep.mubr.bf16.mxu0 0
    %2497 = vmatmul.mubr.bf16.gmra.mrb[0].mxu0 %v2462
    %v2498 = vpop.f32.mrb[0].mxu0
    %v2499 = vadd.f32 0.0, %v2498
    %v2500 = vpop.f32.mrb[0].mxu0
    %v2501 = vadd.f32 0.0, %v2500
    %v2502 = vpop.f32.mrb[0].mxu0
    %v2503 = vpop.f32.mrb[0].mxu0
    %2504 = vdwg.mxu0
    %2505 = vmatprep.subr.bf16.mxu0 %v2163
    %2506 = vmatpush1.bf16.msra.mxu0 %v2162
    %2507 = vmatprep.subr.bf16.mxu0 %v2167
    %2508 = vmatpush1.bf16.msra.mxu0 %v2166
    %2509 = vmatprep.subr.bf16.mxu0 %v2171
    %2510 = vmatpush1.bf16.msra.mxu0 %v2170
    %2511 = vmatprep.subr.bf16.mxu0 %v2175
    %2512 = vmatpush1.bf16.msra.mxu0 %v2174
    %2513 = vmatprep.subr.bf16.mxu0 %v2179
    %2514 = vmatpush1.bf16.msra.mxu0 %v2178
    %2515 = vmatprep.subr.bf16.mxu0 %v2183
    %2516 = vmatpush1.bf16.msra.mxu0 %v2182
    %2517 = vmatprep.subr.bf16.mxu0 %v2187
    %2518 = vmatpush1.bf16.msra.mxu0 %v2186
    %2519 = vmatprep.subr.bf16.mxu0 %v2191
    %2520 = vmatpush1.bf16.msra.mxu0 %v2190
    %2521 = vmatprep.subr.bf16.mxu0 0
    %2522 = vmatpush1.bf16.msra.mxu0 0
    %2523 = vmatprep.subr.bf16.mxu0 0
    %2524 = vmatpush1.bf16.msra.mxu0 0
    %2525 = vmatprep.subr.bf16.mxu0 0
    %2526 = vmatpush1.bf16.msra.mxu0 0
    %2527 = vmatprep.subr.bf16.mxu0 0
    %2528 = vmatpush1.bf16.msra.mxu0 0
    %2529 = vmatprep.subr.bf16.mxu0 0
    %2530 = vmatpush1.bf16.msra.mxu0 0
    %2531 = vmatprep.subr.bf16.mxu0 0
    %2532 = vmatpush1.bf16.msra.mxu0 0
    %2533 = vmatprep.subr.bf16.mxu0 0
    %2534 = vmatpush1.bf16.msra.mxu0 0
    %2535 = vmatprep.subr.bf16.mxu0 0
    %2536 = vmatpush1.bf16.msra.mxu0 0
    %2537 = vmatprep.mubr.bf16.mxu0 0
    %2538 = vmatmul.mubr.bf16.gmra.mrb[0].mxu0 %v2462
    %v2539 = vpop.f32.mrb[0].mxu0
    %v2540 = vadd.f32 0.0, %v2539
    %v2541 = vpop.f32.mrb[0].mxu0
    %v2542 = vadd.f32 0.0, %v2541
    %v2543 = vpop.f32.mrb[0].mxu0
    %v2544 = vpop.f32.mrb[0].mxu0
    %2545 = vdwg.mxu0
    %v2550 = vrot.slane %v2499, 4
    %v2551 = vrot.slane %v2501, 4
    %v2552 = vrot.slane %v2540, 4
    %v2553 = vrot.slane %v2542, 4
    %v2558 = vadd.f32 %v2013, %v2550
    %v2559 = vadd.f32 %v2015, %v2551
    %v2560 = vadd.f32 %v2056, %v2552
    %v2561 = vadd.f32 %v2058, %v2553
    %v2562 = vxor.u32 %v2558, 2147483648
    %v2563 = vmul.f32 %v2562, 1.442695
    %v2564 = vpow.pop %v2563
    %v2565 = vadd.f32 %v2564, 1.0
    %v2566 = vrcp.pop %v2565
    %v2567 = vmul.f32 1.0, %v2566
    %v2568 = vxor.u32 %v2559, 2147483648
    %v2569 = vmul.f32 %v2568, 1.442695
    %v2570 = vpow.pop %v2569
    %v2571 = vadd.f32 %v2570, 1.0
    %v2572 = vrcp.pop %v2571
    %v2573 = vmul.f32 1.0, %v2572
    %v2574 = vtanh.pop %v2560
    %v2575 = vxor.u32 %v2561, 2147483648
    %v2576 = vmul.f32 %v2575, 1.442695
    %v2577 = vpow.pop %v2576
    %v2578 = vadd.f32 %v2577, 1.0
    %v2579 = vrcp.pop %v2578
    %v2580 = vmul.f32 1.0, %v2579
    %v2582 = vrot.slane %v2457, 6
    %v2584 = vmul.f32 %v2573, %v2582
    %v2585 = vmul.f32 %v2567, %v2574
    %v2586 = vadd.f32 %v2584, %v2585
    %v2587 = vtanh.pop %v2586
    %v2588 = vmul.f32 %v2580, %v2587
    %v2589 = vpack.c.bf16 %v2588, %v2588
    %v2591 = vrot.slane %v2589, 2
    %2593 = vmatprep.subr.bf16.mxu0 %v2161
    %2594 = vmatpush1.bf16.msra.mxu0 %v2160
    %2595 = vmatprep.subr.bf16.mxu0 %v2165
    %2596 = vmatpush1.bf16.msra.mxu0 %v2164
    %2597 = vmatprep.subr.bf16.mxu0 %v2169
    %2598 = vmatpush1.bf16.msra.mxu0 %v2168
    %2599 = vmatprep.subr.bf16.mxu0 %v2173
    %2600 = vmatpush1.bf16.msra.mxu0 %v2172
    %2601 = vmatprep.subr.bf16.mxu0 %v2177
    %2602 = vmatpush1.bf16.msra.mxu0 %v2176
    %2603 = vmatprep.subr.bf16.mxu0 %v2181
    %2604 = vmatpush1.bf16.msra.mxu0 %v2180
    %2605 = vmatprep.subr.bf16.mxu0 %v2185
    %2606 = vmatpush1.bf16.msra.mxu0 %v2184
    %2607 = vmatprep.subr.bf16.mxu0 %v2189
    %2608 = vmatpush1.bf16.msra.mxu0 %v2188
    %2609 = vmatprep.subr.bf16.mxu0 0
    %2610 = vmatpush1.bf16.msra.mxu0 0
    %2611 = vmatprep.subr.bf16.mxu0 0
    %2612 = vmatpush1.bf16.msra.mxu0 0
    %2613 = vmatprep.subr.bf16.mxu0 0
    %2614 = vmatpush1.bf16.msra.mxu0 0
    %2615 = vmatprep.subr.bf16.mxu0 0
    %2616 = vmatpush1.bf16.msra.mxu0 0
    %2617 = vmatprep.subr.bf16.mxu0 0
    %2618 = vmatpush1.bf16.msra.mxu0 0
    %2619 = vmatprep.subr.bf16.mxu0 0
    %2620 = vmatpush1.bf16.msra.mxu0 0
    %2621 = vmatprep.subr.bf16.mxu0 0
    %2622 = vmatpush1.bf16.msra.mxu0 0
    %2623 = vmatprep.subr.bf16.mxu0 0
    %2624 = vmatpush1.bf16.msra.mxu0 0
    %2625 = vmatprep.mubr.bf16.mxu0 0
    %2626 = vmatmul.mubr.bf16.gmra.mrb[0].mxu0 %v2591
    %v2627 = vpop.f32.mrb[0].mxu0
    %v2628 = vadd.f32 0.0, %v2627
    %v2629 = vpop.f32.mrb[0].mxu0
    %v2630 = vadd.f32 0.0, %v2629
    %v2631 = vpop.f32.mrb[0].mxu0
    %v2632 = vpop.f32.mrb[0].mxu0
    %2633 = vdwg.mxu0
    %2634 = vmatprep.subr.bf16.mxu0 %v2163
    %2635 = vmatpush1.bf16.msra.mxu0 %v2162
    %2636 = vmatprep.subr.bf16.mxu0 %v2167
    %2637 = vmatpush1.bf16.msra.mxu0 %v2166
    %2638 = vmatprep.subr.bf16.mxu0 %v2171
    %2639 = vmatpush1.bf16.msra.mxu0 %v2170
    %2640 = vmatprep.subr.bf16.mxu0 %v2175
    %2641 = vmatpush1.bf16.msra.mxu0 %v2174
    %2642 = vmatprep.subr.bf16.mxu0 %v2179
    %2643 = vmatpush1.bf16.msra.mxu0 %v2178
    %2644 = vmatprep.subr.bf16.mxu0 %v2183
    %2645 = vmatpush1.bf16.msra.mxu0 %v2182
    %2646 = vmatprep.subr.bf16.mxu0 %v2187
    %2647 = vmatpush1.bf16.msra.mxu0 %v2186
    %2648 = vmatprep.subr.bf16.mxu0 %v2191
    %2649 = vmatpush1.bf16.msra.mxu0 %v2190
    %2650 = vmatprep.subr.bf16.mxu0 0
    %2651 = vmatpush1.bf16.msra.mxu0 0
    %2652 = vmatprep.subr.bf16.mxu0 0
    %2653 = vmatpush1.bf16.msra.mxu0 0
    %2654 = vmatprep.subr.bf16.mxu0 0
    %2655 = vmatpush1.bf16.msra.mxu0 0
    %2656 = vmatprep.subr.bf16.mxu0 0
    %2657 = vmatpush1.bf16.msra.mxu0 0
    %2658 = vmatprep.subr.bf16.mxu0 0
    %2659 = vmatpush1.bf16.msra.mxu0 0
    %2660 = vmatprep.subr.bf16.mxu0 0
    %2661 = vmatpush1.bf16.msra.mxu0 0
    %2662 = vmatprep.subr.bf16.mxu0 0
    %2663 = vmatpush1.bf16.msra.mxu0 0
    %2664 = vmatprep.subr.bf16.mxu0 0
    %2665 = vmatpush1.bf16.msra.mxu0 0
    %2666 = vmatprep.mubr.bf16.mxu0 0
    %2667 = vmatmul.mubr.bf16.gmra.mrb[0].mxu0 %v2591
    %v2668 = vpop.f32.mrb[0].mxu0
    %v2669 = vadd.f32 0.0, %v2668
    %v2670 = vpop.f32.mrb[0].mxu0
    %v2671 = vadd.f32 0.0, %v2670
    %v2672 = vpop.f32.mrb[0].mxu0
    %v2673 = vpop.f32.mrb[0].mxu0
    %2674 = vdwg.mxu0
    %v2679 = vrot.slane %v2628, 2
    %v2680 = vrot.slane %v2630, 2
    %v2681 = vrot.slane %v2669, 2
    %v2682 = vrot.slane %v2671, 2
    %v2687 = vadd.f32 %v2013, %v2679
    %v2688 = vadd.f32 %v2015, %v2680
    %v2689 = vadd.f32 %v2056, %v2681
    %v2690 = vadd.f32 %v2058, %v2682
    %v2691 = vxor.u32 %v2687, 2147483648
    %v2692 = vmul.f32 %v2691, 1.442695
    %v2693 = vpow.pop %v2692
    %v2694 = vadd.f32 %v2693, 1.0
    %v2695 = vrcp.pop %v2694
    %v2696 = vmul.f32 1.0, %v2695
    %v2697 = vxor.u32 %v2688, 2147483648
    %v2698 = vmul.f32 %v2697, 1.442695
    %v2699 = vpow.pop %v2698
    %v2700 = vadd.f32 %v2699, 1.0
    %v2701 = vrcp.pop %v2700
    %v2702 = vmul.f32 1.0, %v2701
    %v2703 = vtanh.pop %v2689
    %v2704 = vxor.u32 %v2690, 2147483648
    %v2705 = vmul.f32 %v2704, 1.442695
    %v2706 = vpow.pop %v2705
    %v2707 = vadd.f32 %v2706, 1.0
    %v2708 = vrcp.pop %v2707
    %v2709 = vmul.f32 1.0, %v2708
    %v2711 = vrot.slane %v2586, 6
    %v2713 = vmul.f32 %v2702, %v2711
    %v2714 = vmul.f32 %v2696, %v2703
    %v2715 = vadd.f32 %v2713, %v2714
    %v2716 = vtanh.pop %v2715
    %v2717 = vmul.f32 %v2709, %v2716
    %v2718 = vpack.c.bf16 %v2717, %v2717
    %v2720 = vrot.slane %v2718, 3
    %2722 = vmatprep.subr.bf16.mxu0 %v2161
    %2723 = vmatpush1.bf16.msra.mxu0 %v2160
    %2724 = vmatprep.subr.bf16.mxu0 %v2165
    %2725 = vmatpush1.bf16.msra.mxu0 %v2164
    %2726 = vmatprep.subr.bf16.mxu0 %v2169
    %2727 = vmatpush1.bf16.msra.mxu0 %v2168
    %2728 = vmatprep.subr.bf16.mxu0 %v2173
    %2729 = vmatpush1.bf16.msra.mxu0 %v2172
    %2730 = vmatprep.subr.bf16.mxu0 %v2177
    %2731 = vmatpush1.bf16.msra.mxu0 %v2176
    %2732 = vmatprep.subr.bf16.mxu0 %v2181
    %2733 = vmatpush1.bf16.msra.mxu0 %v2180
    %2734 = vmatprep.subr.bf16.mxu0 %v2185
    %2735 = vmatpush1.bf16.msra.mxu0 %v2184
    %2736 = vmatprep.subr.bf16.mxu0 %v2189
    %2737 = vmatpush1.bf16.msra.mxu0 %v2188
    %2738 = vmatprep.subr.bf16.mxu0 0
    %2739 = vmatpush1.bf16.msra.mxu0 0
    %2740 = vmatprep.subr.bf16.mxu0 0
    %2741 = vmatpush1.bf16.msra.mxu0 0
    %2742 = vmatprep.subr.bf16.mxu0 0
    %2743 = vmatpush1.bf16.msra.mxu0 0
    %2744 = vmatprep.subr.bf16.mxu0 0
    %2745 = vmatpush1.bf16.msra.mxu0 0
    %2746 = vmatprep.subr.bf16.mxu0 0
    %2747 = vmatpush1.bf16.msra.mxu0 0
    %2748 = vmatprep.subr.bf16.mxu0 0
    %2749 = vmatpush1.bf16.msra.mxu0 0
    %2750 = vmatprep.subr.bf16.mxu0 0
    %2751 = vmatpush1.bf16.msra.mxu0 0
    %2752 = vmatprep.subr.bf16.mxu0 0
    %2753 = vmatpush1.bf16.msra.mxu0 0
    %2754 = vmatprep.mubr.bf16.mxu0 0
    %2755 = vmatmul.mubr.bf16.gmra.mrb[0].mxu0 %v2720
    %v2756 = vpop.f32.mrb[0].mxu0
    %v2757 = vadd.f32 0.0, %v2756
    %v2758 = vpop.f32.mrb[0].mxu0
    %v2759 = vadd.f32 0.0, %v2758
    %v2760 = vpop.f32.mrb[0].mxu0
    %v2761 = vpop.f32.mrb[0].mxu0
    %2762 = vdwg.mxu0
    %2763 = vmatprep.subr.bf16.mxu0 %v2163
    %2764 = vmatpush1.bf16.msra.mxu0 %v2162
    %2765 = vmatprep.subr.bf16.mxu0 %v2167
    %2766 = vmatpush1.bf16.msra.mxu0 %v2166
    %2767 = vmatprep.subr.bf16.mxu0 %v2171
    %2768 = vmatpush1.bf16.msra.mxu0 %v2170
    %2769 = vmatprep.subr.bf16.mxu0 %v2175
    %2770 = vmatpush1.bf16.msra.mxu0 %v2174
    %2771 = vmatprep.subr.bf16.mxu0 %v2179
    %2772 = vmatpush1.bf16.msra.mxu0 %v2178
    %2773 = vmatprep.subr.bf16.mxu0 %v2183
    %2774 = vmatpush1.bf16.msra.mxu0 %v2182
    %2775 = vmatprep.subr.bf16.mxu0 %v2187
    %2776 = vmatpush1.bf16.msra.mxu0 %v2186
    %2777 = vmatprep.subr.bf16.mxu0 %v2191
    %2778 = vmatpush1.bf16.msra.mxu0 %v2190
    %2779 = vmatprep.subr.bf16.mxu0 0
    %2780 = vmatpush1.bf16.msra.mxu0 0
    %2781 = vmatprep.subr.bf16.mxu0 0
    %2782 = vmatpush1.bf16.msra.mxu0 0
    %2783 = vmatprep.subr.bf16.mxu0 0
    %2784 = vmatpush1.bf16.msra.mxu0 0
    %2785 = vmatprep.subr.bf16.mxu0 0
    %2786 = vmatpush1.bf16.msra.mxu0 0
    %2787 = vmatprep.subr.bf16.mxu0 0
    %2788 = vmatpush1.bf16.msra.mxu0 0
    %2789 = vmatprep.subr.bf16.mxu0 0
    %2790 = vmatpush1.bf16.msra.mxu0 0
    %2791 = vmatprep.subr.bf16.mxu0 0
    %2792 = vmatpush1.bf16.msra.mxu0 0
    %2793 = vmatprep.subr.bf16.mxu0 0
    %2794 = vmatpush1.bf16.msra.mxu0 0
    %2795 = vmatprep.mubr.bf16.mxu0 0
    %2796 = vmatmul.mubr.bf16.gmra.mrb[0].mxu0 %v2720
    %v2797 = vpop.f32.mrb[0].mxu0
    %v2798 = vadd.f32 0.0, %v2797
    %v2799 = vpop.f32.mrb[0].mxu0
    %v2800 = vadd.f32 0.0, %v2799
    %v2801 = vpop.f32.mrb[0].mxu0
    %v2802 = vpop.f32.mrb[0].mxu0
    %2803 = vdwg.mxu0
    %v2804 = vadd.f32 %v2017, %v2757
    %v2805 = vadd.f32 %v2019, %v2759
    %v2806 = vadd.f32 %v2060, %v2798
    %v2807 = vadd.f32 %v2062, %v2800
    %v2808 = vxor.u32 %v2804, 2147483648
    %v2809 = vmul.f32 %v2808, 1.442695
    %v2810 = vpow.pop %v2809
    %v2811 = vadd.f32 %v2810, 1.0
    %v2812 = vrcp.pop %v2811
    %v2813 = vmul.f32 1.0, %v2812
    %v2814 = vxor.u32 %v2805, 2147483648
    %v2815 = vmul.f32 %v2814, 1.442695
    %v2816 = vpow.pop %v2815
    %v2817 = vadd.f32 %v2816, 1.0
    %v2818 = vrcp.pop %v2817
    %v2819 = vmul.f32 1.0, %v2818
    %v2820 = vtanh.pop %v2806
    %v2821 = vxor.u32 %v2807, 2147483648
    %v2822 = vmul.f32 %v2821, 1.442695
    %v2823 = vpow.pop %v2822
    %v2824 = vadd.f32 %v2823, 1.0
    %v2825 = vrcp.pop %v2824
    %v2826 = vmul.f32 1.0, %v2825
    %v2828 = vrot.slane %v2715, 6
    %v2830 = vmul.f32 %v2819, %v2828
    %v2831 = vmul.f32 %v2813, %v2820
    %v2832 = vadd.f32 %v2830, %v2831
    %v2833 = vtanh.pop %v2832
    %v2834 = vmul.f32 %v2826, %v2833
    %v2835 = vpack.c.bf16 %v2834, %v2834
    %2836 = vmatprep.subr.bf16.mxu0 %v2161
    %2837 = vmatpush1.bf16.msra.mxu0 %v2160
    %2838 = vmatprep.subr.bf16.mxu0 %v2165
    %2839 = vmatpush1.bf16.msra.mxu0 %v2164
    %2840 = vmatprep.subr.bf16.mxu0 %v2169
    %2841 = vmatpush1.bf16.msra.mxu0 %v2168
    %2842 = vmatprep.subr.bf16.mxu0 %v2173
    %2843 = vmatpush1.bf16.msra.mxu0 %v2172
    %2844 = vmatprep.subr.bf16.mxu0 %v2177
    %2845 = vmatpush1.bf16.msra.mxu0 %v2176
    %2846 = vmatprep.subr.bf16.mxu0 %v2181
    %2847 = vmatpush1.bf16.msra.mxu0 %v2180
    %2848 = vmatprep.subr.bf16.mxu0 %v2185
    %2849 = vmatpush1.bf16.msra.mxu0 %v2184
    %2850 = vmatprep.subr.bf16.mxu0 %v2189
    %2851 = vmatpush1.bf16.msra.mxu0 %v2188
    %2852 = vmatprep.subr.bf16.mxu0 0
    %2853 = vmatpush1.bf16.msra.mxu0 0
    %2854 = vmatprep.subr.bf16.mxu0 0
    %2855 = vmatpush1.bf16.msra.mxu0 0
    %2856 = vmatprep.subr.bf16.mxu0 0
    %2857 = vmatpush1.bf16.msra.mxu0 0
    %2858 = vmatprep.subr.bf16.mxu0 0
    %2859 = vmatpush1.bf16.msra.mxu0 0
    %2860 = vmatprep.subr.bf16.mxu0 0
    %2861 = vmatpush1.bf16.msra.mxu0 0
    %2862 = vmatprep.subr.bf16.mxu0 0
    %2863 = vmatpush1.bf16.msra.mxu0 0
    %2864 = vmatprep.subr.bf16.mxu0 0
    %2865 = vmatpush1.bf16.msra.mxu0 0
    %2866 = vmatprep.subr.bf16.mxu0 0
    %2867 = vmatpush1.bf16.msra.mxu0 0
    %2868 = vmatprep.mubr.bf16.mxu0 0
    %2869 = vmatmul.mubr.bf16.gmra.mrb[0].mxu0 %v2835
    %v2870 = vpop.f32.mrb[0].mxu0
    %v2871 = vadd.f32 0.0, %v2870
    %v2872 = vpop.f32.mrb[0].mxu0
    %v2873 = vadd.f32 0.0, %v2872
    %v2874 = vpop.f32.mrb[0].mxu0
    %v2875 = vpop.f32.mrb[0].mxu0
    %2876 = vdwg.mxu0
    %2877 = vmatprep.subr.bf16.mxu0 %v2163
    %2878 = vmatpush1.bf16.msra.mxu0 %v2162
    %2879 = vmatprep.subr.bf16.mxu0 %v2167
    %2880 = vmatpush1.bf16.msra.mxu0 %v2166
    %2881 = vmatprep.subr.bf16.mxu0 %v2171
    %2882 = vmatpush1.bf16.msra.mxu0 %v2170
    %2883 = vmatprep.subr.bf16.mxu0 %v2175
    %2884 = vmatpush1.bf16.msra.mxu0 %v2174
    %2885 = vmatprep.subr.bf16.mxu0 %v2179
    %2886 = vmatpush1.bf16.msra.mxu0 %v2178
    %2887 = vmatprep.subr.bf16.mxu0 %v2183
    %2888 = vmatpush1.bf16.msra.mxu0 %v2182
    %2889 = vmatprep.subr.bf16.mxu0 %v2187
    %2890 = vmatpush1.bf16.msra.mxu0 %v2186
    %2891 = vmatprep.subr.bf16.mxu0 %v2191
    %2892 = vmatpush1.bf16.msra.mxu0 %v2190
    %2893 = vmatprep.subr.bf16.mxu0 0
    %2894 = vmatpush1.bf16.msra.mxu0 0
    %2895 = vmatprep.subr.bf16.mxu0 0
    %2896 = vmatpush1.bf16.msra.mxu0 0
    %2897 = vmatprep.subr.bf16.mxu0 0
    %2898 = vmatpush1.bf16.msra.mxu0 0
    %2899 = vmatprep.subr.bf16.mxu0 0
    %2900 = vmatpush1.bf16.msra.mxu0 0
    %2901 = vmatprep.subr.bf16.mxu0 0
    %2902 = vmatpush1.bf16.msra.mxu0 0
    %2903 = vmatprep.subr.bf16.mxu0 0
    %2904 = vmatpush1.bf16.msra.mxu0 0
    %2905 = vmatprep.subr.bf16.mxu0 0
    %2906 = vmatpush1.bf16.msra.mxu0 0
    %2907 = vmatprep.subr.bf16.mxu0 0
    %2908 = vmatpush1.bf16.msra.mxu0 0
    %2909 = vmatprep.mubr.bf16.mxu0 0
    %2910 = vmatmul.mubr.bf16.gmra.mrb[0].mxu0 %v2835
    %v2911 = vpop.f32.mrb[0].mxu0
    %v2912 = vadd.f32 0.0, %v2911
    %v2913 = vpop.f32.mrb[0].mxu0
    %v2914 = vadd.f32 0.0, %v2913
    %v2915 = vpop.f32.mrb[0].mxu0
    %v2916 = vpop.f32.mrb[0].mxu0
    %2917 = vdwg.mxu0
    %v2922 = vrot.slane %v2871, 6
    %v2923 = vrot.slane %v2873, 6
    %v2924 = vrot.slane %v2912, 6
    %v2925 = vrot.slane %v2914, 6
    %v2930 = vadd.f32 %v2017, %v2922
    %v2931 = vadd.f32 %v2019, %v2923
    %v2932 = vadd.f32 %v2060, %v2924
    %v2933 = vadd.f32 %v2062, %v2925
    %v2934 = vxor.u32 %v2930, 2147483648
    %v2935 = vmul.f32 %v2934, 1.442695
    %v2936 = vpow.pop %v2935
    %v2937 = vadd.f32 %v2936, 1.0
    %v2938 = vrcp.pop %v2937
    %v2939 = vmul.f32 1.0, %v2938
    %v2940 = vxor.u32 %v2931, 2147483648
    %v2941 = vmul.f32 %v2940, 1.442695
    %v2942 = vpow.pop %v2941
    %v2943 = vadd.f32 %v2942, 1.0
    %v2944 = vrcp.pop %v2943
    %v2945 = vmul.f32 1.0, %v2944
    %v2946 = vtanh.pop %v2932
    %v2947 = vxor.u32 %v2933, 2147483648
    %v2948 = vmul.f32 %v2947, 1.442695
    %v2949 = vpow.pop %v2948
    %v2950 = vadd.f32 %v2949, 1.0
    %v2951 = vrcp.pop %v2950
    %v2952 = vmul.f32 1.0, %v2951
    %v2954 = vrot.slane %v2832, 6
    %v2956 = vmul.f32 %v2945, %v2954
    %v2957 = vmul.f32 %v2939, %v2946
    %v2958 = vadd.f32 %v2956, %v2957
    %v2959 = vtanh.pop %v2958
    %v2960 = vmul.f32 %v2952, %v2959
    %v2961 = vpack.c.bf16 %v2960, %v2960
    %v2963 = vrot.slane %v2961, 1
    %2965 = vmatprep.subr.bf16.mxu0 %v2161
    %2966 = vmatpush1.bf16.msra.mxu0 %v2160
    %2967 = vmatprep.subr.bf16.mxu0 %v2165
    %2968 = vmatpush1.bf16.msra.mxu0 %v2164
    %2969 = vmatprep.subr.bf16.mxu0 %v2169
    %2970 = vmatpush1.bf16.msra.mxu0 %v2168
    %2971 = vmatprep.subr.bf16.mxu0 %v2173
    %2972 = vmatpush1.bf16.msra.mxu0 %v2172
    %2973 = vmatprep.subr.bf16.mxu0 %v2177
    %2974 = vmatpush1.bf16.msra.mxu0 %v2176
    %2975 = vmatprep.subr.bf16.mxu0 %v2181
    %2976 = vmatpush1.bf16.msra.mxu0 %v2180
    %2977 = vmatprep.subr.bf16.mxu0 %v2185
    %2978 = vmatpush1.bf16.msra.mxu0 %v2184
    %2979 = vmatprep.subr.bf16.mxu0 %v2189
    %2980 = vmatpush1.bf16.msra.mxu0 %v2188
    %2981 = vmatprep.subr.bf16.mxu0 0
    %2982 = vmatpush1.bf16.msra.mxu0 0
    %2983 = vmatprep.subr.bf16.mxu0 0
    %2984 = vmatpush1.bf16.msra.mxu0 0
    %2985 = vmatprep.subr.bf16.mxu0 0
    %2986 = vmatpush1.bf16.msra.mxu0 0
    %2987 = vmatprep.subr.bf16.mxu0 0
    %2988 = vmatpush1.bf16.msra.mxu0 0
    %2989 = vmatprep.subr.bf16.mxu0 0
    %2990 = vmatpush1.bf16.msra.mxu0 0
    %2991 = vmatprep.subr.bf16.mxu0 0
    %2992 = vmatpush1.bf16.msra.mxu0 0
    %2993 = vmatprep.subr.bf16.mxu0 0
    %2994 = vmatpush1.bf16.msra.mxu0 0
    %2995 = vmatprep.subr.bf16.mxu0 0
    %2996 = vmatpush1.bf16.msra.mxu0 0
    %2997 = vmatprep.mubr.bf16.mxu0 0
    %2998 = vmatmul.mubr.bf16.gmra.mrb[0].mxu0 %v2963
    %v2999 = vpop.f32.mrb[0].mxu0
    %v3000 = vadd.f32 0.0, %v2999
    %v3001 = vpop.f32.mrb[0].mxu0
    %v3002 = vadd.f32 0.0, %v3001
    %v3003 = vpop.f32.mrb[0].mxu0
    %v3004 = vpop.f32.mrb[0].mxu0
    %3005 = vdwg.mxu0
    %3006 = vmatprep.subr.bf16.mxu0 %v2163
    %3007 = vmatpush1.bf16.msra.mxu0 %v2162
    %3008 = vmatprep.subr.bf16.mxu0 %v2167
    %3009 = vmatpush1.bf16.msra.mxu0 %v2166
    %3010 = vmatprep.subr.bf16.mxu0 %v2171
    %3011 = vmatpush1.bf16.msra.mxu0 %v2170
    %3012 = vmatprep.subr.bf16.mxu0 %v2175
    %3013 = vmatpush1.bf16.msra.mxu0 %v2174
    %3014 = vmatprep.subr.bf16.mxu0 %v2179
    %3015 = vmatpush1.bf16.msra.mxu0 %v2178
    %3016 = vmatprep.subr.bf16.mxu0 %v2183
    %3017 = vmatpush1.bf16.msra.mxu0 %v2182
    %3018 = vmatprep.subr.bf16.mxu0 %v2187
    %3019 = vmatpush1.bf16.msra.mxu0 %v2186
    %3020 = vmatprep.subr.bf16.mxu0 %v2191
    %3021 = vmatpush1.bf16.msra.mxu0 %v2190
    %3022 = vmatprep.subr.bf16.mxu0 0
    %3023 = vmatpush1.bf16.msra.mxu0 0
    %3024 = vmatprep.subr.bf16.mxu0 0
    %3025 = vmatpush1.bf16.msra.mxu0 0
    %3026 = vmatprep.subr.bf16.mxu0 0
    %3027 = vmatpush1.bf16.msra.mxu0 0
    %3028 = vmatprep.subr.bf16.mxu0 0
    %3029 = vmatpush1.bf16.msra.mxu0 0
    %3030 = vmatprep.subr.bf16.mxu0 0
    %3031 = vmatpush1.bf16.msra.mxu0 0
    %3032 = vmatprep.subr.bf16.mxu0 0
    %3033 = vmatpush1.bf16.msra.mxu0 0
    %3034 = vmatprep.subr.bf16.mxu0 0
    %3035 = vmatpush1.bf16.msra.mxu0 0
    %3036 = vmatprep.subr.bf16.mxu0 0
    %3037 = vmatpush1.bf16.msra.mxu0 0
    %3038 = vmatprep.mubr.bf16.mxu0 0
    %3039 = vmatmul.mubr.bf16.gmra.mrb[0].mxu0 %v2963
    %v3040 = vpop.f32.mrb[0].mxu0
    %v3041 = vadd.f32 0.0, %v3040
    %v3042 = vpop.f32.mrb[0].mxu0
    %v3043 = vadd.f32 0.0, %v3042
    %v3044 = vpop.f32.mrb[0].mxu0
    %v3045 = vpop.f32.mrb[0].mxu0
    %3046 = vdwg.mxu0
    %v3051 = vrot.slane %v3000, 4
    %v3052 = vrot.slane %v3002, 4
    %v3053 = vrot.slane %v3041, 4
    %v3054 = vrot.slane %v3043, 4
    %v3059 = vadd.f32 %v2017, %v3051
    %v3060 = vadd.f32 %v2019, %v3052
    %v3061 = vadd.f32 %v2060, %v3053
    %v3062 = vadd.f32 %v2062, %v3054
    %v3063 = vxor.u32 %v3059, 2147483648
    %v3064 = vmul.f32 %v3063, 1.442695
    %v3065 = vpow.pop %v3064
    %v3066 = vadd.f32 %v3065, 1.0
    %v3067 = vrcp.pop %v3066
    %v3068 = vmul.f32 1.0, %v3067
    %v3069 = vxor.u32 %v3060, 2147483648
    %v3070 = vmul.f32 %v3069, 1.442695
    %v3071 = vpow.pop %v3070
    %v3072 = vadd.f32 %v3071, 1.0
    %v3073 = vrcp.pop %v3072
    %v3074 = vmul.f32 1.0, %v3073
    %v3075 = vtanh.pop %v3061
    %v3076 = vxor.u32 %v3062, 2147483648
    %v3077 = vmul.f32 %v3076, 1.442695
    %v3078 = vpow.pop %v3077
    %v3079 = vadd.f32 %v3078, 1.0
    %v3080 = vrcp.pop %v3079
    %v3081 = vmul.f32 1.0, %v3080
    %v3083 = vrot.slane %v2958, 6
    %v3085 = vmul.f32 %v3074, %v3083
    %v3086 = vmul.f32 %v3068, %v3075
    %v3087 = vadd.f32 %v3085, %v3086
    %v3088 = vtanh.pop %v3087
    %v3089 = vmul.f32 %v3081, %v3088
    %v3090 = vpack.c.bf16 %v3089, %v3089
    %v3092 = vrot.slane %v3090, 2
    %3094 = vmatprep.subr.bf16.mxu0 %v2161
    %3095 = vmatpush1.bf16.msra.mxu0 %v2160
    %3096 = vmatprep.subr.bf16.mxu0 %v2165
    %3097 = vmatpush1.bf16.msra.mxu0 %v2164
    %3098 = vmatprep.subr.bf16.mxu0 %v2169
    %3099 = vmatpush1.bf16.msra.mxu0 %v2168
    %3100 = vmatprep.subr.bf16.mxu0 %v2173
    %3101 = vmatpush1.bf16.msra.mxu0 %v2172
    %3102 = vmatprep.subr.bf16.mxu0 %v2177
    %3103 = vmatpush1.bf16.msra.mxu0 %v2176
    %3104 = vmatprep.subr.bf16.mxu0 %v2181
    %3105 = vmatpush1.bf16.msra.mxu0 %v2180
    %3106 = vmatprep.subr.bf16.mxu0 %v2185
    %3107 = vmatpush1.bf16.msra.mxu0 %v2184
    %3108 = vmatprep.subr.bf16.mxu0 %v2189
    %3109 = vmatpush1.bf16.msra.mxu0 %v2188
    %3110 = vmatprep.subr.bf16.mxu0 0
    %3111 = vmatpush1.bf16.msra.mxu0 0
    %3112 = vmatprep.subr.bf16.mxu0 0
    %3113 = vmatpush1.bf16.msra.mxu0 0
    %3114 = vmatprep.subr.bf16.mxu0 0
    %3115 = vmatpush1.bf16.msra.mxu0 0
    %3116 = vmatprep.subr.bf16.mxu0 0
    %3117 = vmatpush1.bf16.msra.mxu0 0
    %3118 = vmatprep.subr.bf16.mxu0 0
    %3119 = vmatpush1.bf16.msra.mxu0 0
    %3120 = vmatprep.subr.bf16.mxu0 0
    %3121 = vmatpush1.bf16.msra.mxu0 0
    %3122 = vmatprep.subr.bf16.mxu0 0
    %3123 = vmatpush1.bf16.msra.mxu0 0
    %3124 = vmatprep.subr.bf16.mxu0 0
    %3125 = vmatpush1.bf16.msra.mxu0 0
    %3126 = vmatprep.mubr.bf16.mxu0 0
    %3127 = vmatmul.mubr.bf16.gmra.mrb[0].mxu0 %v3092
    %v3128 = vpop.f32.mrb[0].mxu0
    %v3129 = vadd.f32 0.0, %v3128
    %v3130 = vpop.f32.mrb[0].mxu0
    %v3131 = vadd.f32 0.0, %v3130
    %v3132 = vpop.f32.mrb[0].mxu0
    %v3133 = vpop.f32.mrb[0].mxu0
    %3134 = vdwg.mxu0
    %3135 = vmatprep.subr.bf16.mxu0 %v2163
    %3136 = vmatpush1.bf16.msra.mxu0 %v2162
    %3137 = vmatprep.subr.bf16.mxu0 %v2167
    %3138 = vmatpush1.bf16.msra.mxu0 %v2166
    %3139 = vmatprep.subr.bf16.mxu0 %v2171
    %3140 = vmatpush1.bf16.msra.mxu0 %v2170
    %3141 = vmatprep.subr.bf16.mxu0 %v2175
    %3142 = vmatpush1.bf16.msra.mxu0 %v2174
    %3143 = vmatprep.subr.bf16.mxu0 %v2179
    %3144 = vmatpush1.bf16.msra.mxu0 %v2178
    %3145 = vmatprep.subr.bf16.mxu0 %v2183
    %3146 = vmatpush1.bf16.msra.mxu0 %v2182
    %3147 = vmatprep.subr.bf16.mxu0 %v2187
    %3148 = vmatpush1.bf16.msra.mxu0 %v2186
    %3149 = vmatprep.subr.bf16.mxu0 %v2191
    %3150 = vmatpush1.bf16.msra.mxu0 %v2190
    %3151 = vmatprep.subr.bf16.mxu0 0
    %3152 = vmatpush1.bf16.msra.mxu0 0
    %3153 = vmatprep.subr.bf16.mxu0 0
    %3154 = vmatpush1.bf16.msra.mxu0 0
    %3155 = vmatprep.subr.bf16.mxu0 0
    %3156 = vmatpush1.bf16.msra.mxu0 0
    %3157 = vmatprep.subr.bf16.mxu0 0
    %3158 = vmatpush1.bf16.msra.mxu0 0
    %3159 = vmatprep.subr.bf16.mxu0 0
    %3160 = vmatpush1.bf16.msra.mxu0 0
    %3161 = vmatprep.subr.bf16.mxu0 0
    %3162 = vmatpush1.bf16.msra.mxu0 0
    %3163 = vmatprep.subr.bf16.mxu0 0
    %3164 = vmatpush1.bf16.msra.mxu0 0
    %3165 = vmatprep.subr.bf16.mxu0 0
    %3166 = vmatpush1.bf16.msra.mxu0 0
    %3167 = vmatprep.mubr.bf16.mxu0 0
    %3168 = vmatmul.mubr.bf16.gmra.mrb[0].mxu0 %v3092
    %v3169 = vpop.f32.mrb[0].mxu0
    %v3170 = vadd.f32 0.0, %v3169
    %v3171 = vpop.f32.mrb[0].mxu0
    %v3172 = vadd.f32 0.0, %v3171
    %v3173 = vpop.f32.mrb[0].mxu0
    %v3174 = vpop.f32.mrb[0].mxu0
    %3175 = vdwg.mxu0
    %v3180 = vrot.slane %v3129, 2
    %v3181 = vrot.slane %v3131, 2
    %v3182 = vrot.slane %v3170, 2
    %v3183 = vrot.slane %v3172, 2
    %v3188 = vadd.f32 %v2017, %v3180
    %v3189 = vadd.f32 %v2019, %v3181
    %v3190 = vadd.f32 %v2060, %v3182
    %v3191 = vadd.f32 %v2062, %v3183
    %v3192 = vxor.u32 %v3188, 2147483648
    %v3193 = vmul.f32 %v3192, 1.442695
    %v3194 = vpow.pop %v3193
    %v3195 = vadd.f32 %v3194, 1.0
    %v3196 = vrcp.pop %v3195
    %v3197 = vmul.f32 1.0, %v3196
    %v3198 = vxor.u32 %v3189, 2147483648
    %v3199 = vmul.f32 %v3198, 1.442695
    %v3200 = vpow.pop %v3199
    %v3201 = vadd.f32 %v3200, 1.0
    %v3202 = vrcp.pop %v3201
    %v3203 = vmul.f32 1.0, %v3202
    %v3204 = vtanh.pop %v3190
    %v3205 = vxor.u32 %v3191, 2147483648
    %v3206 = vmul.f32 %v3205, 1.442695
    %v3207 = vpow.pop %v3206
    %v3208 = vadd.f32 %v3207, 1.0
    %v3209 = vrcp.pop %v3208
    %v3210 = vmul.f32 1.0, %v3209
    %v3212 = vrot.slane %v3087, 6
    %v3214 = vmul.f32 %v3203, %v3212
    %v3215 = vmul.f32 %v3197, %v3204
    %v3216 = vadd.f32 %v3214, %v3215
    %v3217 = vtanh.pop %v3216
    %v3218 = vmul.f32 %v3210, %v3217
    %v3219 = vsel %vm1722, %v2333, %v2459
    %v3220 = vsel %vm1724, %v3219, %v2588
    %v3221 = vsel %vm1726, %v3220, %v2717
    %v3222 = vsel %vm1722, %v2834, %v2960
    %v3223 = vsel %vm1724, %v3222, %v3089
    %v3224 = vsel %vm1726, %v3223, %v3218
    %v3225 = vpack.c.bf16 %v3224, %v3221
    %v3226 = vld [vmem:[%s3] sm:$0xff]
    %v3227 = vld [vmem:[%s3 + $0x8] sm:$0xff]
    %v3228 = vld [vmem:[%s3 + $0x10] sm:$0xff]
    %v3229 = vld [vmem:[%s3 + $0x18] sm:$0xff]
    %v3230 = vld [vmem:[%s3 + $0x20] sm:$0xff]
    %v3231 = vld [vmem:[%s3 + $0x28] sm:$0xff]
    %v3232 = vld [vmem:[%s3 + $0x30] sm:$0xff]
    %v3233 = vld [vmem:[%s3 + $0x38] sm:$0xff]
    %v3234 = vld [vmem:[%s3 + $0x40] sm:$0xff]
    %v3235 = vld [vmem:[%s3 + $0x48] sm:$0xff]
    %v3236 = vld [vmem:[%s3 + $0x50] sm:$0xff]
    %v3237 = vld [vmem:[%s3 + $0x58] sm:$0xff]
    %v3238 = vld [vmem:[%s3 + $0x60] sm:$0xff]
    %v3239 = vld [vmem:[%s3 + $0x68] sm:$0xff]
    %v3240 = vld [vmem:[%s3 + $0x70] sm:$0xff]
    %v3241 = vld [vmem:[%s3 + $0x78] sm:$0xff]
    %v3242 = vld [vmem:[%s4] sm:$0x3]
    %v3244 = vlaneseq
    %v3245 = vshrl.u32 %v3244, 7
    %v3246 = vsub.s32 0, %v3245
    %v3247 = vrot.slane %v3242, %v3246
    %v3248 = vlaneseq
    %v3249 = vshrl.u32 %v3248, 7
    %v3250 = vsub.s32 1, %v3249
    %v3251 = vrot.slane %v3242, %v3250
    %v3270 = vunpack.c.l.b16 %v3226
    %v3271 = vunpack.c.h.b16 %v3226
    %v3272 = vunpack.c.l.b16 %v3227
    %v3273 = vunpack.c.h.b16 %v3227
    %v3274 = vunpack.c.l.b16 %v3228
    %v3275 = vunpack.c.h.b16 %v3228
    %v3276 = vunpack.c.l.b16 %v3229
    %v3277 = vunpack.c.h.b16 %v3229
    %v3278 = vunpack.c.l.b16 %v3230
    %v3279 = vunpack.c.h.b16 %v3230
    %v3280 = vunpack.c.l.b16 %v3231
    %v3281 = vunpack.c.h.b16 %v3231
    %v3282 = vunpack.c.l.b16 %v3232
    %v3283 = vunpack.c.h.b16 %v3232
    %v3284 = vunpack.c.l.b16 %v3233
    %v3285 = vunpack.c.h.b16 %v3233
    %v3286 = vunpack.c.l.b16 %v3234
    %v3287 = vunpack.c.h.b16 %v3234
    %v3288 = vunpack.c.l.b16 %v3235
    %v3289 = vunpack.c.h.b16 %v3235
    %v3290 = vunpack.c.l.b16 %v3236
    %v3291 = vunpack.c.h.b16 %v3236
    %v3292 = vunpack.c.l.b16 %v3237
    %v3293 = vunpack.c.h.b16 %v3237
    %v3294 = vunpack.c.l.b16 %v3238
    %v3295 = vunpack.c.h.b16 %v3238
    %v3296 = vunpack.c.l.b16 %v3239
    %v3297 = vunpack.c.h.b16 %v3239
    %v3298 = vunpack.c.l.b16 %v3240
    %v3299 = vunpack.c.h.b16 %v3240
    %v3300 = vunpack.c.l.b16 %v3241
    %v3301 = vunpack.c.h.b16 %v3241
    %v3302 = vpack.c.b16 %v3272, %v3270
    %v3303 = vpack.c.b16 %v3273, %v3271
    %v3304 = vpack.c.b16 %v3276, %v3274
    %v3305 = vpack.c.b16 %v3277, %v3275
    %v3306 = vpack.c.b16 %v3280, %v3278
    %v3307 = vpack.c.b16 %v3281, %v3279
    %v3308 = vpack.c.b16 %v3284, %v3282
    %v3309 = vpack.c.b16 %v3285, %v3283
    %v3310 = vpack.c.b16 %v3288, %v3286
    %v3311 = vpack.c.b16 %v3289, %v3287
    %v3312 = vpack.c.b16 %v3292, %v3290
    %v3313 = vpack.c.b16 %v3293, %v3291
    %v3314 = vpack.c.b16 %v3296, %v3294
    %v3315 = vpack.c.b16 %v3297, %v3295
    %v3316 = vpack.c.b16 %v3300, %v3298
    %v3317 = vpack.c.b16 %v3301, %v3299
    %3334 = vmatprep.subr.bf16.mxu0 %v3303
    %3335 = vmatpush1.bf16.msra.mxu0 %v3302
    %3336 = vmatprep.subr.bf16.mxu0 %v3305
    %3337 = vmatpush1.bf16.msra.mxu0 %v3304
    %3338 = vmatprep.subr.bf16.mxu0 %v3307
    %3339 = vmatpush1.bf16.msra.mxu0 %v3306
    %3340 = vmatprep.subr.bf16.mxu0 %v3309
    %3341 = vmatpush1.bf16.msra.mxu0 %v3308
    %3342 = vmatprep.subr.bf16.mxu0 %v3311
    %3343 = vmatpush1.bf16.msra.mxu0 %v3310
    %3344 = vmatprep.subr.bf16.mxu0 %v3313
    %3345 = vmatpush1.bf16.msra.mxu0 %v3312
    %3346 = vmatprep.subr.bf16.mxu0 %v3315
    %3347 = vmatpush1.bf16.msra.mxu0 %v3314
    %3348 = vmatprep.subr.bf16.mxu0 %v3317
    %3349 = vmatpush1.bf16.msra.mxu0 %v3316
    %3350 = vmatprep.subr.bf16.mxu0 0
    %3351 = vmatpush1.bf16.msra.mxu0 0
    %3352 = vmatprep.subr.bf16.mxu0 0
    %3353 = vmatpush1.bf16.msra.mxu0 0
    %3354 = vmatprep.subr.bf16.mxu0 0
    %3355 = vmatpush1.bf16.msra.mxu0 0
    %3356 = vmatprep.subr.bf16.mxu0 0
    %3357 = vmatpush1.bf16.msra.mxu0 0
    %3358 = vmatprep.subr.bf16.mxu0 0
    %3359 = vmatpush1.bf16.msra.mxu0 0
    %3360 = vmatprep.subr.bf16.mxu0 0
    %3361 = vmatpush1.bf16.msra.mxu0 0
    %3362 = vmatprep.subr.bf16.mxu0 0
    %3363 = vmatpush1.bf16.msra.mxu0 0
    %3364 = vmatprep.subr.bf16.mxu0 0
    %3365 = vmatpush1.bf16.msra.mxu0 0
    %3366 = vmatprep.mubr.bf16.mxu0 0
    %3367 = vmatmul.mubr.bf16.gmra.mrb[0].mxu0 %v3225
    %v3368 = vpop.f32.mrb[0].mxu0
    %v3369 = vadd.f32 %v3247, %v3368
    %v3370 = vpop.f32.mrb[0].mxu0
    %v3371 = vadd.f32 %v3251, %v3370
    %v3372 = vpop.f32.mrb[0].mxu0
    %v3373 = vadd.f32 %v3247, %v3372
    %v3374 = vpop.f32.mrb[0].mxu0
    %v3375 = vadd.f32 %v3251, %v3374
    %3376 = vdwg.mxu0
    %v3377 = vmax.f32 %v3369, %v3371
    %3378 = vmax.xlane.f32.xlu0 %v3377
    %v3379 = vpop.xlane.xlu0 %3378
    %v3380 = vmax.f32 %v3373, %v3375
    %3381 = vmax.xlane.f32.xlu0 %v3380
    %v3382 = vpop.xlane.xlu0 %3381
    %v3383 = vsub.f32 %v3369, %v3379
    %v3384 = vsub.f32 %v3371, %v3379
    %v3385 = vsub.f32 %v3373, %v3382
    %v3386 = vsub.f32 %v3375, %v3382
    %v3387 = vmul.f32 %v3383, 1.442695
    %v3388 = vpow.pop %v3387
    %v3389 = vmul.f32 %v3384, 1.442695
    %v3390 = vpow.pop %v3389
    %v3391 = vmul.f32 %v3385, 1.442695
    %v3392 = vpow.pop %v3391
    %v3393 = vmul.f32 %v3386, 1.442695
    %v3394 = vpow.pop %v3393
    %v3395 = vadd.f32 %v3388, %v3390
    %3396 = vadd.xlane.f32.xlu0 %v3395
    %v3397 = vpop.xlane.xlu0 %3396
    %v3398 = vadd.f32 %v3392, %v3394
    %3399 = vadd.xlane.f32.xlu0 %v3398
    %v3400 = vpop.xlane.xlu0 %3399
    %v3401 = vlog2.pop %v3397
    %v3402 = vmul.f32 %v3401, 0.6931472
    %v3403 = vlog2.pop %v3400
    %v3404 = vmul.f32 %v3403, 0.6931472
    %v3405 = vadd.f32 %v3379, %v3402
    %v3406 = vadd.f32 %v3382, %v3404
    %v3407 = vld [vmem:[%s1] sm:$0xff]
    %v3408 = vld [vmem:[%s1 + $0x8] sm:$0xff]
    %3409 = vset.pattern.permute.xlu0 0
    %3410 = vperm.xlu0 %3409, %v3407
    %v3411 = vpop.permute.xlu0 %3410
    %3412 = vset.pattern.permute.xlu0 0
    %3413 = vperm.xlu0 %3412, %v3408
    %v3414 = vpop.permute.xlu0 %3413
    %vm3415 = vcmp.eq.s32.totalorder %v43, %v3411
    %vm3416 = vcmp.eq.s32.totalorder %v44, %v3411
    %vm3417 = vcmp.eq.s32.totalorder %v43, %v3414
    %vm3418 = vcmp.eq.s32.totalorder %v44, %v3414
    %v3419 = vsel %vm3415, %v3369, 0.0
    %v3420 = vsel %vm3416, %v3371, 0.0
    %v3421 = vsel %vm3417, %v3373, 0.0
    %v3422 = vsel %vm3418, %v3375, 0.0
    %v3423 = vadd.f32 %v3419, %v3420
    %3424 = vadd.xlane.f32.xlu0 %v3423
    %v3425 = vpop.xlane.xlu0 %3424
    %v3426 = vadd.f32 %v3421, %v3422
    %3427 = vadd.xlane.f32.xlu0 %v3426
    %v3428 = vpop.xlane.xlu0 %3427
    %v3429 = vsub.f32 %v3405, %v3425
    %v3430 = vsub.f32 %v3406, %v3428
    %v3431 = vadd.f32 %v3429, %v3430
    %v3432 = vrot.slane %v3431, 4
    %v3433 = vadd.f32 %v3431, %v3432
    %v3434 = vrot.slane %v3433, 2
    %v3435 = vadd.f32 %v3433, %v3434
    %v3436 = vrot.slane %v3435, 1
    %v3437 = vadd.f32 %v3435, %v3436
    %vm3438 = vcmask 0
    %3439 = vst.msk [vmem:[#allocation2] sm:$0x1] %vm3438, %v3437
    // Predicated region
    $region46: #{rnn_model_forward.1} parent=1 // pred_check
      _
    $region47: #{rnn_model_forward.1} parent=1 // pred_check_branch
      %3441 = sbr.rel (0) target = $region49
    $region48: #{rnn_model_forward.1} parent=1 // pred_region
      %s3443 = ssub.s32 16, 16
      %3444 = vsyncadd [#allocation3], %s3443
      %s3446 = sshll.u32 [#allocation2], 4
      %s3447 = int_to_ptr.vmem [resolvable:$true] %s3446
      %3449 = dma.vmem_to_hbm [thread:$0]  %s3447, 16, %s11, [#allocation3]
    $region49: #{rnn_model_forward.1} parent=1 // pred_fallthru
      _
    // Predicated region
    $region50: #{rnn_model_forward.1} parent=1 // pred_check
      _
    $region51: #{rnn_model_forward.1} parent=1 // pred_check_branch
      %3451 = sbr.rel (0) target = $region53
    $region52: #{rnn_model_forward.1} parent=1 // pred_region
      %3452 = dma.done [#allocation3], 16
    $region53: #{rnn_model_forward.1} parent=1 // pred_fallthru
      _
    %3453 = vsyncpa [#allocation3], 1

</llo_original>
